<compile_context>
chip_gen: v6e
topology: v6e:2x2x1
jax: 0.10.0
libtpu: 0.0.40
codegen_flags: <defaults>
</compile_context>

<pallas_src>
import functools

import jax
import jax.numpy as jnp
from jax import lax
from jax.experimental import pallas as pl
from jax.experimental.pallas import tpu as pltpu


def _make_gca_kernel(TH, W2, Ch):
    WP = W2 + 1            # padded row width of the flattened spatial grid
    MP = TH * WP           # working positions per tile (last column of each row is padding)

    def kernel(d_ref, y_ref, w4_ref, w1_ref, out_ref, m_ref, l_ref, acc_ref):
        t = pl.program_id(1)

        @pl.when(t == 0)
        def _init():
            m_ref[...] = jnp.full_like(m_ref, -1e30)
            l_ref[...] = jnp.zeros_like(l_ref)
            acc_ref[...] = jnp.zeros_like(acc_ref)

        # --- 3x3 / stride-2 conv: ONE fused MXU matmul over the halo block, then the
        #     four taps are constant-shifted column-slices of the narrow result ---
        full = jnp.dot(d_ref[...], w4_ref[...],
                       preferred_element_type=jnp.float32)          # (MBLK, 4*Ch) f32
        hidden = (full[0:MP,               0 * Ch:1 * Ch]            # tap (0,0)
                  + full[1:1 + MP,         1 * Ch:2 * Ch]            # tap (0,1)
                  + full[WP:WP + MP,       2 * Ch:3 * Ch]            # tap (1,0)
                  + full[WP + 1:WP + 1 + MP, 3 * Ch:4 * Ch])         # tap (1,1)
        hidden = jnp.maximum(hidden, 0.0)                            # ReLU, (MP, Ch)

        # --- 1x1 conv to one score per position (VPU multiply + lane reduce) ---
        score = jnp.sum(hidden * w1_ref[...], axis=-1, keepdims=True)   # (MP, 1) f32
        # in-kernel mask killing the padded (garbage) column of every spatial row
        col = lax.broadcasted_iota(jnp.int32, (MP, 1), 0) % WP
        score = jnp.where(col == W2, -1e30, score)      # finite (NOT -inf): keeps rescale NaN-free

        # --- online softmax (f32) + MXU attention-weighted sum over y ---
        m_prev = m_ref[...]                                          # (1, 1)
        m_new = jnp.maximum(m_prev, jnp.max(score, axis=0, keepdims=True))
        alpha = jnp.exp(m_prev - m_new)                              # (1, 1)
        p = jnp.exp(score - m_new)                                   # (MP, 1); exactly 0 at padded cols
        l_ref[...] = alpha * l_ref[...] + jnp.sum(p, axis=0, keepdims=True)
        m_ref[...] = m_new

        contrib = lax.dot_general(p.astype(jnp.bfloat16), y_ref[...],
                                  (((0,), (0,)), ((), ())),
                                  preferred_element_type=jnp.float32)   # (1, 2C) f32
        acc_ref[...] = alpha * acc_ref[...] + contrib

        @pl.when(t == pl.num_programs(1) - 1)
        def _finalize():
            out_ref[...] = (acc_ref[...] / l_ref[...]).astype(out_ref.dtype)

    return kernel


def _vmem_budget_bytes():
    """Per-generation VMEM budget: ~48 MiB on v7x (64 MiB parts), ~96 MiB on v5e/v6e."""
    try:
        cap = getattr(pltpu.get_tpu_info(), "vmem_capacity_bytes", 128 * 1024 * 1024)
    except Exception:
        cap = 128 * 1024 * 1024
    return min(96 * 1024 * 1024, (cap * 3) // 4)


def _pick_tile_rows(H2, WP, max_rows_per_tile):
    """Rows of conv output per grid step. Multi-tile TH must divide H2 and be a
    multiple of 16 so bf16 blocks stay (16, 128)-aligned."""
    if H2 * WP <= max_rows_per_tile:
        return H2                       # single tile: blocks cover full dims, no constraint
    cands = [t for t in range(16, H2, 16) if H2 % t == 0 and t * WP <= max_rows_per_tile]
    return max(cands) if cands else H2


def gca_forward(x, y, w3, w1, wc, *, max_rows_per_tile=None):
    """x: (B, C, H, W); y: (B, 2C, H/2, W/2); w3: (C//2, C, 3, 3); w1: (1, C//2, 1, 1);
    wc: (2C, 2C, 1, 1).  max_rows_per_tile (positions per grid step) controls VMEM;
    if None it is derived from the chip's VMEM capacity."""
    B, C, H, W = x.shape
    assert H % 2 == 0 and W % 2 == 0, "H, W must be even"
    C2, Ch = 2 * C, C // 2
    H2, W2 = H // 2, W // 2
    WP = W2 + 1
    C4 = 4 * C

    vmem_limit = _vmem_budget_bytes()
    if max_rows_per_tile is None:
        max_rows_per_tile = max(16 * WP, min(4096, vmem_limit // (64 * C)))

    # ---- space-to-depth of padded x (bf16-first; all prologue intermediates are 2-byte):
    #      d[b, i, j, (2rh+rw)*C + c] = xpad[b, 2i+rh, 2j+rw, c]
    x_nhwc = jnp.transpose(x, (0, 2, 3, 1)).astype(jnp.bfloat16)
    xp = jnp.pad(x_nhwc, ((0, 0), (1, 1), (1, 1), (0, 0)))               # (B, H+2, W+2, C)
    d = xp.reshape(B, H2 + 1, 2, W2 + 1, 2, C)
    d = d.transpose(0, 1, 3, 2, 4, 5).reshape(B, (H2 + 1) * WP, C4)      # flattened over (i, j)

    # ---- spatial row tiling for grid axis 1
    TH = _pick_tile_rows(H2, WP, max_rows_per_tile)
    NT = H2 // TH
    MP = TH * WP                    # working positions per tile (incl. padded columns)
    MBLK = MP + WP + 1              # d rows needed per tile (includes the +1 row/col halo)

    # halo-duplicated per-tile stack of d (duplication ~ 1/TH, already bf16)
    d = jnp.pad(d, ((0, 0), (0, WP + 1), (0, 0)))
    rows = jnp.arange(NT)[:, None] * MP + jnp.arange(MBLK)[None, :]      # (NT, MBLK)
    d_t = d[:, rows]                                                     # (B, NT, MBLK, 4C) bf16

    # ---- y, channels-last (bf16) and flattened with the same padded-column layout
    y_nhwc = jnp.transpose(y, (0, 2, 3, 1)).astype(jnp.bfloat16)         # (B, H2, W2, 2C)
    y_pad = jnp.pad(y_nhwc, ((0, 0), (0, 0), (0, 1), (0, 0)))
    y_pad = y_pad.reshape(B, H2 * WP, C2)

    # ---- fold the 3x3 weights into 4 space-to-depth tap matrices and STACK them along
    #      the output dim: w4s[:, q*Ch:(q+1)*Ch] is tap q (one fused MXU matmul in-kernel)
    w4 = jnp.zeros((4, C4, Ch), jnp.float32)
    for di in range(2):
        for dj in range(2):
            for rh in range(2):
                for rw in range(2):
                    kh, kw = 2 * di + rh, 2 * dj + rw
                    if kh <= 2 and kw <= 2:
                        q = 2 * rh + rw
                        w4 = w4.at[2 * di + dj, q * C:(q + 1) * C, :].set(w3[:, :, kh, kw].T)
    w4s = jnp.transpose(w4, (1, 0, 2)).reshape(C4, 4 * Ch).astype(jnp.bfloat16)

    w1_flat = w1.reshape(1, Ch).astype(jnp.float32)

    kernel = _make_gca_kernel(TH, W2, Ch)

    weighted = pl.pallas_call(
        kernel,
        out_shape=jax.ShapeDtypeStruct((B, 1, C2), jnp.float32),
        grid_spec=pltpu.PrefetchScalarGridSpec(
            num_scalar_prefetch=0,
            grid=(B, NT),
            in_specs=[
                pl.BlockSpec((None, None, MBLK, C4), lambda b, t: (b, t, 0, 0)),
                pl.BlockSpec((None, MP, C2), lambda b, t: (b, t, 0)),
                pl.BlockSpec((C4, 4 * Ch), lambda b, t: (0, 0)),
                pl.BlockSpec((1, Ch), lambda b, t: (0, 0)),
            ],
            out_specs=pl.BlockSpec((None, 1, C2), lambda b, t: (b, 0, 0)),
            scratch_shapes=[
                pltpu.VMEM((1, 1), jnp.float32),    # running max
                pltpu.VMEM((1, 1), jnp.float32),    # running softmax denominator
                pltpu.VMEM((1, C2), jnp.float32),   # attention-weighted accumulator
            ],
        ),
        compiler_params=pltpu.CompilerParams(
            dimension_semantics=("parallel", "arbitrary"),
            vmem_limit_bytes=int(vmem_limit),
        ),
    )(d_t, y_pad, w4s, w1_flat)

    # ---- channel branch: tiny (B, 2C) x (2C, 2C) matmul + ReLU, hoisted out of the kernel
    wc_flat = wc.reshape(C2, C2)
    z = jnp.maximum(weighted.reshape(B, C2) @ wc_flat.T, 0.0)
    return z.reshape(B, C2, 1, 1)


def gca_reference(x, y, w3, w1, wc):
    """Pure-JAX (f32) reference mirroring the PyTorch forward."""
    B, C, H, W = x.shape
    C2 = 2 * C
    h = lax.conv_general_dilated(x, w3, window_strides=(2, 2), padding=((1, 1), (1, 1)),
                                 dimension_numbers=('NCHW', 'OIHW', 'NCHW'))
    h = jnp.maximum(h, 0.0)
    s = lax.conv_general_dilated(h, w1, window_strides=(1, 1), padding='VALID',
                                 dimension_numbers=('NCHW', 'OIHW', 'NCHW'))   # (B, 1, H2, W2)
    att = jax.nn.softmax(s.reshape(B, -1), axis=-1)                            # (B, N)
    yflat = y.reshape(B, C2, -1)
    weighted = jnp.einsum('bn,bkn->bk', att, yflat)                            # (B, 2C)
    z = jnp.maximum(jnp.einsum('ok,bk->bo', wc.reshape(C2, C2), weighted), 0.0)
    return z.reshape(B, C2, 1, 1)


if __name__ == "__main__":
    key = jax.random.PRNGKey(0)
    B, C, H, W = 2, 4, 64, 64          # in_channels=4 -> out_channels=2*C=8
    C2, Ch = 2 * C, C // 2
    H2, W2 = H // 2, W // 2

    k1, k2, k3, k4, k5 = jax.random.split(key, 5)
    x = jax.random.normal(k1, (B, C, H, W), jnp.float32)
    y = jax.random.normal(k2, (B, C2, H2, W2), jnp.float32)

    w3 = jax.random.normal(k3, (Ch, C, 3, 3), jnp.float32) * 0.2     # spatial conv3x3 (s2, p1)
    w1 = jax.random.normal(k4, (1, Ch, 1, 1), jnp.float32) * 0.5     # spatial conv1x1 -> 1 channel
    wc = jax.random.normal(k5, (C2, C2, 1, 1), jnp.float32) * 0.3    # channel conv1x1

    # small max_rows_per_tile forces 2 spatial tiles -> exercises the online-softmax path
    fwd = jax.jit(functools.partial(gca_forward, max_rows_per_tile=600))
    out = fwd(x, y, w3, w1, wc)
    jax.block_until_ready(out)

    ref = gca_reference(x, y, w3, w1, wc)
    assert out.shape == (B, C2, 1, 1)
    max_err = float(jnp.max(jnp.abs(out - ref)))
    assert jnp.allclose(out, ref, atol=1e-2, rtol=5e-2), f"mismatch vs reference (max abs err {max_err})"
    print("KERNEL_OK")
</pallas_src>

<mosaic_0001>
module attributes {stable_mosaic.version = 11 : i64} {
  func.func @kernel(%arg0: i32, %arg1: i32, %arg2: memref<1x1x562x16xbf16, #tpu.memory_space<vmem>>, %arg3: memref<1x528x8xbf16, #tpu.memory_space<vmem>>, %arg4: memref<16x8xbf16, #tpu.memory_space<vmem>>, %arg5: memref<1x2xf32, #tpu.memory_space<vmem>>, %arg6: memref<1x1x8xf32, #tpu.memory_space<vmem>>, %arg7: memref<1x1xf32, #tpu.memory_space<vmem>>, %arg8: memref<1x1xf32, #tpu.memory_space<vmem>>, %arg9: memref<1x8xf32, #tpu.memory_space<vmem>>) attributes {dimension_semantics = [#tpu.dimension_semantics<parallel>, #tpu.dimension_semantics<arbitrary>], iteration_bounds = array<i64: 2, 2>, scalar_prefetch = 0 : i64, scratch_operands = 3 : i64, tpu.core_type = #tpu.core_type<tc>, window_params = [{transform_indices = @transform_0, window_bounds = array<i64: 1, 1, 562, 16>}, {transform_indices = @transform_1, window_bounds = array<i64: 1, 528, 8>}, {pipeline_mode = #tpu.pipeline_mode<synchronous>, transform_indices = @transform_2, window_bounds = array<i64: 16, 8>}, {pipeline_mode = #tpu.pipeline_mode<synchronous>, transform_indices = @transform_3, window_bounds = array<i64: 1, 2>}, {transform_indices = @transform_4, window_bounds = array<i64: 1, 1, 8>}]} {
    %c0_i32 = arith.constant 0 : i32
    %0 = arith.cmpi eq, %arg1, %c0_i32 : i32
    %1 = arith.extui %0 : i1 to i32
    %c0_i32_0 = arith.constant 0 : i32
    %2 = arith.cmpi ne, %1, %c0_i32_0 : i32
    scf.if %2 {
      %cst_35 = arith.constant -1.000000e+30 : f32
      %70 = vector.broadcast %cst_35 : f32 to vector<1x1xf32>
      %c0_36 = arith.constant 0 : index
      %c0_37 = arith.constant 0 : index
      %71 = vector.load %arg7[%c0_36, %c0_37] : memref<1x1xf32, #tpu.memory_space<vmem>>, vector<1x1xf32>
      tpu.vector_store %arg7[%c0_36, %c0_37], %70 {strides = array<i32>} : memref<1x1xf32, #tpu.memory_space<vmem>>, vector<1x1xf32>,
      %cst_38 = arith.constant 0.000000e+00 : f32
      %72 = vector.broadcast %cst_38 : f32 to vector<1x1xf32>
      %c0_39 = arith.constant 0 : index
      %c0_40 = arith.constant 0 : index
      %73 = vector.load %arg8[%c0_39, %c0_40] : memref<1x1xf32, #tpu.memory_space<vmem>>, vector<1x1xf32>
      tpu.vector_store %arg8[%c0_39, %c0_40], %72 {strides = array<i32>} : memref<1x1xf32, #tpu.memory_space<vmem>>, vector<1x1xf32>,
      %cst_41 = arith.constant 0.000000e+00 : f32
      %74 = vector.broadcast %cst_41 : f32 to vector<1x8xf32>
      %c0_42 = arith.constant 0 : index
      %c0_43 = arith.constant 0 : index
      %75 = vector.load %arg9[%c0_42, %c0_43] : memref<1x8xf32, #tpu.memory_space<vmem>>, vector<1x8xf32>
      tpu.vector_store %arg9[%c0_42, %c0_43], %74 {strides = array<i32>} : memref<1x8xf32, #tpu.memory_space<vmem>>, vector<1x8xf32>,
    } else {
    }
    %c0 = arith.constant 0 : index
    %c0_1 = arith.constant 0 : index
    %c0_2 = arith.constant 0 : index
    %c0_3 = arith.constant 0 : index
    %3 = vector.load %arg2[%c0, %c0_1, %c0_2, %c0_3] : memref<1x1x562x16xbf16, #tpu.memory_space<vmem>>, vector<1x1x562x16xbf16>
    %4 = vector.shape_cast %3 : vector<1x1x562x16xbf16> to vector<562x16xbf16>
    %c0_4 = arith.constant 0 : index
    %c0_5 = arith.constant 0 : index
    %5 = vector.load %arg4[%c0_4, %c0_5] : memref<16x8xbf16, #tpu.memory_space<vmem>>, vector<16x8xbf16>
    %cst = arith.constant dense<0.000000e+00> : vector<562x8xf32>
    %6 = tpu.matmul %4, %5, %cst {dimension_numbers = #tpu.dot_dimension_numbers<[1], [0], [0], [1], [0, 0, 1, 1], [], []>} : vector<562x16xbf16>, vector<16x8xbf16>, vector<562x8xf32> -> vector<562x8xf32>
    %7 = vector.extract_strided_slice %6 {offsets = [0, 0], sizes = [528, 2], strides = [1, 1]} : vector<562x8xf32> to vector<528x2xf32>
    %8 = vector.extract_strided_slice %6 {offsets = [1, 2], sizes = [528, 2], strides = [1, 1]} : vector<562x8xf32> to vector<528x2xf32>
    %9 = arith.addf %7, %8 : vector<528x2xf32>
    %10 = vector.extract_strided_slice %6 {offsets = [33, 4], sizes = [528, 2], strides = [1, 1]} : vector<562x8xf32> to vector<528x2xf32>
    %11 = arith.addf %9, %10 : vector<528x2xf32>
    %12 = vector.extract_strided_slice %6 {offsets = [34, 6], sizes = [528, 2], strides = [1, 1]} : vector<562x8xf32> to vector<528x2xf32>
    %13 = arith.addf %11, %12 : vector<528x2xf32>
    %cst_6 = arith.constant 0.000000e+00 : f32
    %14 = vector.broadcast %cst_6 : f32 to vector<528x2xf32>
    %15 = arith.maximumf %13, %14 : vector<528x2xf32>
    %c0_7 = arith.constant 0 : index
    %c0_8 = arith.constant 0 : index
    %16 = vector.load %arg5[%c0_7, %c0_8] : memref<1x2xf32, #tpu.memory_space<vmem>>, vector<1x2xf32>
    %17 = vector.broadcast %16 : vector<1x2xf32> to vector<528x2xf32>
    %18 = arith.mulf %15, %17 : vector<528x2xf32>
    %cst_9 = arith.constant dense<0.000000e+00> : vector<528xf32>
    %19 = vector.multi_reduction <add>, %18, %cst_9 [1] : vector<528x2xf32> to vector<528xf32>
    %20 = vector.shape_cast %19 : vector<528xf32> to vector<528x1xf32>
    %21 = tpu.iota {dimensions = array<i32: 0>} : vector<528x1xi32>
    %c33_i32 = arith.constant 33 : i32
    %c0_i32_10 = arith.constant 0 : i32
    %22 = arith.cmpi eq, %c33_i32, %c0_i32_10 : i32
    %c1_i32 = arith.constant 1 : i32
    %23 = arith.select %22, %c1_i32, %c33_i32 : i32
    %24 = vector.broadcast %23 : i32 to vector<528x1xi32>
    %25 = arith.remsi %21, %24 : vector<528x1xi32>
    %c0_i32_11 = arith.constant 0 : i32
    %26 = vector.broadcast %c0_i32_11 : i32 to vector<528x1xi32>
    %27 = arith.cmpi ne, %25, %26 : vector<528x1xi32>
    %c0_i32_12 = arith.constant 0 : i32
    %28 = vector.broadcast %c0_i32_12 : i32 to vector<528x1xi32>
    %29 = arith.cmpi slt, %25, %28 : vector<528x1xi32>
    %c0_i32_13 = arith.constant 0 : i32
    %30 = arith.cmpi slt, %23, %c0_i32_13 : i32
    %31 = vector.broadcast %30 : i1 to vector<528x1xi1>
    %32 = vector.broadcast %31 : vector<528x1xi1> to vector<528x1xi1>
    %33 = arith.xori %29, %32 : vector<528x1xi1>
    %34 = arith.andi %33, %27 : vector<528x1xi1>
    %35 = vector.broadcast %23 : i32 to vector<528x1xi32>
    %36 = arith.addi %25, %35 : vector<528x1xi32>
    %37 = arith.select %34, %36, %25 : vector<528x1xi1>, vector<528x1xi32>
    %c32_i32 = arith.constant 32 : i32
    %38 = vector.broadcast %c32_i32 : i32 to vector<528x1xi32>
    %39 = arith.cmpi eq, %37, %38 : vector<528x1xi32>
    %cst_14 = arith.constant -1.000000e+30 : f32
    %40 = vector.broadcast %cst_14 : f32 to vector<528x1xf32>
    %41 = arith.select %39, %40, %20 : vector<528x1xi1>, vector<528x1xf32>
    %c0_15 = arith.constant 0 : index
    %c0_16 = arith.constant 0 : index
    %42 = vector.load %arg7[%c0_15, %c0_16] : memref<1x1xf32, #tpu.memory_space<vmem>>, vector<1x1xf32>
    %cst_17 = arith.constant dense<0xFF800000> : vector<1xf32>
    %43 = vector.multi_reduction <maximumf>, %41, %cst_17 [0] : vector<528x1xf32> to vector<1xf32>
    %44 = vector.shape_cast %43 : vector<1xf32> to vector<1x1xf32>
    %45 = arith.maximumf %42, %44 : vector<1x1xf32>
    %46 = arith.subf %42, %45 : vector<1x1xf32>
    %47 = math.exp %46 : vector<1x1xf32>
    %48 = vector.broadcast %45 : vector<1x1xf32> to vector<528x1xf32>
    %49 = arith.subf %41, %48 : vector<528x1xf32>
    %50 = math.exp %49 : vector<528x1xf32>
    %c0_18 = arith.constant 0 : index
    %c0_19 = arith.constant 0 : index
    %51 = vector.load %arg8[%c0_18, %c0_19] : memref<1x1xf32, #tpu.memory_space<vmem>>, vector<1x1xf32>
    %52 = arith.mulf %47, %51 : vector<1x1xf32>
    %cst_20 = arith.constant dense<0.000000e+00> : vector<1xf32>
    %53 = vector.multi_reduction <add>, %50, %cst_20 [0] : vector<528x1xf32> to vector<1xf32>
    %54 = vector.shape_cast %53 : vector<1xf32> to vector<1x1xf32>
    %55 = arith.addf %52, %54 : vector<1x1xf32>
    %c0_21 = arith.constant 0 : index
    %c0_22 = arith.constant 0 : index
    %56 = vector.load %arg8[%c0_21, %c0_22] : memref<1x1xf32, #tpu.memory_space<vmem>>, vector<1x1xf32>
    tpu.vector_store %arg8[%c0_21, %c0_22], %55 {strides = array<i32>} : memref<1x1xf32, #tpu.memory_space<vmem>>, vector<1x1xf32>,
    %c0_23 = arith.constant 0 : index
    %c0_24 = arith.constant 0 : index
    %57 = vector.load %arg7[%c0_23, %c0_24] : memref<1x1xf32, #tpu.memory_space<vmem>>, vector<1x1xf32>
    tpu.vector_store %arg7[%c0_23, %c0_24], %45 {strides = array<i32>} : memref<1x1xf32, #tpu.memory_space<vmem>>, vector<1x1xf32>,
    %58 = arith.truncf %50 : vector<528x1xf32> to vector<528x1xbf16>
    %c0_25 = arith.constant 0 : index
    %c0_26 = arith.constant 0 : index
    %c0_27 = arith.constant 0 : index
    %59 = vector.load %arg3[%c0_25, %c0_26, %c0_27] : memref<1x528x8xbf16, #tpu.memory_space<vmem>>, vector<1x528x8xbf16>
    %60 = vector.shape_cast %59 : vector<1x528x8xbf16> to vector<528x8xbf16>
    %cst_28 = arith.constant dense<0.000000e+00> : vector<1x8xf32>
    %61 = tpu.matmul %58, %60, %cst_28 {dimension_numbers = #tpu.dot_dimension_numbers<[0], [0], [1], [1], [0, 1, 1, 1], [], []>} : vector<528x1xbf16>, vector<528x8xbf16>, vector<1x8xf32> -> vector<1x8xf32>
    %c0_29 = arith.constant 0 : index
    %c0_30 = arith.constant 0 : index
    %62 = vector.load %arg9[%c0_29, %c0_30] : memref<1x8xf32, #tpu.memory_space<vmem>>, vector<1x8xf32>
    %63 = vector.broadcast %47 : vector<1x1xf32> to vector<1x8xf32>
    %64 = arith.mulf %63, %62 : vector<1x8xf32>
    %65 = arith.addf %64, %61 : vector<1x8xf32>
    %c0_31 = arith.constant 0 : index
    %c0_32 = arith.constant 0 : index
    %66 = vector.load %arg9[%c0_31, %c0_32] : memref<1x8xf32, #tpu.memory_space<vmem>>, vector<1x8xf32>
    tpu.vector_store %arg9[%c0_31, %c0_32], %65 {strides = array<i32>} : memref<1x8xf32, #tpu.memory_space<vmem>>, vector<1x8xf32>,
    %c1_i32_33 = arith.constant 1 : i32
    %67 = arith.cmpi eq, %arg1, %c1_i32_33 : i32
    %68 = arith.extui %67 : i1 to i32
    %c0_i32_34 = arith.constant 0 : i32
    %69 = arith.cmpi ne, %68, %c0_i32_34 : i32
    scf.if %69 {
      %c0_35 = arith.constant 0 : index
      %c0_36 = arith.constant 0 : index
      %70 = vector.load %arg9[%c0_35, %c0_36] : memref<1x8xf32, #tpu.memory_space<vmem>>, vector<1x8xf32>
      %c0_37 = arith.constant 0 : index
      %c0_38 = arith.constant 0 : index
      %71 = vector.load %arg8[%c0_37, %c0_38] : memref<1x1xf32, #tpu.memory_space<vmem>>, vector<1x1xf32>
      %72 = vector.broadcast %71 : vector<1x1xf32> to vector<1x8xf32>
      %73 = arith.divf %70, %72 : vector<1x8xf32>
      %c0_39 = arith.constant 0 : index
      %c0_40 = arith.constant 0 : index
      %c0_41 = arith.constant 0 : index
      %74 = vector.load %arg6[%c0_39, %c0_40, %c0_41] : memref<1x1x8xf32, #tpu.memory_space<vmem>>, vector<1x1x8xf32>
      %75 = vector.shape_cast %74 : vector<1x1x8xf32> to vector<1x8xf32>
      %76 = vector.shape_cast %73 : vector<1x8xf32> to vector<1x1x8xf32>
      tpu.vector_store %arg6[%c0_39, %c0_40, %c0_41], %76 {strides = array<i32>} : memref<1x1x8xf32, #tpu.memory_space<vmem>>, vector<1x1x8xf32>,
    } else {
    }
    return
  }
  func.func @transform_0(%arg0: i32, %arg1: i32) -> (i32, i32, i32, i32) {
    %c0_i32 = arith.constant 0 : i32
    %c0_i32_0 = arith.constant 0 : i32
    %c0_i32_1 = arith.constant 0 : i32
    return %arg0, %arg1, %c0_i32, %c0_i32_0 : i32, i32, i32, i32
  }
  func.func @transform_1(%arg0: i32, %arg1: i32) -> (i32, i32, i32) {
    %c0_i32 = arith.constant 0 : i32
    %c0_i32_0 = arith.constant 0 : i32
    return %arg0, %arg1, %c0_i32 : i32, i32, i32
  }
  func.func @transform_2(%arg0: i32, %arg1: i32) -> (i32, i32) {
    %c0_i32 = arith.constant 0 : i32
    %c0_i32_0 = arith.constant 0 : i32
    %c0_i32_1 = arith.constant 0 : i32
    return %c0_i32, %c0_i32_0 : i32, i32
  }
  func.func @transform_3(%arg0: i32, %arg1: i32) -> (i32, i32) {
    %c0_i32 = arith.constant 0 : i32
    %c0_i32_0 = arith.constant 0 : i32
    %c0_i32_1 = arith.constant 0 : i32
    return %c0_i32, %c0_i32_0 : i32, i32
  }
  func.func @transform_4(%arg0: i32, %arg1: i32) -> (i32, i32, i32) {
    %c0_i32 = arith.constant 0 : i32
    %c0_i32_0 = arith.constant 0 : i32
    %c0_i32_1 = arith.constant 0 : i32
    return %arg0, %c0_i32, %c0_i32_0 : i32, i32, i32
  }
}

</mosaic_0001>

<llo_original>
// kernel: gca_forward.1
$region0: #{gca_forward.1}
  #allocation0 [shape = 'u32[]', space=smem, size = 0x4, offset = 0x4, fixed_abs, tag = 'smem constant byte address 0x4 - core index']
  #allocation1 [shape = 'u32[144,128]{1,0:T(1,128)}', space=vmem, size = 0x12000, scoped, tag = 'internal scratch']
  #allocation2 [shape = 'f32[1,1]{1,0:T(1,128)}', space=vmem, size = 0x200, scoped, tag = 'scratch operand']
  #allocation3 [shape = 'f32[1,1]{1,0:T(1,128)}', space=vmem, size = 0x200, scoped, tag = 'scratch operand']
  #allocation4 [shape = 'f32[1,8]{1,0:T(1,128)}', space=vmem, size = 0x200, scoped, tag = 'scratch operand']
  %s0 = inlined_call_operand.vmem [shape: bf16[2,2,562,16], index: 0, kind: input, shape index: {}]
  %s1 = inlined_call_operand.vmem [shape: bf16[2,1056,8], index: 1, kind: input, shape index: {}]
  %s2 = inlined_call_operand.vmem [shape: bf16[16,8], index: 2, kind: input, shape index: {}]
  %s3 = inlined_call_operand.vmem [shape: f32[1,2], index: 3, kind: input, shape index: {}]
  %s4 = inlined_call_operand.vmem [shape: f32[2,1,8], index: 4, kind: output, shape index: {}]
  %s5 = sld [smem:[#allocation0]]
  $region57: #{gca_forward.1} parent=0
    _
  %s7 = ssub.s32 1, %s5
  %s8 = scalar_select 0, %s7, %s5
  loop: start=0, step=1, limit=6
  $region2: #{gca_forward.1} parent=0 // loop_pre_header
    _
  $region3: #{gca_forward.1} parent=0 // loop_header
    %s10 = sphi 0, %s14
    %p11 = scmp.ge.s32.totalorder %s10, 6
    %s17 = sphi 0, %s29
    %s18 = sphi 0, %s25
    %s19 = sphi 0, %s17
    %s20 = sphi 0, %s18
    %s21 = sphi 0, %s19
    %s22 = sphi 0, %s20
    %s34 = sphi 0, %s36
    %s37 = sphi 0, %s34
    %s38 = sphi 0, %s37
    %s54 = sphi 0, %s38
    %s62 = sphi 0, %s64
    %s65 = sphi 0, %s62
    %s66 = sphi 0, %s65
    %s82 = sphi 0, %s66
    %s86 = sphi 0, %s86
    %s88 = sphi 0, %s86
    %s89 = sphi 0, %s88
    %s103 = sphi 0, %s89
    %s107 = sphi 0, %s107
    %s109 = sphi 0, %s107
    %s110 = sphi 0, %s109
    %s124 = sphi 0, %s110
    %s130 = sphi 0, %s132
    %s133 = sphi 0, %s130
    %s134 = sphi 0, %s133
    %s150 = sphi 0, %s134
  $region4: #{gca_forward.1} parent=0 // loop_header_branch
    %13 = sbr.rel (%p11) target = $region8
  $region5: #{gca_forward.1} parent=0 // loop_body
    %s15 = ssub.s32 %s10, 1
    %s16 = ssub.s32 %s10, 2
    %s23 = sadd.s32 1, %s18
    %p24 = scmp.ge.s32.totalorder %s23, 2
    %s25 = scalar_select %p24, 0, %s23
    %s26 = sadd.s32 1, %s17
    %s27 = scalar_select %p24, %s26, %s17
    %p28 = scmp.ge.s32.totalorder %s27, 2
    %s29 = scalar_select %p28, 0, %s27
    %s30 = ssub.s32 %s17, %s29
    %s31 = ssub.s32 %s18, %s25
    %s32 = sor.u32 %s30, %s31
    %p33 = scmp.eq.s32.totalorder %s32, 0
    %s35 = sadd.s32 %s34, 1
    %s36 = scalar_select %p33, %s34, %s35
    %p39 = pneg %p33
    %p40 = scmp.eq.s32.totalorder %s10, 3
    %p41 = por %p39, %p40
    %p42 = scmp.ne.s32.totalorder %s34, %s37
    %p43 = scmp.eq.s32.totalorder %s10, 0
    %p44 = por %p42, %p43
    %p45 = scmp.ne.s32.totalorder %s34, %s37
    %p46 = scmp.eq.s32.totalorder %s15, 3
    %p47 = por %p45, %p46
    %p48 = scmp.ne.s32.totalorder %s37, %s38
    %p49 = scmp.eq.s32.totalorder %s15, 0
    %p50 = por %p48, %p49
    %p51 = scmp.ne.s32.totalorder %s37, %s38
    %p52 = scmp.eq.s32.totalorder %s16, 3
    %p53 = por %p51, %p52
    %p55 = scmp.ne.s32.totalorder %s38, %s54
    %p56 = scmp.eq.s32.totalorder %s16, 0
    %p57 = por %p55, %p56
    %s58 = ssub.s32 %s17, %s29
    %s59 = ssub.s32 %s18, %s25
    %s60 = sor.u32 %s58, %s59
    %p61 = scmp.eq.s32.totalorder %s60, 0
    %s63 = sadd.s32 %s62, 1
    %s64 = scalar_select %p61, %s62, %s63
    %p67 = pneg %p61
    %p68 = scmp.eq.s32.totalorder %s10, 3
    %p69 = por %p67, %p68
    %p70 = scmp.ne.s32.totalorder %s62, %s65
    %p71 = scmp.eq.s32.totalorder %s10, 0
    %p72 = por %p70, %p71
    %p73 = scmp.ne.s32.totalorder %s62, %s65
    %p74 = scmp.eq.s32.totalorder %s15, 3
    %p75 = por %p73, %p74
    %p76 = scmp.ne.s32.totalorder %s65, %s66
    %p77 = scmp.eq.s32.totalorder %s15, 0
    %p78 = por %p76, %p77
    %p79 = scmp.ne.s32.totalorder %s65, %s66
    %p80 = scmp.eq.s32.totalorder %s16, 3
    %p81 = por %p79, %p80
    %p83 = scmp.ne.s32.totalorder %s66, %s82
    %p84 = scmp.eq.s32.totalorder %s16, 0
    %p85 = por %p83, %p84
    %s87 = sadd.s32 %s86, 1
    %p90 = scmp.eq.s32.totalorder %s10, 3
    %p91 = scmp.ne.s32.totalorder %s86, %s88
    %p92 = scmp.eq.s32.totalorder %s10, 0
    %p93 = por %p91, %p92
    %p94 = scmp.ne.s32.totalorder %s86, %s88
    %p95 = scmp.eq.s32.totalorder %s15, 3
    %p96 = por %p94, %p95
    %p97 = scmp.ne.s32.totalorder %s88, %s89
    %p98 = scmp.eq.s32.totalorder %s15, 0
    %p99 = por %p97, %p98
    %p100 = scmp.ne.s32.totalorder %s88, %s89
    %p101 = scmp.eq.s32.totalorder %s16, 3
    %p102 = por %p100, %p101
    %p104 = scmp.ne.s32.totalorder %s89, %s103
    %p105 = scmp.eq.s32.totalorder %s16, 0
    %p106 = por %p104, %p105
    %s108 = sadd.s32 %s107, 1
    %p111 = scmp.eq.s32.totalorder %s10, 3
    %p112 = scmp.ne.s32.totalorder %s107, %s109
    %p113 = scmp.eq.s32.totalorder %s10, 0
    %p114 = por %p112, %p113
    %p115 = scmp.ne.s32.totalorder %s107, %s109
    %p116 = scmp.eq.s32.totalorder %s15, 3
    %p117 = por %p115, %p116
    %p118 = scmp.ne.s32.totalorder %s109, %s110
    %p119 = scmp.eq.s32.totalorder %s15, 0
    %p120 = por %p118, %p119
    %p121 = scmp.ne.s32.totalorder %s109, %s110
    %p122 = scmp.eq.s32.totalorder %s16, 3
    %p123 = por %p121, %p122
    %p125 = scmp.ne.s32.totalorder %s110, %s124
    %p126 = scmp.eq.s32.totalorder %s16, 0
    %p127 = por %p125, %p126
    %s128 = ssub.s32 %s17, %s29
    %p129 = scmp.eq.s32.totalorder %s128, 0
    %s131 = sadd.s32 %s130, 1
    %s132 = scalar_select %p129, %s130, %s131
    %p135 = pneg %p129
    %p136 = scmp.eq.s32.totalorder %s10, 3
    %p137 = por %p135, %p136
    %p138 = scmp.ne.s32.totalorder %s130, %s133
    %p139 = scmp.eq.s32.totalorder %s10, 0
    %p140 = por %p138, %p139
    %p141 = scmp.ne.s32.totalorder %s130, %s133
    %p142 = scmp.eq.s32.totalorder %s15, 3
    %p143 = por %p141, %p142
    %p144 = scmp.ne.s32.totalorder %s133, %s134
    %p145 = scmp.eq.s32.totalorder %s15, 0
    %p146 = por %p144, %p145
    %p147 = scmp.ne.s32.totalorder %s133, %s134
    %p148 = scmp.eq.s32.totalorder %s16, 3
    %p149 = por %p147, %p148
    %p151 = scmp.ne.s32.totalorder %s134, %s150
    %p152 = scmp.eq.s32.totalorder %s16, 0
    %p153 = por %p151, %p152
    %p154 = scmp.le.s32.totalorder 1, %s10
    %p155 = scmp.lt.s32.totalorder %s10, 5
    %p156 = pnand %p154, %p155
    %p157 = pneg %p156
    // Predicated region
    $region9: #{gca_forward.1} parent=5 // pred_check
      _
    $region10: #{gca_forward.1} parent=5 // pred_check_branch
      %159 = sbr.rel (%p156) target = $region12
    $region11: #{gca_forward.1} parent=5 // pred_region
      %s160 = ssub.s32 %s10, 1
      // Predicated region
      $region13: #{gca_forward.1} parent=11 // pred_check
        %p161 = pneg %p99
      $region14: #{gca_forward.1} parent=11 // pred_check_branch
        %163 = sbr.rel (%p161) target = $region16
      $region15: #{gca_forward.1} parent=11 // pred_region
        _
      $region16: #{gca_forward.1} parent=11 // pred_fallthru
        _
      // Predicated region
      $region17: #{gca_forward.1} parent=11 // pred_check
        %p164 = pneg %p120
      $region18: #{gca_forward.1} parent=11 // pred_check_branch
        %166 = sbr.rel (%p164) target = $region20
      $region19: #{gca_forward.1} parent=11 // pred_region
        _
      $region20: #{gca_forward.1} parent=11 // pred_fallthru
        _
    $region12: #{gca_forward.1} parent=5 // pred_fallthru
      _
    %p167 = scmp.lt.s32.totalorder %s10, 4
    // Predicated region
    $region21: #{gca_forward.1} parent=5 // pred_check
      %p168 = pneg %p167
    $region22: #{gca_forward.1} parent=5 // pred_check_branch
      %170 = sbr.rel (%p168) target = $region24
    $region23: #{gca_forward.1} parent=5 // pred_region
      // Predicated region
      $region25: #{gca_forward.1} parent=23 // pred_check
        %p171 = pneg %p44
      $region26: #{gca_forward.1} parent=23 // pred_check_branch
        %173 = sbr.rel (%p171) target = $region28
      $region27: #{gca_forward.1} parent=23 // pred_region
        %p174 = scmp.lt.s32.totalorder %s17, 1
        %s175 = scalar_select %p174, %s17, 1
        %p176 = scmp.lt.s32.totalorder %s18, 1
        %s177 = scalar_select %p176, %s18, 1
        %s178 = smul.addr %s177, 71
        %s179 = smul.addr %s175, 142
        %s180 = sadd.s32 %s178, %s179
        %s181 = smul.addr %s180, 4
        %s182 = scalar_lea.vmem %s0, %s181
      $region28: #{gca_forward.1} parent=23 // pred_fallthru
        _
      // Predicated region
      $region29: #{gca_forward.1} parent=23 // pred_check
        %p183 = pneg %p72
      $region30: #{gca_forward.1} parent=23 // pred_check_branch
        %185 = sbr.rel (%p183) target = $region32
      $region31: #{gca_forward.1} parent=23 // pred_region
        %s186 = smul.u32 66, %s18
        %p187 = scmp.lt.s32.totalorder %s17, 1
        %s188 = scalar_select %p187, %s17, 1
        %p189 = scmp.lt.s32.totalorder %s186, 131
        %s190 = scalar_select %p189, %s186, 131
        %s191 = smul.addr %s188, 132
        %s192 = sadd.s32 %s190, %s191
        %s193 = smul.addr %s192, 4
        %s194 = scalar_lea.vmem %s1, %s193
        %s195 = smul.u32 66, %s18
      $region32: #{gca_forward.1} parent=23 // pred_fallthru
        _
    $region24: #{gca_forward.1} parent=5 // pred_fallthru
      _
    %p196 = scmp.le.s32.totalorder 1, %s10
    %p197 = scmp.lt.s32.totalorder %s10, 5
    %p198 = pnand %p196, %p197
    %p199 = pneg %p198
    // Predicated region
    $region33: #{gca_forward.1} parent=5 // pred_check
      _
    $region34: #{gca_forward.1} parent=5 // pred_check_branch
      %201 = sbr.rel (%p198) target = $region36
    $region35: #{gca_forward.1} parent=5 // pred_region
      %s202 = ssub.s32 %s10, 1
      %p203 = scmp.lt.s32.totalorder %s19, 1
      %s204 = scalar_select %p203, %s19, 1
      %p205 = scmp.lt.s32.totalorder %s20, 1
      %s206 = scalar_select %p205, %s20, 1
      %s207 = smul.addr %s206, 71
      %s208 = smul.addr %s204, 142
      %s209 = sadd.s32 %s207, %s208
      %s210 = smul.addr %s209, 4
      %s211 = scalar_lea.vmem %s0, %s210
      %p212 = pneg %p50
      %p213 = pneg %p47
      %s214 = smul.u32 66, %s20
      %p215 = scmp.lt.s32.totalorder %s19, 1
      %s216 = scalar_select %p215, %s19, 1
      %p217 = scmp.lt.s32.totalorder %s214, 131
      %s218 = scalar_select %p217, %s214, 131
      %s219 = smul.addr %s216, 132
      %s220 = sadd.s32 %s218, %s219
      %s221 = smul.addr %s220, 4
      %s222 = scalar_lea.vmem %s1, %s221
      %p223 = pneg %p78
      %p224 = pneg %p75
      %p225 = pneg %p99
      %p226 = pneg %p96
      %p227 = pneg %p120
      %p228 = pneg %p117
      %p229 = pneg %p146
      %p230 = pneg %p143
      %p231 = scmp.lt.s32.totalorder %s19, 1
      %s232 = scalar_select %p231, %s19, 1
      %s233 = scalar_lea.vmem %s4, %s232
      %p234 = scmp.lt.s32.totalorder %s19, 1
      %s235 = scalar_select %p234, %s19, 1
      %p236 = scmp.lt.s32.totalorder %s20, 1
      %s237 = scalar_select %p236, %s20, 1
      %s238 = smul.addr %s237, 71
      %s239 = smul.addr %s235, 142
      %s240 = sadd.s32 %s238, %s239
      %s241 = smul.addr %s240, 4
      %s242 = scalar_lea.vmem %s0, %s241
      %s243 = smul.u32 66, %s20
      %p244 = scmp.lt.s32.totalorder %s19, 1
      %s245 = scalar_select %p244, %s19, 1
      %p246 = scmp.lt.s32.totalorder %s243, 131
      %s247 = scalar_select %p246, %s243, 131
      %s248 = smul.addr %s245, 132
      %s249 = sadd.s32 %s247, %s248
      %s250 = smul.addr %s249, 4
      %s251 = scalar_lea.vmem %s1, %s250
      %s252 = smul.u32 66, %s20
      %p253 = scmp.lt.s32.totalorder %s19, 1
      %s254 = scalar_select %p253, %s19, 1
      %s255 = scalar_lea.vmem %s4, %s254
      %p257 = scmp.eq.s32.totalorder %s20, 0
      // Predicated region
      $region37: #{gca_forward.1} parent=35 // pred_check
        %p258 = pneg %p257
      $region38: #{gca_forward.1} parent=35 // pred_check_branch
        %260 = sbr.rel (%p258) target = $region40
      $region39: #{gca_forward.1} parent=35 // pred_region
        %vm261 = vcmask 0
        %262 = vst.msk [vmem:[#allocation2] sm:$0x1] %vm261, -1e+30
        %263 = vst.msk [vmem:[#allocation3] sm:$0x1] %vm261, 0.0
        %vm264 = vcmask 57344
        %265 = vst.msk [vmem:[#allocation4] sm:$0x1] %vm264, 0.0
      $region40: #{gca_forward.1} parent=35 // pred_fallthru
        _
      %v266 = vld [vmem:[%s242] sm:$0xf]
      %v267 = vld [vmem:[%s242 + $0x4] sm:$0xf]
      %v268 = vld [vmem:[%s242 + $0x8] sm:$0xf]
      %v269 = vld [vmem:[%s242 + $0xc] sm:$0xf]
      %v270 = vld [vmem:[%s242 + $0x10] sm:$0xf]
      %v271 = vld [vmem:[%s242 + $0x14] sm:$0xf]
      %v272 = vld [vmem:[%s242 + $0x18] sm:$0xf]
      %v273 = vld [vmem:[%s242 + $0x1c] sm:$0xf]
      %v274 = vld [vmem:[%s242 + $0x20] sm:$0xf]
      %v275 = vld [vmem:[%s242 + $0x24] sm:$0xf]
      %v276 = vld [vmem:[%s242 + $0x28] sm:$0xf]
      %v277 = vld [vmem:[%s242 + $0x2c] sm:$0xf]
      %v278 = vld [vmem:[%s242 + $0x30] sm:$0xf]
      %v279 = vld [vmem:[%s242 + $0x34] sm:$0xf]
      %v280 = vld [vmem:[%s242 + $0x38] sm:$0xf]
      %v281 = vld [vmem:[%s242 + $0x3c] sm:$0xf]
      %v282 = vld [vmem:[%s242 + $0x40] sm:$0xf]
      %v283 = vld [vmem:[%s242 + $0x44] sm:$0xf]
      %v284 = vld [vmem:[%s242 + $0x48] sm:$0xf]
      %v285 = vld [vmem:[%s242 + $0x4c] sm:$0xf]
      %v286 = vld [vmem:[%s242 + $0x50] sm:$0xf]
      %v287 = vld [vmem:[%s242 + $0x54] sm:$0xf]
      %v288 = vld [vmem:[%s242 + $0x58] sm:$0xf]
      %v289 = vld [vmem:[%s242 + $0x5c] sm:$0xf]
      %v290 = vld [vmem:[%s242 + $0x60] sm:$0xf]
      %v291 = vld [vmem:[%s242 + $0x64] sm:$0xf]
      %v292 = vld [vmem:[%s242 + $0x68] sm:$0xf]
      %v293 = vld [vmem:[%s242 + $0x6c] sm:$0xf]
      %v294 = vld [vmem:[%s242 + $0x70] sm:$0xf]
      %v295 = vld [vmem:[%s242 + $0x74] sm:$0xf]
      %v296 = vld [vmem:[%s242 + $0x78] sm:$0xf]
      %v297 = vld [vmem:[%s242 + $0x7c] sm:$0xf]
      %v298 = vld [vmem:[%s242 + $0x80] sm:$0xf]
      %v299 = vld [vmem:[%s242 + $0x84] sm:$0xf]
      %v300 = vld [vmem:[%s242 + $0x88] sm:$0xf]
      %v301 = vld [vmem:[%s242 + $0x8c] sm:$0xf]
      %v302 = vld [vmem:[%s242 + $0x90] sm:$0xf]
      %v303 = vld [vmem:[%s242 + $0x94] sm:$0xf]
      %v304 = vld [vmem:[%s242 + $0x98] sm:$0xf]
      %v305 = vld [vmem:[%s242 + $0x9c] sm:$0xf]
      %v306 = vld [vmem:[%s242 + $0xa0] sm:$0xf]
      %v307 = vld [vmem:[%s242 + $0xa4] sm:$0xf]
      %v308 = vld [vmem:[%s242 + $0xa8] sm:$0xf]
      %v309 = vld [vmem:[%s242 + $0xac] sm:$0xf]
      %v310 = vld [vmem:[%s242 + $0xb0] sm:$0xf]
      %v311 = vld [vmem:[%s242 + $0xb4] sm:$0xf]
      %v312 = vld [vmem:[%s242 + $0xb8] sm:$0xf]
      %v313 = vld [vmem:[%s242 + $0xbc] sm:$0xf]
      %v314 = vld [vmem:[%s242 + $0xc0] sm:$0xf]
      %v315 = vld [vmem:[%s242 + $0xc4] sm:$0xf]
      %v316 = vld [vmem:[%s242 + $0xc8] sm:$0xf]
      %v317 = vld [vmem:[%s242 + $0xcc] sm:$0xf]
      %v318 = vld [vmem:[%s242 + $0xd0] sm:$0xf]
      %v319 = vld [vmem:[%s242 + $0xd4] sm:$0xf]
      %v320 = vld [vmem:[%s242 + $0xd8] sm:$0xf]
      %v321 = vld [vmem:[%s242 + $0xdc] sm:$0xf]
      %v322 = vld [vmem:[%s242 + $0xe0] sm:$0xf]
      %v323 = vld [vmem:[%s242 + $0xe4] sm:$0xf]
      %v324 = vld [vmem:[%s242 + $0xe8] sm:$0xf]
      %v325 = vld [vmem:[%s242 + $0xec] sm:$0xf]
      %v326 = vld [vmem:[%s242 + $0xf0] sm:$0xf]
      %v327 = vld [vmem:[%s242 + $0xf4] sm:$0xf]
      %v328 = vld [vmem:[%s242 + $0xf8] sm:$0xf]
      %v329 = vld [vmem:[%s242 + $0xfc] sm:$0xf]
      %v330 = vld [vmem:[%s242 + $0x100] sm:$0xf]
      %v331 = vld [vmem:[%s242 + $0x104] sm:$0xf]
      %v332 = vld [vmem:[%s242 + $0x108] sm:$0xf]
      %v333 = vld [vmem:[%s242 + $0x10c] sm:$0xf]
      %v334 = vld [vmem:[%s242 + $0x110] sm:$0xf]
      %v335 = vld [vmem:[%s242 + $0x114] sm:$0xf]
      %v336 = vld [vmem:[%s242 + $0x118] sm:$0x1]
      %v337 = vld [vmem:[%s2] sm:$0xf]
      %v338 = vld [vmem:[%s2 + $0x4] sm:$0xf]
      %v410 = vunpack.c.l.b16 %v266
      %v411 = vunpack.c.l.b16 %v267
      %v412 = vunpack.c.l.b16 %v268
      %v413 = vunpack.c.l.b16 %v269
      %v414 = vunpack.c.l.b16 %v270
      %v415 = vunpack.c.l.b16 %v271
      %v416 = vunpack.c.l.b16 %v272
      %v417 = vunpack.c.l.b16 %v273
      %v418 = vunpack.c.l.b16 %v274
      %v419 = vunpack.c.l.b16 %v275
      %v420 = vunpack.c.l.b16 %v276
      %v421 = vunpack.c.l.b16 %v277
      %v422 = vunpack.c.l.b16 %v278
      %v423 = vunpack.c.l.b16 %v279
      %v424 = vunpack.c.l.b16 %v280
      %v425 = vunpack.c.l.b16 %v281
      %v426 = vunpack.c.l.b16 %v282
      %v427 = vunpack.c.l.b16 %v283
      %v428 = vunpack.c.l.b16 %v284
      %v429 = vunpack.c.l.b16 %v285
      %v430 = vunpack.c.l.b16 %v286
      %v431 = vunpack.c.l.b16 %v287
      %v432 = vunpack.c.l.b16 %v288
      %v433 = vunpack.c.l.b16 %v289
      %v434 = vunpack.c.l.b16 %v290
      %v435 = vunpack.c.l.b16 %v291
      %v436 = vunpack.c.l.b16 %v292
      %v437 = vunpack.c.l.b16 %v293
      %v438 = vunpack.c.l.b16 %v294
      %v439 = vunpack.c.l.b16 %v295
      %v440 = vunpack.c.l.b16 %v296
      %v441 = vunpack.c.l.b16 %v297
      %v442 = vunpack.c.l.b16 %v298
      %v443 = vunpack.c.l.b16 %v299
      %v444 = vunpack.c.l.b16 %v300
      %v445 = vunpack.c.l.b16 %v301
      %v446 = vunpack.c.l.b16 %v302
      %v447 = vunpack.c.l.b16 %v303
      %v448 = vunpack.c.l.b16 %v304
      %v449 = vunpack.c.l.b16 %v305
      %v450 = vunpack.c.l.b16 %v306
      %v451 = vunpack.c.l.b16 %v307
      %v452 = vunpack.c.l.b16 %v308
      %v453 = vunpack.c.l.b16 %v309
      %v454 = vunpack.c.l.b16 %v310
      %v455 = vunpack.c.l.b16 %v311
      %v456 = vunpack.c.l.b16 %v312
      %v457 = vunpack.c.l.b16 %v313
      %v458 = vunpack.c.l.b16 %v314
      %v459 = vunpack.c.l.b16 %v315
      %v460 = vunpack.c.l.b16 %v316
      %v461 = vunpack.c.l.b16 %v317
      %v462 = vunpack.c.l.b16 %v318
      %v463 = vunpack.c.l.b16 %v319
      %v464 = vunpack.c.l.b16 %v320
      %v465 = vunpack.c.l.b16 %v321
      %v466 = vunpack.c.l.b16 %v322
      %v467 = vunpack.c.l.b16 %v323
      %v468 = vunpack.c.l.b16 %v324
      %v469 = vunpack.c.l.b16 %v325
      %v470 = vunpack.c.l.b16 %v326
      %v471 = vunpack.c.l.b16 %v327
      %v472 = vunpack.c.l.b16 %v328
      %v473 = vunpack.c.l.b16 %v329
      %v474 = vunpack.c.l.b16 %v330
      %v475 = vunpack.c.l.b16 %v331
      %v476 = vunpack.c.l.b16 %v332
      %v477 = vunpack.c.l.b16 %v333
      %v478 = vunpack.c.l.b16 %v334
      %v479 = vunpack.c.l.b16 %v335
      %v480 = vunpack.c.l.b16 %v336
      %v481 = vpack.c.b16 %v411, %v410
      %v482 = vpack.c.b16 %v413, %v412
      %v483 = vpack.c.b16 %v415, %v414
      %v484 = vpack.c.b16 %v417, %v416
      %v485 = vpack.c.b16 %v419, %v418
      %v486 = vpack.c.b16 %v421, %v420
      %v487 = vpack.c.b16 %v423, %v422
      %v488 = vpack.c.b16 %v425, %v424
      %v489 = vpack.c.b16 %v427, %v426
      %v490 = vpack.c.b16 %v429, %v428
      %v491 = vpack.c.b16 %v431, %v430
      %v492 = vpack.c.b16 %v433, %v432
      %v493 = vpack.c.b16 %v435, %v434
      %v494 = vpack.c.b16 %v437, %v436
      %v495 = vpack.c.b16 %v439, %v438
      %v496 = vpack.c.b16 %v441, %v440
      %v497 = vpack.c.b16 %v443, %v442
      %v498 = vpack.c.b16 %v445, %v444
      %v499 = vpack.c.b16 %v447, %v446
      %v500 = vpack.c.b16 %v449, %v448
      %v501 = vpack.c.b16 %v451, %v450
      %v502 = vpack.c.b16 %v453, %v452
      %v503 = vpack.c.b16 %v455, %v454
      %v504 = vpack.c.b16 %v457, %v456
      %v505 = vpack.c.b16 %v459, %v458
      %v506 = vpack.c.b16 %v461, %v460
      %v507 = vpack.c.b16 %v463, %v462
      %v508 = vpack.c.b16 %v465, %v464
      %v509 = vpack.c.b16 %v467, %v466
      %v510 = vpack.c.b16 %v469, %v468
      %v511 = vpack.c.b16 %v471, %v470
      %v512 = vpack.c.b16 %v473, %v472
      %v513 = vpack.c.b16 %v475, %v474
      %v514 = vpack.c.b16 %v477, %v476
      %v515 = vpack.c.b16 %v479, %v478
      %v516 = vpack.c.b16 %v480, %v480
      %v519 = vunpack.c.l.b16 %v337
      %v520 = vunpack.c.l.b16 %v338
      %v521 = vpack.c.b16 %v520, %v519
      %vm523 = vcmask 130048
      %v525 = vsel %vm523, %v481, 0
      %v528 = vsel %vm523, %v482, 0
      %v531 = vsel %vm523, %v483, 0
      %v534 = vsel %vm523, %v484, 0
      %v537 = vsel %vm523, %v485, 0
      %v540 = vsel %vm523, %v486, 0
      %v543 = vsel %vm523, %v487, 0
      %v546 = vsel %vm523, %v488, 0
      %v549 = vsel %vm523, %v489, 0
      %v552 = vsel %vm523, %v490, 0
      %v555 = vsel %vm523, %v491, 0
      %v558 = vsel %vm523, %v492, 0
      %v561 = vsel %vm523, %v493, 0
      %v564 = vsel %vm523, %v494, 0
      %v567 = vsel %vm523, %v495, 0
      %v570 = vsel %vm523, %v496, 0
      %v573 = vsel %vm523, %v497, 0
      %v576 = vsel %vm523, %v498, 0
      %v579 = vsel %vm523, %v499, 0
      %v582 = vsel %vm523, %v500, 0
      %v585 = vsel %vm523, %v501, 0
      %v588 = vsel %vm523, %v502, 0
      %v591 = vsel %vm523, %v503, 0
      %v594 = vsel %vm523, %v504, 0
      %v597 = vsel %vm523, %v505, 0
      %v600 = vsel %vm523, %v506, 0
      %v603 = vsel %vm523, %v507, 0
      %v606 = vsel %vm523, %v508, 0
      %v609 = vsel %vm523, %v509, 0
      %v612 = vsel %vm523, %v510, 0
      %v615 = vsel %vm523, %v511, 0
      %v618 = vsel %vm523, %v512, 0
      %v621 = vsel %vm523, %v513, 0
      %v624 = vsel %vm523, %v514, 0
      %v627 = vsel %vm523, %v515, 0
      %v630 = vsel %vm523, %v516, 0
      %632 = vmatprep.subr.bf16.mxu0 0
      %633 = vmatpush1.bf16.msra.mxu0 0
      %634 = vmatprep.subr.bf16.mxu0 0
      %635 = vmatpush1.bf16.msra.mxu0 0
      %636 = vmatprep.subr.bf16.mxu0 0
      %637 = vmatpush1.bf16.msra.mxu0 0
      %638 = vmatprep.subr.bf16.mxu0 0
      %639 = vmatpush1.bf16.msra.mxu0 0
      %640 = vmatprep.subr.bf16.mxu0 0
      %641 = vmatpush1.bf16.msra.mxu0 0
      %642 = vmatprep.subr.bf16.mxu0 0
      %643 = vmatpush1.bf16.msra.mxu0 0
      %644 = vmatprep.subr.bf16.mxu0 0
      %645 = vmatpush1.bf16.msra.mxu0 0
      %646 = vmatprep.subr.bf16.mxu0 0
      %647 = vmatpush1.bf16.msra.mxu0 %v521
      %648 = vmatprep.subr.bf16.mxu0 0
      %649 = vmatpush2.bf16.msra.mxu0 0
      %650 = vmatprep.subr.bf16.mxu0 0
      %651 = vmatpush2.bf16.msra.mxu0 0
      %652 = vmatprep.subr.bf16.mxu0 0
      %653 = vmatpush2.bf16.msra.mxu0 0
      %654 = vmatprep.subr.bf16.mxu0 0
      %655 = vmatpush2.bf16.msra.mxu0 0
      %656 = vmatprep.subr.bf16.mxu0 0
      %657 = vmatpush2.bf16.msra.mxu0 0
      %658 = vmatprep.subr.bf16.mxu0 0
      %659 = vmatpush2.bf16.msra.mxu0 0
      %660 = vmatprep.subr.bf16.mxu0 0
      %661 = vmatpush2.bf16.msra.mxu0 0
      %662 = vmatprep.subr.bf16.mxu0 0
      %663 = vmatpush2.bf16.msra.mxu0 0
      %664 = vmatprep.mubr.bf16.mxu0 0
      %665 = vmatmul.mubr.bf16.gmra.mxu0 %v525
      %v666 = vpop.f32.mrf.mxu0
      %v667 = vadd.f32 0.0, %v666
      %v668 = vpop.f32.mrf.mxu0
      %v669 = vpop.f32.mrf.mxu0
      %v670 = vadd.f32 0.0, %v669
      %v671 = vpop.f32.mrf.mxu0
      %672 = vmatprep.mubr.bf16.mxu0 0
      %673 = vmatmul.mubr.bf16.gmra.mxu0 %v528
      %v674 = vpop.f32.mrf.mxu0
      %v675 = vadd.f32 0.0, %v674
      %v676 = vpop.f32.mrf.mxu0
      %v677 = vpop.f32.mrf.mxu0
      %v678 = vadd.f32 0.0, %v677
      %v679 = vpop.f32.mrf.mxu0
      %680 = vmatprep.mubr.bf16.mxu0 0
      %681 = vmatmul.mubr.bf16.gmra.mxu0 %v531
      %v682 = vpop.f32.mrf.mxu0
      %v683 = vadd.f32 0.0, %v682
      %v684 = vpop.f32.mrf.mxu0
      %v685 = vpop.f32.mrf.mxu0
      %v686 = vadd.f32 0.0, %v685
      %v687 = vpop.f32.mrf.mxu0
      %688 = vmatprep.mubr.bf16.mxu0 0
      %689 = vmatmul.mubr.bf16.gmra.mxu0 %v534
      %v690 = vpop.f32.mrf.mxu0
      %v691 = vadd.f32 0.0, %v690
      %v692 = vpop.f32.mrf.mxu0
      %v693 = vpop.f32.mrf.mxu0
      %v694 = vadd.f32 0.0, %v693
      %v695 = vpop.f32.mrf.mxu0
      %696 = vmatprep.mubr.bf16.mxu0 0
      %697 = vmatmul.mubr.bf16.gmra.mxu0 %v537
      %v698 = vpop.f32.mrf.mxu0
      %v699 = vadd.f32 0.0, %v698
      %v700 = vpop.f32.mrf.mxu0
      %v701 = vpop.f32.mrf.mxu0
      %v702 = vadd.f32 0.0, %v701
      %v703 = vpop.f32.mrf.mxu0
      %704 = vmatprep.mubr.bf16.mxu0 0
      %705 = vmatmul.mubr.bf16.gmra.mxu0 %v540
      %v706 = vpop.f32.mrf.mxu0
      %v707 = vadd.f32 0.0, %v706
      %v708 = vpop.f32.mrf.mxu0
      %v709 = vpop.f32.mrf.mxu0
      %v710 = vadd.f32 0.0, %v709
      %v711 = vpop.f32.mrf.mxu0
      %712 = vmatprep.mubr.bf16.mxu0 0
      %713 = vmatmul.mubr.bf16.gmra.mxu0 %v543
      %v714 = vpop.f32.mrf.mxu0
      %v715 = vadd.f32 0.0, %v714
      %v716 = vpop.f32.mrf.mxu0
      %v717 = vpop.f32.mrf.mxu0
      %v718 = vadd.f32 0.0, %v717
      %v719 = vpop.f32.mrf.mxu0
      %720 = vmatprep.mubr.bf16.mxu0 0
      %721 = vmatmul.mubr.bf16.gmra.mxu0 %v546
      %v722 = vpop.f32.mrf.mxu0
      %v723 = vadd.f32 0.0, %v722
      %v724 = vpop.f32.mrf.mxu0
      %v725 = vpop.f32.mrf.mxu0
      %v726 = vadd.f32 0.0, %v725
      %v727 = vpop.f32.mrf.mxu0
      %728 = vmatprep.mubr.bf16.mxu0 0
      %729 = vmatmul.mubr.bf16.gmra.mxu0 %v549
      %v730 = vpop.f32.mrf.mxu0
      %v731 = vadd.f32 0.0, %v730
      %v732 = vpop.f32.mrf.mxu0
      %v733 = vpop.f32.mrf.mxu0
      %v734 = vadd.f32 0.0, %v733
      %v735 = vpop.f32.mrf.mxu0
      %736 = vmatprep.mubr.bf16.mxu0 0
      %737 = vmatmul.mubr.bf16.gmra.mxu0 %v552
      %v738 = vpop.f32.mrf.mxu0
      %v739 = vadd.f32 0.0, %v738
      %v740 = vpop.f32.mrf.mxu0
      %v741 = vpop.f32.mrf.mxu0
      %v742 = vadd.f32 0.0, %v741
      %v743 = vpop.f32.mrf.mxu0
      %744 = vmatprep.mubr.bf16.mxu0 0
      %745 = vmatmul.mubr.bf16.gmra.mxu0 %v555
      %v746 = vpop.f32.mrf.mxu0
      %v747 = vadd.f32 0.0, %v746
      %v748 = vpop.f32.mrf.mxu0
      %v749 = vpop.f32.mrf.mxu0
      %v750 = vadd.f32 0.0, %v749
      %v751 = vpop.f32.mrf.mxu0
      %752 = vmatprep.mubr.bf16.mxu0 0
      %753 = vmatmul.mubr.bf16.gmra.mxu0 %v558
      %v754 = vpop.f32.mrf.mxu0
      %v755 = vadd.f32 0.0, %v754
      %v756 = vpop.f32.mrf.mxu0
      %v757 = vpop.f32.mrf.mxu0
      %v758 = vadd.f32 0.0, %v757
      %v759 = vpop.f32.mrf.mxu0
      %760 = vmatprep.mubr.bf16.mxu0 0
      %761 = vmatmul.mubr.bf16.gmra.mxu0 %v561
      %v762 = vpop.f32.mrf.mxu0
      %v763 = vadd.f32 0.0, %v762
      %v764 = vpop.f32.mrf.mxu0
      %v765 = vpop.f32.mrf.mxu0
      %v766 = vadd.f32 0.0, %v765
      %v767 = vpop.f32.mrf.mxu0
      %768 = vmatprep.mubr.bf16.mxu0 0
      %769 = vmatmul.mubr.bf16.gmra.mxu0 %v564
      %v770 = vpop.f32.mrf.mxu0
      %v771 = vadd.f32 0.0, %v770
      %v772 = vpop.f32.mrf.mxu0
      %v773 = vpop.f32.mrf.mxu0
      %v774 = vadd.f32 0.0, %v773
      %v775 = vpop.f32.mrf.mxu0
      %776 = vmatprep.mubr.bf16.mxu0 0
      %777 = vmatmul.mubr.bf16.gmra.mxu0 %v567
      %v778 = vpop.f32.mrf.mxu0
      %v779 = vadd.f32 0.0, %v778
      %v780 = vpop.f32.mrf.mxu0
      %v781 = vpop.f32.mrf.mxu0
      %v782 = vadd.f32 0.0, %v781
      %v783 = vpop.f32.mrf.mxu0
      %784 = vmatprep.mubr.bf16.mxu0 0
      %785 = vmatmul.mubr.bf16.gmra.mxu0 %v570
      %v786 = vpop.f32.mrf.mxu0
      %v787 = vadd.f32 0.0, %v786
      %v788 = vpop.f32.mrf.mxu0
      %v789 = vpop.f32.mrf.mxu0
      %v790 = vadd.f32 0.0, %v789
      %v791 = vpop.f32.mrf.mxu0
      %792 = vmatprep.mubr.bf16.mxu0 0
      %793 = vmatmul.mubr.bf16.gmra.mxu0 %v573
      %v794 = vpop.f32.mrf.mxu0
      %v795 = vadd.f32 0.0, %v794
      %v796 = vpop.f32.mrf.mxu0
      %v797 = vpop.f32.mrf.mxu0
      %v798 = vadd.f32 0.0, %v797
      %v799 = vpop.f32.mrf.mxu0
      %800 = vmatprep.mubr.bf16.mxu0 0
      %801 = vmatmul.mubr.bf16.gmra.mxu0 %v576
      %v802 = vpop.f32.mrf.mxu0
      %v803 = vadd.f32 0.0, %v802
      %v804 = vpop.f32.mrf.mxu0
      %v805 = vpop.f32.mrf.mxu0
      %v806 = vadd.f32 0.0, %v805
      %v807 = vpop.f32.mrf.mxu0
      %808 = vmatprep.mubr.bf16.mxu0 0
      %809 = vmatmul.mubr.bf16.gmra.mxu0 %v579
      %v810 = vpop.f32.mrf.mxu0
      %v811 = vadd.f32 0.0, %v810
      %v812 = vpop.f32.mrf.mxu0
      %v813 = vpop.f32.mrf.mxu0
      %v814 = vadd.f32 0.0, %v813
      %v815 = vpop.f32.mrf.mxu0
      %816 = vmatprep.mubr.bf16.mxu0 0
      %817 = vmatmul.mubr.bf16.gmra.mxu0 %v582
      %v818 = vpop.f32.mrf.mxu0
      %v819 = vadd.f32 0.0, %v818
      %v820 = vpop.f32.mrf.mxu0
      %v821 = vpop.f32.mrf.mxu0
      %v822 = vadd.f32 0.0, %v821
      %v823 = vpop.f32.mrf.mxu0
      %824 = vmatprep.mubr.bf16.mxu0 0
      %825 = vmatmul.mubr.bf16.gmra.mxu0 %v585
      %v826 = vpop.f32.mrf.mxu0
      %v827 = vadd.f32 0.0, %v826
      %v828 = vpop.f32.mrf.mxu0
      %v829 = vpop.f32.mrf.mxu0
      %v830 = vadd.f32 0.0, %v829
      %v831 = vpop.f32.mrf.mxu0
      %832 = vmatprep.mubr.bf16.mxu0 0
      %833 = vmatmul.mubr.bf16.gmra.mxu0 %v588
      %v834 = vpop.f32.mrf.mxu0
      %v835 = vadd.f32 0.0, %v834
      %v836 = vpop.f32.mrf.mxu0
      %v837 = vpop.f32.mrf.mxu0
      %v838 = vadd.f32 0.0, %v837
      %v839 = vpop.f32.mrf.mxu0
      %840 = vmatprep.mubr.bf16.mxu0 0
      %841 = vmatmul.mubr.bf16.gmra.mxu0 %v591
      %v842 = vpop.f32.mrf.mxu0
      %v843 = vadd.f32 0.0, %v842
      %v844 = vpop.f32.mrf.mxu0
      %v845 = vpop.f32.mrf.mxu0
      %v846 = vadd.f32 0.0, %v845
      %v847 = vpop.f32.mrf.mxu0
      %848 = vmatprep.mubr.bf16.mxu0 0
      %849 = vmatmul.mubr.bf16.gmra.mxu0 %v594
      %v850 = vpop.f32.mrf.mxu0
      %v851 = vadd.f32 0.0, %v850
      %v852 = vpop.f32.mrf.mxu0
      %v853 = vpop.f32.mrf.mxu0
      %v854 = vadd.f32 0.0, %v853
      %v855 = vpop.f32.mrf.mxu0
      %856 = vmatprep.mubr.bf16.mxu0 0
      %857 = vmatmul.mubr.bf16.gmra.mxu0 %v597
      %v858 = vpop.f32.mrf.mxu0
      %v859 = vadd.f32 0.0, %v858
      %v860 = vpop.f32.mrf.mxu0
      %v861 = vpop.f32.mrf.mxu0
      %v862 = vadd.f32 0.0, %v861
      %v863 = vpop.f32.mrf.mxu0
      %864 = vmatprep.mubr.bf16.mxu0 0
      %865 = vmatmul.mubr.bf16.gmra.mxu0 %v600
      %v866 = vpop.f32.mrf.mxu0
      %v867 = vadd.f32 0.0, %v866
      %v868 = vpop.f32.mrf.mxu0
      %v869 = vpop.f32.mrf.mxu0
      %v870 = vadd.f32 0.0, %v869
      %v871 = vpop.f32.mrf.mxu0
      %872 = vmatprep.mubr.bf16.mxu0 0
      %873 = vmatmul.mubr.bf16.gmra.mxu0 %v603
      %v874 = vpop.f32.mrf.mxu0
      %v875 = vadd.f32 0.0, %v874
      %v876 = vpop.f32.mrf.mxu0
      %v877 = vpop.f32.mrf.mxu0
      %v878 = vadd.f32 0.0, %v877
      %v879 = vpop.f32.mrf.mxu0
      %880 = vmatprep.mubr.bf16.mxu0 0
      %881 = vmatmul.mubr.bf16.gmra.mxu0 %v606
      %v882 = vpop.f32.mrf.mxu0
      %v883 = vadd.f32 0.0, %v882
      %v884 = vpop.f32.mrf.mxu0
      %v885 = vpop.f32.mrf.mxu0
      %v886 = vadd.f32 0.0, %v885
      %v887 = vpop.f32.mrf.mxu0
      %888 = vmatprep.mubr.bf16.mxu0 0
      %889 = vmatmul.mubr.bf16.gmra.mxu0 %v609
      %v890 = vpop.f32.mrf.mxu0
      %v891 = vadd.f32 0.0, %v890
      %v892 = vpop.f32.mrf.mxu0
      %v893 = vpop.f32.mrf.mxu0
      %v894 = vadd.f32 0.0, %v893
      %v895 = vpop.f32.mrf.mxu0
      %896 = vmatprep.mubr.bf16.mxu0 0
      %897 = vmatmul.mubr.bf16.gmra.mxu0 %v612
      %v898 = vpop.f32.mrf.mxu0
      %v899 = vadd.f32 0.0, %v898
      %v900 = vpop.f32.mrf.mxu0
      %v901 = vpop.f32.mrf.mxu0
      %v902 = vadd.f32 0.0, %v901
      %v903 = vpop.f32.mrf.mxu0
      %904 = vmatprep.mubr.bf16.mxu0 0
      %905 = vmatmul.mubr.bf16.gmra.mxu0 %v615
      %v906 = vpop.f32.mrf.mxu0
      %v907 = vadd.f32 0.0, %v906
      %v908 = vpop.f32.mrf.mxu0
      %v909 = vpop.f32.mrf.mxu0
      %v910 = vadd.f32 0.0, %v909
      %v911 = vpop.f32.mrf.mxu0
      %912 = vmatprep.mubr.bf16.mxu0 0
      %913 = vmatmul.mubr.bf16.gmra.mxu0 %v618
      %v914 = vpop.f32.mrf.mxu0
      %v915 = vadd.f32 0.0, %v914
      %v916 = vpop.f32.mrf.mxu0
      %v917 = vpop.f32.mrf.mxu0
      %v918 = vadd.f32 0.0, %v917
      %v919 = vpop.f32.mrf.mxu0
      %920 = vmatprep.mubr.bf16.mxu0 0
      %921 = vmatmul.mubr.bf16.gmra.mxu0 %v621
      %v922 = vpop.f32.mrf.mxu0
      %v923 = vadd.f32 0.0, %v922
      %v924 = vpop.f32.mrf.mxu0
      %v925 = vpop.f32.mrf.mxu0
      %v926 = vadd.f32 0.0, %v925
      %v927 = vpop.f32.mrf.mxu0
      %928 = vmatprep.mubr.bf16.mxu0 0
      %929 = vmatmul.mubr.bf16.gmra.mxu0 %v624
      %v930 = vpop.f32.mrf.mxu0
      %v931 = vadd.f32 0.0, %v930
      %v932 = vpop.f32.mrf.mxu0
      %v933 = vpop.f32.mrf.mxu0
      %v934 = vadd.f32 0.0, %v933
      %v935 = vpop.f32.mrf.mxu0
      %936 = vmatprep.mubr.bf16.mxu0 0
      %937 = vmatmul.mubr.bf16.gmra.mxu0 %v627
      %v938 = vpop.f32.mrf.mxu0
      %v939 = vadd.f32 0.0, %v938
      %v940 = vpop.f32.mrf.mxu0
      %v941 = vpop.f32.mrf.mxu0
      %v942 = vadd.f32 0.0, %v941
      %v943 = vpop.f32.mrf.mxu0
      %944 = vmatprep.mubr.bf16.mxu0 0
      %945 = vmatmul.mubr.bf16.gmra.mxu0 %v630
      %v946 = vpop.f32.mrf.mxu0
      %v947 = vadd.f32 0.0, %v946
      %v948 = vpop.f32.mrf.mxu0
      %v949 = vpop.f32.mrf.mxu0
      %v950 = vpop.f32.mrf.mxu0
      %951 = vdwg.mxu0
      %vm1019 = vcmask 1046528
      %v1020 = vrot.slane %v667, 1
      %v1021 = vrot.slane %v670, 1
      %v1022 = vsel %vm1019, %v1020, %v1021
      %v1023 = vrot.slane %v675, 1
      %v1024 = vsel %vm1019, %v1021, %v1023
      %v1025 = vrot.slane %v678, 1
      %v1026 = vsel %vm1019, %v1023, %v1025
      %v1027 = vrot.slane %v683, 1
      %v1028 = vsel %vm1019, %v1025, %v1027
      %v1029 = vrot.slane %v686, 1
      %v1030 = vsel %vm1019, %v1027, %v1029
      %v1031 = vrot.slane %v691, 1
      %v1032 = vsel %vm1019, %v1029, %v1031
      %v1033 = vrot.slane %v694, 1
      %v1034 = vsel %vm1019, %v1031, %v1033
      %v1035 = vrot.slane %v699, 1
      %v1036 = vsel %vm1019, %v1033, %v1035
      %v1037 = vrot.slane %v702, 1
      %v1038 = vsel %vm1019, %v1035, %v1037
      %v1039 = vrot.slane %v707, 1
      %v1040 = vsel %vm1019, %v1037, %v1039
      %v1041 = vrot.slane %v710, 1
      %v1042 = vsel %vm1019, %v1039, %v1041
      %v1043 = vrot.slane %v715, 1
      %v1044 = vsel %vm1019, %v1041, %v1043
      %v1045 = vrot.slane %v718, 1
      %v1046 = vsel %vm1019, %v1043, %v1045
      %v1047 = vrot.slane %v723, 1
      %v1048 = vsel %vm1019, %v1045, %v1047
      %v1049 = vrot.slane %v726, 1
      %v1050 = vsel %vm1019, %v1047, %v1049
      %v1051 = vrot.slane %v731, 1
      %v1052 = vsel %vm1019, %v1049, %v1051
      %v1053 = vrot.slane %v734, 1
      %v1054 = vsel %vm1019, %v1051, %v1053
      %v1055 = vrot.slane %v739, 1
      %v1056 = vsel %vm1019, %v1053, %v1055
      %v1057 = vrot.slane %v742, 1
      %v1058 = vsel %vm1019, %v1055, %v1057
      %v1059 = vrot.slane %v747, 1
      %v1060 = vsel %vm1019, %v1057, %v1059
      %v1061 = vrot.slane %v750, 1
      %v1062 = vsel %vm1019, %v1059, %v1061
      %v1063 = vrot.slane %v755, 1
      %v1064 = vsel %vm1019, %v1061, %v1063
      %v1065 = vrot.slane %v758, 1
      %v1066 = vsel %vm1019, %v1063, %v1065
      %v1067 = vrot.slane %v763, 1
      %v1068 = vsel %vm1019, %v1065, %v1067
      %v1069 = vrot.slane %v766, 1
      %v1070 = vsel %vm1019, %v1067, %v1069
      %v1071 = vrot.slane %v771, 1
      %v1072 = vsel %vm1019, %v1069, %v1071
      %v1073 = vrot.slane %v774, 1
      %v1074 = vsel %vm1019, %v1071, %v1073
      %v1075 = vrot.slane %v779, 1
      %v1076 = vsel %vm1019, %v1073, %v1075
      %v1077 = vrot.slane %v782, 1
      %v1078 = vsel %vm1019, %v1075, %v1077
      %v1079 = vrot.slane %v787, 1
      %v1080 = vsel %vm1019, %v1077, %v1079
      %v1081 = vrot.slane %v790, 1
      %v1082 = vsel %vm1019, %v1079, %v1081
      %v1083 = vrot.slane %v795, 1
      %v1084 = vsel %vm1019, %v1081, %v1083
      %v1085 = vrot.slane %v798, 1
      %v1086 = vsel %vm1019, %v1083, %v1085
      %v1087 = vrot.slane %v803, 1
      %v1088 = vsel %vm1019, %v1085, %v1087
      %v1089 = vrot.slane %v806, 1
      %v1090 = vsel %vm1019, %v1087, %v1089
      %v1091 = vrot.slane %v811, 1
      %v1092 = vsel %vm1019, %v1089, %v1091
      %v1093 = vrot.slane %v814, 1
      %v1094 = vsel %vm1019, %v1091, %v1093
      %v1095 = vrot.slane %v819, 1
      %v1096 = vsel %vm1019, %v1093, %v1095
      %v1097 = vrot.slane %v822, 1
      %v1098 = vsel %vm1019, %v1095, %v1097
      %v1099 = vrot.slane %v827, 1
      %v1100 = vsel %vm1019, %v1097, %v1099
      %v1101 = vrot.slane %v830, 1
      %v1102 = vsel %vm1019, %v1099, %v1101
      %v1103 = vrot.slane %v835, 1
      %v1104 = vsel %vm1019, %v1101, %v1103
      %v1105 = vrot.slane %v838, 1
      %v1106 = vsel %vm1019, %v1103, %v1105
      %v1107 = vrot.slane %v843, 1
      %v1108 = vsel %vm1019, %v1105, %v1107
      %v1109 = vrot.slane %v846, 1
      %v1110 = vsel %vm1019, %v1107, %v1109
      %v1111 = vrot.slane %v851, 1
      %v1112 = vsel %vm1019, %v1109, %v1111
      %v1113 = vrot.slane %v854, 1
      %v1114 = vsel %vm1019, %v1111, %v1113
      %v1115 = vrot.slane %v859, 1
      %v1116 = vsel %vm1019, %v1113, %v1115
      %v1117 = vrot.slane %v862, 1
      %v1118 = vsel %vm1019, %v1115, %v1117
      %v1119 = vrot.slane %v867, 1
      %v1120 = vsel %vm1019, %v1117, %v1119
      %v1121 = vrot.slane %v870, 1
      %v1122 = vsel %vm1019, %v1119, %v1121
      %v1123 = vrot.slane %v875, 1
      %v1124 = vsel %vm1019, %v1121, %v1123
      %v1125 = vrot.slane %v878, 1
      %v1126 = vsel %vm1019, %v1123, %v1125
      %v1127 = vrot.slane %v883, 1
      %v1128 = vsel %vm1019, %v1125, %v1127
      %v1129 = vrot.slane %v886, 1
      %v1130 = vsel %vm1019, %v1127, %v1129
      %v1131 = vrot.slane %v891, 1
      %v1132 = vsel %vm1019, %v1129, %v1131
      %v1133 = vrot.slane %v894, 1
      %v1134 = vsel %vm1019, %v1131, %v1133
      %v1135 = vrot.slane %v899, 1
      %v1136 = vsel %vm1019, %v1133, %v1135
      %v1137 = vrot.slane %v902, 1
      %v1138 = vsel %vm1019, %v1135, %v1137
      %v1139 = vrot.slane %v907, 1
      %v1140 = vsel %vm1019, %v1137, %v1139
      %v1141 = vrot.slane %v910, 1
      %v1142 = vsel %vm1019, %v1139, %v1141
      %v1143 = vrot.slane %v915, 1
      %v1144 = vsel %vm1019, %v1141, %v1143
      %v1145 = vrot.slane %v918, 1
      %v1146 = vsel %vm1019, %v1143, %v1145
      %v1147 = vrot.slane %v923, 1
      %v1148 = vsel %vm1019, %v1145, %v1147
      %v1149 = vrot.slane %v926, 1
      %v1150 = vsel %vm1019, %v1147, %v1149
      %v1151 = vrot.slane %v931, 1
      %v1152 = vsel %vm1019, %v1149, %v1151
      %1153 = vrot.lane.b32.xlu0 %v1022, 126
      %v1154 = vpop.permute.xlu0 %1153
      %1155 = vrot.lane.b32.xlu0 %v1024, 126
      %v1156 = vpop.permute.xlu0 %1155
      %1157 = vrot.lane.b32.xlu0 %v1026, 126
      %v1158 = vpop.permute.xlu0 %1157
      %1159 = vrot.lane.b32.xlu0 %v1028, 126
      %v1160 = vpop.permute.xlu0 %1159
      %1161 = vrot.lane.b32.xlu0 %v1030, 126
      %v1162 = vpop.permute.xlu0 %1161
      %1163 = vrot.lane.b32.xlu0 %v1032, 126
      %v1164 = vpop.permute.xlu0 %1163
      %1165 = vrot.lane.b32.xlu0 %v1034, 126
      %v1166 = vpop.permute.xlu0 %1165
      %1167 = vrot.lane.b32.xlu0 %v1036, 126
      %v1168 = vpop.permute.xlu0 %1167
      %1169 = vrot.lane.b32.xlu0 %v1038, 126
      %v1170 = vpop.permute.xlu0 %1169
      %1171 = vrot.lane.b32.xlu0 %v1040, 126
      %v1172 = vpop.permute.xlu0 %1171
      %1173 = vrot.lane.b32.xlu0 %v1042, 126
      %v1174 = vpop.permute.xlu0 %1173
      %1175 = vrot.lane.b32.xlu0 %v1044, 126
      %v1176 = vpop.permute.xlu0 %1175
      %1177 = vrot.lane.b32.xlu0 %v1046, 126
      %v1178 = vpop.permute.xlu0 %1177
      %1179 = vrot.lane.b32.xlu0 %v1048, 126
      %v1180 = vpop.permute.xlu0 %1179
      %1181 = vrot.lane.b32.xlu0 %v1050, 126
      %v1182 = vpop.permute.xlu0 %1181
      %1183 = vrot.lane.b32.xlu0 %v1052, 126
      %v1184 = vpop.permute.xlu0 %1183
      %1185 = vrot.lane.b32.xlu0 %v1054, 126
      %v1186 = vpop.permute.xlu0 %1185
      %1187 = vrot.lane.b32.xlu0 %v1056, 126
      %v1188 = vpop.permute.xlu0 %1187
      %1189 = vrot.lane.b32.xlu0 %v1058, 126
      %v1190 = vpop.permute.xlu0 %1189
      %1191 = vrot.lane.b32.xlu0 %v1060, 126
      %v1192 = vpop.permute.xlu0 %1191
      %1193 = vrot.lane.b32.xlu0 %v1062, 126
      %v1194 = vpop.permute.xlu0 %1193
      %1195 = vrot.lane.b32.xlu0 %v1064, 126
      %v1196 = vpop.permute.xlu0 %1195
      %1197 = vrot.lane.b32.xlu0 %v1066, 126
      %v1198 = vpop.permute.xlu0 %1197
      %1199 = vrot.lane.b32.xlu0 %v1068, 126
      %v1200 = vpop.permute.xlu0 %1199
      %1201 = vrot.lane.b32.xlu0 %v1070, 126
      %v1202 = vpop.permute.xlu0 %1201
      %1203 = vrot.lane.b32.xlu0 %v1072, 126
      %v1204 = vpop.permute.xlu0 %1203
      %1205 = vrot.lane.b32.xlu0 %v1074, 126
      %v1206 = vpop.permute.xlu0 %1205
      %1207 = vrot.lane.b32.xlu0 %v1076, 126
      %v1208 = vpop.permute.xlu0 %1207
      %1209 = vrot.lane.b32.xlu0 %v1078, 126
      %v1210 = vpop.permute.xlu0 %1209
      %1211 = vrot.lane.b32.xlu0 %v1080, 126
      %v1212 = vpop.permute.xlu0 %1211
      %1213 = vrot.lane.b32.xlu0 %v1082, 126
      %v1214 = vpop.permute.xlu0 %1213
      %1215 = vrot.lane.b32.xlu0 %v1084, 126
      %v1216 = vpop.permute.xlu0 %1215
      %1217 = vrot.lane.b32.xlu0 %v1086, 126
      %v1218 = vpop.permute.xlu0 %1217
      %1219 = vrot.lane.b32.xlu0 %v1088, 126
      %v1220 = vpop.permute.xlu0 %1219
      %1221 = vrot.lane.b32.xlu0 %v1090, 126
      %v1222 = vpop.permute.xlu0 %1221
      %1223 = vrot.lane.b32.xlu0 %v1092, 126
      %v1224 = vpop.permute.xlu0 %1223
      %1225 = vrot.lane.b32.xlu0 %v1094, 126
      %v1226 = vpop.permute.xlu0 %1225
      %1227 = vrot.lane.b32.xlu0 %v1096, 126
      %v1228 = vpop.permute.xlu0 %1227
      %1229 = vrot.lane.b32.xlu0 %v1098, 126
      %v1230 = vpop.permute.xlu0 %1229
      %1231 = vrot.lane.b32.xlu0 %v1100, 126
      %v1232 = vpop.permute.xlu0 %1231
      %1233 = vrot.lane.b32.xlu0 %v1102, 126
      %v1234 = vpop.permute.xlu0 %1233
      %1235 = vrot.lane.b32.xlu0 %v1104, 126
      %v1236 = vpop.permute.xlu0 %1235
      %1237 = vrot.lane.b32.xlu0 %v1106, 126
      %v1238 = vpop.permute.xlu0 %1237
      %1239 = vrot.lane.b32.xlu0 %v1108, 126
      %v1240 = vpop.permute.xlu0 %1239
      %1241 = vrot.lane.b32.xlu0 %v1110, 126
      %v1242 = vpop.permute.xlu0 %1241
      %1243 = vrot.lane.b32.xlu0 %v1112, 126
      %v1244 = vpop.permute.xlu0 %1243
      %1245 = vrot.lane.b32.xlu0 %v1114, 126
      %v1246 = vpop.permute.xlu0 %1245
      %1247 = vrot.lane.b32.xlu0 %v1116, 126
      %v1248 = vpop.permute.xlu0 %1247
      %1249 = vrot.lane.b32.xlu0 %v1118, 126
      %v1250 = vpop.permute.xlu0 %1249
      %1251 = vrot.lane.b32.xlu0 %v1120, 126
      %v1252 = vpop.permute.xlu0 %1251
      %1253 = vrot.lane.b32.xlu0 %v1122, 126
      %v1254 = vpop.permute.xlu0 %1253
      %1255 = vrot.lane.b32.xlu0 %v1124, 126
      %v1256 = vpop.permute.xlu0 %1255
      %1257 = vrot.lane.b32.xlu0 %v1126, 126
      %v1258 = vpop.permute.xlu0 %1257
      %1259 = vrot.lane.b32.xlu0 %v1128, 126
      %v1260 = vpop.permute.xlu0 %1259
      %1261 = vrot.lane.b32.xlu0 %v1130, 126
      %v1262 = vpop.permute.xlu0 %1261
      %1263 = vrot.lane.b32.xlu0 %v1132, 126
      %v1264 = vpop.permute.xlu0 %1263
      %1265 = vrot.lane.b32.xlu0 %v1134, 126
      %v1266 = vpop.permute.xlu0 %1265
      %1267 = vrot.lane.b32.xlu0 %v1136, 126
      %v1268 = vpop.permute.xlu0 %1267
      %1269 = vrot.lane.b32.xlu0 %v1138, 126
      %v1270 = vpop.permute.xlu0 %1269
      %1271 = vrot.lane.b32.xlu0 %v1140, 126
      %v1272 = vpop.permute.xlu0 %1271
      %1273 = vrot.lane.b32.xlu0 %v1142, 126
      %v1274 = vpop.permute.xlu0 %1273
      %1275 = vrot.lane.b32.xlu0 %v1144, 126
      %v1276 = vpop.permute.xlu0 %1275
      %1277 = vrot.lane.b32.xlu0 %v1146, 126
      %v1278 = vpop.permute.xlu0 %1277
      %1279 = vrot.lane.b32.xlu0 %v1148, 126
      %v1280 = vpop.permute.xlu0 %1279
      %1281 = vrot.lane.b32.xlu0 %v1150, 126
      %v1282 = vpop.permute.xlu0 %1281
      %1283 = vrot.lane.b32.xlu0 %v1152, 126
      %v1284 = vpop.permute.xlu0 %1283
      %v1351 = vadd.f32 %v667, %v1154
      %v1352 = vadd.f32 %v670, %v1156
      %v1353 = vadd.f32 %v675, %v1158
      %v1354 = vadd.f32 %v678, %v1160
      %v1355 = vadd.f32 %v683, %v1162
      %v1356 = vadd.f32 %v686, %v1164
      %v1357 = vadd.f32 %v691, %v1166
      %v1358 = vadd.f32 %v694, %v1168
      %v1359 = vadd.f32 %v699, %v1170
      %v1360 = vadd.f32 %v702, %v1172
      %v1361 = vadd.f32 %v707, %v1174
      %v1362 = vadd.f32 %v710, %v1176
      %v1363 = vadd.f32 %v715, %v1178
      %v1364 = vadd.f32 %v718, %v1180
      %v1365 = vadd.f32 %v723, %v1182
      %v1366 = vadd.f32 %v726, %v1184
      %v1367 = vadd.f32 %v731, %v1186
      %v1368 = vadd.f32 %v734, %v1188
      %v1369 = vadd.f32 %v739, %v1190
      %v1370 = vadd.f32 %v742, %v1192
      %v1371 = vadd.f32 %v747, %v1194
      %v1372 = vadd.f32 %v750, %v1196
      %v1373 = vadd.f32 %v755, %v1198
      %v1374 = vadd.f32 %v758, %v1200
      %v1375 = vadd.f32 %v763, %v1202
      %v1376 = vadd.f32 %v766, %v1204
      %v1377 = vadd.f32 %v771, %v1206
      %v1378 = vadd.f32 %v774, %v1208
      %v1379 = vadd.f32 %v779, %v1210
      %v1380 = vadd.f32 %v782, %v1212
      %v1381 = vadd.f32 %v787, %v1214
      %v1382 = vadd.f32 %v790, %v1216
      %v1383 = vadd.f32 %v795, %v1218
      %v1384 = vadd.f32 %v798, %v1220
      %v1385 = vadd.f32 %v803, %v1222
      %v1386 = vadd.f32 %v806, %v1224
      %v1387 = vadd.f32 %v811, %v1226
      %v1388 = vadd.f32 %v814, %v1228
      %v1389 = vadd.f32 %v819, %v1230
      %v1390 = vadd.f32 %v822, %v1232
      %v1391 = vadd.f32 %v827, %v1234
      %v1392 = vadd.f32 %v830, %v1236
      %v1393 = vadd.f32 %v835, %v1238
      %v1394 = vadd.f32 %v838, %v1240
      %v1395 = vadd.f32 %v843, %v1242
      %v1396 = vadd.f32 %v846, %v1244
      %v1397 = vadd.f32 %v851, %v1246
      %v1398 = vadd.f32 %v854, %v1248
      %v1399 = vadd.f32 %v859, %v1250
      %v1400 = vadd.f32 %v862, %v1252
      %v1401 = vadd.f32 %v867, %v1254
      %v1402 = vadd.f32 %v870, %v1256
      %v1403 = vadd.f32 %v875, %v1258
      %v1404 = vadd.f32 %v878, %v1260
      %v1405 = vadd.f32 %v883, %v1262
      %v1406 = vadd.f32 %v886, %v1264
      %v1407 = vadd.f32 %v891, %v1266
      %v1408 = vadd.f32 %v894, %v1268
      %v1409 = vadd.f32 %v899, %v1270
      %v1410 = vadd.f32 %v902, %v1272
      %v1411 = vadd.f32 %v907, %v1274
      %v1412 = vadd.f32 %v910, %v1276
      %v1413 = vadd.f32 %v915, %v1278
      %v1414 = vadd.f32 %v918, %v1280
      %v1415 = vadd.f32 %v923, %v1282
      %v1416 = vadd.f32 %v926, %v1284
      %v1421 = vrot.slane %v934, 1
      %v1422 = vsel %vm1019, %v1151, %v1421
      %v1423 = vrot.slane %v939, 1
      %v1424 = vsel %vm1019, %v1421, %v1423
      %v1425 = vrot.slane %v942, 1
      %v1426 = vsel %vm1019, %v1423, %v1425
      %v1427 = vrot.slane %v947, 1
      %v1428 = vsel %vm1019, %v1425, %v1427
      %1429 = vrot.lane.b32.xlu0 %v1030, 124
      %v1430 = vpop.permute.xlu0 %1429
      %1431 = vrot.lane.b32.xlu0 %v1032, 124
      %v1432 = vpop.permute.xlu0 %1431
      %1433 = vrot.lane.b32.xlu0 %v1034, 124
      %v1434 = vpop.permute.xlu0 %1433
      %1435 = vrot.lane.b32.xlu0 %v1036, 124
      %v1436 = vpop.permute.xlu0 %1435
      %1437 = vrot.lane.b32.xlu0 %v1038, 124
      %v1438 = vpop.permute.xlu0 %1437
      %1439 = vrot.lane.b32.xlu0 %v1040, 124
      %v1440 = vpop.permute.xlu0 %1439
      %1441 = vrot.lane.b32.xlu0 %v1042, 124
      %v1442 = vpop.permute.xlu0 %1441
      %1443 = vrot.lane.b32.xlu0 %v1044, 124
      %v1444 = vpop.permute.xlu0 %1443
      %1445 = vrot.lane.b32.xlu0 %v1046, 124
      %v1446 = vpop.permute.xlu0 %1445
      %1447 = vrot.lane.b32.xlu0 %v1048, 124
      %v1448 = vpop.permute.xlu0 %1447
      %1449 = vrot.lane.b32.xlu0 %v1050, 124
      %v1450 = vpop.permute.xlu0 %1449
      %1451 = vrot.lane.b32.xlu0 %v1052, 124
      %v1452 = vpop.permute.xlu0 %1451
      %1453 = vrot.lane.b32.xlu0 %v1054, 124
      %v1454 = vpop.permute.xlu0 %1453
      %1455 = vrot.lane.b32.xlu0 %v1056, 124
      %v1456 = vpop.permute.xlu0 %1455
      %1457 = vrot.lane.b32.xlu0 %v1058, 124
      %v1458 = vpop.permute.xlu0 %1457
      %1459 = vrot.lane.b32.xlu0 %v1060, 124
      %v1460 = vpop.permute.xlu0 %1459
      %1461 = vrot.lane.b32.xlu0 %v1062, 124
      %v1462 = vpop.permute.xlu0 %1461
      %1463 = vrot.lane.b32.xlu0 %v1064, 124
      %v1464 = vpop.permute.xlu0 %1463
      %1465 = vrot.lane.b32.xlu0 %v1066, 124
      %v1466 = vpop.permute.xlu0 %1465
      %1467 = vrot.lane.b32.xlu0 %v1068, 124
      %v1468 = vpop.permute.xlu0 %1467
      %1469 = vrot.lane.b32.xlu0 %v1070, 124
      %v1470 = vpop.permute.xlu0 %1469
      %1471 = vrot.lane.b32.xlu0 %v1072, 124
      %v1472 = vpop.permute.xlu0 %1471
      %1473 = vrot.lane.b32.xlu0 %v1074, 124
      %v1474 = vpop.permute.xlu0 %1473
      %1475 = vrot.lane.b32.xlu0 %v1076, 124
      %v1476 = vpop.permute.xlu0 %1475
      %1477 = vrot.lane.b32.xlu0 %v1078, 124
      %v1478 = vpop.permute.xlu0 %1477
      %1479 = vrot.lane.b32.xlu0 %v1080, 124
      %v1480 = vpop.permute.xlu0 %1479
      %1481 = vrot.lane.b32.xlu0 %v1082, 124
      %v1482 = vpop.permute.xlu0 %1481
      %1483 = vrot.lane.b32.xlu0 %v1084, 124
      %v1484 = vpop.permute.xlu0 %1483
      %1485 = vrot.lane.b32.xlu0 %v1086, 124
      %v1486 = vpop.permute.xlu0 %1485
      %1487 = vrot.lane.b32.xlu0 %v1088, 124
      %v1488 = vpop.permute.xlu0 %1487
      %1489 = vrot.lane.b32.xlu0 %v1090, 124
      %v1490 = vpop.permute.xlu0 %1489
      %1491 = vrot.lane.b32.xlu0 %v1092, 124
      %v1492 = vpop.permute.xlu0 %1491
      %1493 = vrot.lane.b32.xlu0 %v1094, 124
      %v1494 = vpop.permute.xlu0 %1493
      %1495 = vrot.lane.b32.xlu0 %v1096, 124
      %v1496 = vpop.permute.xlu0 %1495
      %1497 = vrot.lane.b32.xlu0 %v1098, 124
      %v1498 = vpop.permute.xlu0 %1497
      %1499 = vrot.lane.b32.xlu0 %v1100, 124
      %v1500 = vpop.permute.xlu0 %1499
      %1501 = vrot.lane.b32.xlu0 %v1102, 124
      %v1502 = vpop.permute.xlu0 %1501
      %1503 = vrot.lane.b32.xlu0 %v1104, 124
      %v1504 = vpop.permute.xlu0 %1503
      %1505 = vrot.lane.b32.xlu0 %v1106, 124
      %v1506 = vpop.permute.xlu0 %1505
      %1507 = vrot.lane.b32.xlu0 %v1108, 124
      %v1508 = vpop.permute.xlu0 %1507
      %1509 = vrot.lane.b32.xlu0 %v1110, 124
      %v1510 = vpop.permute.xlu0 %1509
      %1511 = vrot.lane.b32.xlu0 %v1112, 124
      %v1512 = vpop.permute.xlu0 %1511
      %1513 = vrot.lane.b32.xlu0 %v1114, 124
      %v1514 = vpop.permute.xlu0 %1513
      %1515 = vrot.lane.b32.xlu0 %v1116, 124
      %v1516 = vpop.permute.xlu0 %1515
      %1517 = vrot.lane.b32.xlu0 %v1118, 124
      %v1518 = vpop.permute.xlu0 %1517
      %1519 = vrot.lane.b32.xlu0 %v1120, 124
      %v1520 = vpop.permute.xlu0 %1519
      %1521 = vrot.lane.b32.xlu0 %v1122, 124
      %v1522 = vpop.permute.xlu0 %1521
      %1523 = vrot.lane.b32.xlu0 %v1124, 124
      %v1524 = vpop.permute.xlu0 %1523
      %1525 = vrot.lane.b32.xlu0 %v1126, 124
      %v1526 = vpop.permute.xlu0 %1525
      %1527 = vrot.lane.b32.xlu0 %v1128, 124
      %v1528 = vpop.permute.xlu0 %1527
      %1529 = vrot.lane.b32.xlu0 %v1130, 124
      %v1530 = vpop.permute.xlu0 %1529
      %1531 = vrot.lane.b32.xlu0 %v1132, 124
      %v1532 = vpop.permute.xlu0 %1531
      %1533 = vrot.lane.b32.xlu0 %v1134, 124
      %v1534 = vpop.permute.xlu0 %1533
      %1535 = vrot.lane.b32.xlu0 %v1136, 124
      %v1536 = vpop.permute.xlu0 %1535
      %1537 = vrot.lane.b32.xlu0 %v1138, 124
      %v1538 = vpop.permute.xlu0 %1537
      %1539 = vrot.lane.b32.xlu0 %v1140, 124
      %v1540 = vpop.permute.xlu0 %1539
      %1541 = vrot.lane.b32.xlu0 %v1142, 124
      %v1542 = vpop.permute.xlu0 %1541
      %1543 = vrot.lane.b32.xlu0 %v1144, 124
      %v1544 = vpop.permute.xlu0 %1543
      %1545 = vrot.lane.b32.xlu0 %v1146, 124
      %v1546 = vpop.permute.xlu0 %1545
      %1547 = vrot.lane.b32.xlu0 %v1148, 124
      %v1548 = vpop.permute.xlu0 %1547
      %1549 = vrot.lane.b32.xlu0 %v1150, 124
      %v1550 = vpop.permute.xlu0 %1549
      %1551 = vrot.lane.b32.xlu0 %v1152, 124
      %v1552 = vpop.permute.xlu0 %1551
      %1553 = vrot.lane.b32.xlu0 %v1422, 124
      %v1554 = vpop.permute.xlu0 %1553
      %1555 = vrot.lane.b32.xlu0 %v1424, 124
      %v1556 = vpop.permute.xlu0 %1555
      %1557 = vrot.lane.b32.xlu0 %v1426, 124
      %v1558 = vpop.permute.xlu0 %1557
      %1559 = vrot.lane.b32.xlu0 %v1428, 124
      %v1560 = vpop.permute.xlu0 %1559
      %v1627 = vadd.f32 %v1351, %v1430
      %v1628 = vadd.f32 %v1352, %v1432
      %v1629 = vadd.f32 %v1353, %v1434
      %v1630 = vadd.f32 %v1354, %v1436
      %v1631 = vadd.f32 %v1355, %v1438
      %v1632 = vadd.f32 %v1356, %v1440
      %v1633 = vadd.f32 %v1357, %v1442
      %v1634 = vadd.f32 %v1358, %v1444
      %v1635 = vadd.f32 %v1359, %v1446
      %v1636 = vadd.f32 %v1360, %v1448
      %v1637 = vadd.f32 %v1361, %v1450
      %v1638 = vadd.f32 %v1362, %v1452
      %v1639 = vadd.f32 %v1363, %v1454
      %v1640 = vadd.f32 %v1364, %v1456
      %v1641 = vadd.f32 %v1365, %v1458
      %v1642 = vadd.f32 %v1366, %v1460
      %v1643 = vadd.f32 %v1367, %v1462
      %v1644 = vadd.f32 %v1368, %v1464
      %v1645 = vadd.f32 %v1369, %v1466
      %v1646 = vadd.f32 %v1370, %v1468
      %v1647 = vadd.f32 %v1371, %v1470
      %v1648 = vadd.f32 %v1372, %v1472
      %v1649 = vadd.f32 %v1373, %v1474
      %v1650 = vadd.f32 %v1374, %v1476
      %v1651 = vadd.f32 %v1375, %v1478
      %v1652 = vadd.f32 %v1376, %v1480
      %v1653 = vadd.f32 %v1377, %v1482
      %v1654 = vadd.f32 %v1378, %v1484
      %v1655 = vadd.f32 %v1379, %v1486
      %v1656 = vadd.f32 %v1380, %v1488
      %v1657 = vadd.f32 %v1381, %v1490
      %v1658 = vadd.f32 %v1382, %v1492
      %v1659 = vadd.f32 %v1383, %v1494
      %v1660 = vadd.f32 %v1384, %v1496
      %v1661 = vadd.f32 %v1385, %v1498
      %v1662 = vadd.f32 %v1386, %v1500
      %v1663 = vadd.f32 %v1387, %v1502
      %v1664 = vadd.f32 %v1388, %v1504
      %v1665 = vadd.f32 %v1389, %v1506
      %v1666 = vadd.f32 %v1390, %v1508
      %v1667 = vadd.f32 %v1391, %v1510
      %v1668 = vadd.f32 %v1392, %v1512
      %v1669 = vadd.f32 %v1393, %v1514
      %v1670 = vadd.f32 %v1394, %v1516
      %v1671 = vadd.f32 %v1395, %v1518
      %v1672 = vadd.f32 %v1396, %v1520
      %v1673 = vadd.f32 %v1397, %v1522
      %v1674 = vadd.f32 %v1398, %v1524
      %v1675 = vadd.f32 %v1399, %v1526
      %v1676 = vadd.f32 %v1400, %v1528
      %v1677 = vadd.f32 %v1401, %v1530
      %v1678 = vadd.f32 %v1402, %v1532
      %v1679 = vadd.f32 %v1403, %v1534
      %v1680 = vadd.f32 %v1404, %v1536
      %v1681 = vadd.f32 %v1405, %v1538
      %v1682 = vadd.f32 %v1406, %v1540
      %v1683 = vadd.f32 %v1407, %v1542
      %v1684 = vadd.f32 %v1408, %v1544
      %v1685 = vadd.f32 %v1409, %v1546
      %v1686 = vadd.f32 %v1410, %v1548
      %v1687 = vadd.f32 %v1411, %v1550
      %v1688 = vadd.f32 %v1412, %v1552
      %v1689 = vadd.f32 %v1413, %v1554
      %v1690 = vadd.f32 %v1414, %v1556
      %v1691 = vadd.f32 %v1415, %v1558
      %v1692 = vadd.f32 %v1416, %v1560
      %vm1693 = vcmask 1045504
      %v1694 = vrot.slane %v683, 2
      %v1695 = vrot.slane %v686, 2
      %v1696 = vsel %vm1693, %v1694, %v1695
      %v1697 = vrot.slane %v691, 2
      %v1698 = vsel %vm1693, %v1695, %v1697
      %v1699 = vrot.slane %v694, 2
      %v1700 = vsel %vm1693, %v1697, %v1699
      %v1701 = vrot.slane %v699, 2
      %v1702 = vsel %vm1693, %v1699, %v1701
      %v1703 = vrot.slane %v702, 2
      %v1704 = vsel %vm1693, %v1701, %v1703
      %v1705 = vrot.slane %v707, 2
      %v1706 = vsel %vm1693, %v1703, %v1705
      %v1707 = vrot.slane %v710, 2
      %v1708 = vsel %vm1693, %v1705, %v1707
      %v1709 = vrot.slane %v715, 2
      %v1710 = vsel %vm1693, %v1707, %v1709
      %v1711 = vrot.slane %v718, 2
      %v1712 = vsel %vm1693, %v1709, %v1711
      %v1713 = vrot.slane %v723, 2
      %v1714 = vsel %vm1693, %v1711, %v1713
      %v1715 = vrot.slane %v726, 2
      %v1716 = vsel %vm1693, %v1713, %v1715
      %v1717 = vrot.slane %v731, 2
      %v1718 = vsel %vm1693, %v1715, %v1717
      %v1719 = vrot.slane %v734, 2
      %v1720 = vsel %vm1693, %v1717, %v1719
      %v1721 = vrot.slane %v739, 2
      %v1722 = vsel %vm1693, %v1719, %v1721
      %v1723 = vrot.slane %v742, 2
      %v1724 = vsel %vm1693, %v1721, %v1723
      %v1725 = vrot.slane %v747, 2
      %v1726 = vsel %vm1693, %v1723, %v1725
      %v1727 = vrot.slane %v750, 2
      %v1728 = vsel %vm1693, %v1725, %v1727
      %v1729 = vrot.slane %v755, 2
      %v1730 = vsel %vm1693, %v1727, %v1729
      %v1731 = vrot.slane %v758, 2
      %v1732 = vsel %vm1693, %v1729, %v1731
      %v1733 = vrot.slane %v763, 2
      %v1734 = vsel %vm1693, %v1731, %v1733
      %v1735 = vrot.slane %v766, 2
      %v1736 = vsel %vm1693, %v1733, %v1735
      %v1737 = vrot.slane %v771, 2
      %v1738 = vsel %vm1693, %v1735, %v1737
      %v1739 = vrot.slane %v774, 2
      %v1740 = vsel %vm1693, %v1737, %v1739
      %v1741 = vrot.slane %v779, 2
      %v1742 = vsel %vm1693, %v1739, %v1741
      %v1743 = vrot.slane %v782, 2
      %v1744 = vsel %vm1693, %v1741, %v1743
      %v1745 = vrot.slane %v787, 2
      %v1746 = vsel %vm1693, %v1743, %v1745
      %v1747 = vrot.slane %v790, 2
      %v1748 = vsel %vm1693, %v1745, %v1747
      %v1749 = vrot.slane %v795, 2
      %v1750 = vsel %vm1693, %v1747, %v1749
      %v1751 = vrot.slane %v798, 2
      %v1752 = vsel %vm1693, %v1749, %v1751
      %v1753 = vrot.slane %v803, 2
      %v1754 = vsel %vm1693, %v1751, %v1753
      %v1755 = vrot.slane %v806, 2
      %v1756 = vsel %vm1693, %v1753, %v1755
      %v1757 = vrot.slane %v811, 2
      %v1758 = vsel %vm1693, %v1755, %v1757
      %v1759 = vrot.slane %v814, 2
      %v1760 = vsel %vm1693, %v1757, %v1759
      %v1761 = vrot.slane %v819, 2
      %v1762 = vsel %vm1693, %v1759, %v1761
      %v1763 = vrot.slane %v822, 2
      %v1764 = vsel %vm1693, %v1761, %v1763
      %v1765 = vrot.slane %v827, 2
      %v1766 = vsel %vm1693, %v1763, %v1765
      %v1767 = vrot.slane %v830, 2
      %v1768 = vsel %vm1693, %v1765, %v1767
      %v1769 = vrot.slane %v835, 2
      %v1770 = vsel %vm1693, %v1767, %v1769
      %v1771 = vrot.slane %v838, 2
      %v1772 = vsel %vm1693, %v1769, %v1771
      %v1773 = vrot.slane %v843, 2
      %v1774 = vsel %vm1693, %v1771, %v1773
      %v1775 = vrot.slane %v846, 2
      %v1776 = vsel %vm1693, %v1773, %v1775
      %v1777 = vrot.slane %v851, 2
      %v1778 = vsel %vm1693, %v1775, %v1777
      %v1779 = vrot.slane %v854, 2
      %v1780 = vsel %vm1693, %v1777, %v1779
      %v1781 = vrot.slane %v859, 2
      %v1782 = vsel %vm1693, %v1779, %v1781
      %v1783 = vrot.slane %v862, 2
      %v1784 = vsel %vm1693, %v1781, %v1783
      %v1785 = vrot.slane %v867, 2
      %v1786 = vsel %vm1693, %v1783, %v1785
      %v1787 = vrot.slane %v870, 2
      %v1788 = vsel %vm1693, %v1785, %v1787
      %v1789 = vrot.slane %v875, 2
      %v1790 = vsel %vm1693, %v1787, %v1789
      %v1791 = vrot.slane %v878, 2
      %v1792 = vsel %vm1693, %v1789, %v1791
      %v1793 = vrot.slane %v883, 2
      %v1794 = vsel %vm1693, %v1791, %v1793
      %v1795 = vrot.slane %v886, 2
      %v1796 = vsel %vm1693, %v1793, %v1795
      %v1797 = vrot.slane %v891, 2
      %v1798 = vsel %vm1693, %v1795, %v1797
      %v1799 = vrot.slane %v894, 2
      %v1800 = vsel %vm1693, %v1797, %v1799
      %v1801 = vrot.slane %v899, 2
      %v1802 = vsel %vm1693, %v1799, %v1801
      %v1803 = vrot.slane %v902, 2
      %v1804 = vsel %vm1693, %v1801, %v1803
      %v1805 = vrot.slane %v907, 2
      %v1806 = vsel %vm1693, %v1803, %v1805
      %v1807 = vrot.slane %v910, 2
      %v1808 = vsel %vm1693, %v1805, %v1807
      %v1809 = vrot.slane %v915, 2
      %v1810 = vsel %vm1693, %v1807, %v1809
      %v1811 = vrot.slane %v918, 2
      %v1812 = vsel %vm1693, %v1809, %v1811
      %v1813 = vrot.slane %v923, 2
      %v1814 = vsel %vm1693, %v1811, %v1813
      %v1815 = vrot.slane %v926, 2
      %v1816 = vsel %vm1693, %v1813, %v1815
      %v1817 = vrot.slane %v931, 2
      %v1818 = vsel %vm1693, %v1815, %v1817
      %v1819 = vrot.slane %v934, 2
      %v1820 = vsel %vm1693, %v1817, %v1819
      %v1821 = vrot.slane %v939, 2
      %v1822 = vsel %vm1693, %v1819, %v1821
      %v1823 = vrot.slane %v942, 2
      %v1824 = vsel %vm1693, %v1821, %v1823
      %v1825 = vrot.slane %v947, 2
      %v1826 = vsel %vm1693, %v1823, %v1825
      %1827 = vrot.lane.b32.xlu0 %v1696, 122
      %v1828 = vpop.permute.xlu0 %1827
      %1829 = vrot.lane.b32.xlu0 %v1698, 122
      %v1830 = vpop.permute.xlu0 %1829
      %1831 = vrot.lane.b32.xlu0 %v1700, 122
      %v1832 = vpop.permute.xlu0 %1831
      %1833 = vrot.lane.b32.xlu0 %v1702, 122
      %v1834 = vpop.permute.xlu0 %1833
      %1835 = vrot.lane.b32.xlu0 %v1704, 122
      %v1836 = vpop.permute.xlu0 %1835
      %1837 = vrot.lane.b32.xlu0 %v1706, 122
      %v1838 = vpop.permute.xlu0 %1837
      %1839 = vrot.lane.b32.xlu0 %v1708, 122
      %v1840 = vpop.permute.xlu0 %1839
      %1841 = vrot.lane.b32.xlu0 %v1710, 122
      %v1842 = vpop.permute.xlu0 %1841
      %1843 = vrot.lane.b32.xlu0 %v1712, 122
      %v1844 = vpop.permute.xlu0 %1843
      %1845 = vrot.lane.b32.xlu0 %v1714, 122
      %v1846 = vpop.permute.xlu0 %1845
      %1847 = vrot.lane.b32.xlu0 %v1716, 122
      %v1848 = vpop.permute.xlu0 %1847
      %1849 = vrot.lane.b32.xlu0 %v1718, 122
      %v1850 = vpop.permute.xlu0 %1849
      %1851 = vrot.lane.b32.xlu0 %v1720, 122
      %v1852 = vpop.permute.xlu0 %1851
      %1853 = vrot.lane.b32.xlu0 %v1722, 122
      %v1854 = vpop.permute.xlu0 %1853
      %1855 = vrot.lane.b32.xlu0 %v1724, 122
      %v1856 = vpop.permute.xlu0 %1855
      %1857 = vrot.lane.b32.xlu0 %v1726, 122
      %v1858 = vpop.permute.xlu0 %1857
      %1859 = vrot.lane.b32.xlu0 %v1728, 122
      %v1860 = vpop.permute.xlu0 %1859
      %1861 = vrot.lane.b32.xlu0 %v1730, 122
      %v1862 = vpop.permute.xlu0 %1861
      %1863 = vrot.lane.b32.xlu0 %v1732, 122
      %v1864 = vpop.permute.xlu0 %1863
      %1865 = vrot.lane.b32.xlu0 %v1734, 122
      %v1866 = vpop.permute.xlu0 %1865
      %1867 = vrot.lane.b32.xlu0 %v1736, 122
      %v1868 = vpop.permute.xlu0 %1867
      %1869 = vrot.lane.b32.xlu0 %v1738, 122
      %v1870 = vpop.permute.xlu0 %1869
      %1871 = vrot.lane.b32.xlu0 %v1740, 122
      %v1872 = vpop.permute.xlu0 %1871
      %1873 = vrot.lane.b32.xlu0 %v1742, 122
      %v1874 = vpop.permute.xlu0 %1873
      %1875 = vrot.lane.b32.xlu0 %v1744, 122
      %v1876 = vpop.permute.xlu0 %1875
      %1877 = vrot.lane.b32.xlu0 %v1746, 122
      %v1878 = vpop.permute.xlu0 %1877
      %1879 = vrot.lane.b32.xlu0 %v1748, 122
      %v1880 = vpop.permute.xlu0 %1879
      %1881 = vrot.lane.b32.xlu0 %v1750, 122
      %v1882 = vpop.permute.xlu0 %1881
      %1883 = vrot.lane.b32.xlu0 %v1752, 122
      %v1884 = vpop.permute.xlu0 %1883
      %1885 = vrot.lane.b32.xlu0 %v1754, 122
      %v1886 = vpop.permute.xlu0 %1885
      %1887 = vrot.lane.b32.xlu0 %v1756, 122
      %v1888 = vpop.permute.xlu0 %1887
      %1889 = vrot.lane.b32.xlu0 %v1758, 122
      %v1890 = vpop.permute.xlu0 %1889
      %1891 = vrot.lane.b32.xlu0 %v1760, 122
      %v1892 = vpop.permute.xlu0 %1891
      %1893 = vrot.lane.b32.xlu0 %v1762, 122
      %v1894 = vpop.permute.xlu0 %1893
      %1895 = vrot.lane.b32.xlu0 %v1764, 122
      %v1896 = vpop.permute.xlu0 %1895
      %1897 = vrot.lane.b32.xlu0 %v1766, 122
      %v1898 = vpop.permute.xlu0 %1897
      %1899 = vrot.lane.b32.xlu0 %v1768, 122
      %v1900 = vpop.permute.xlu0 %1899
      %1901 = vrot.lane.b32.xlu0 %v1770, 122
      %v1902 = vpop.permute.xlu0 %1901
      %1903 = vrot.lane.b32.xlu0 %v1772, 122
      %v1904 = vpop.permute.xlu0 %1903
      %1905 = vrot.lane.b32.xlu0 %v1774, 122
      %v1906 = vpop.permute.xlu0 %1905
      %1907 = vrot.lane.b32.xlu0 %v1776, 122
      %v1908 = vpop.permute.xlu0 %1907
      %1909 = vrot.lane.b32.xlu0 %v1778, 122
      %v1910 = vpop.permute.xlu0 %1909
      %1911 = vrot.lane.b32.xlu0 %v1780, 122
      %v1912 = vpop.permute.xlu0 %1911
      %1913 = vrot.lane.b32.xlu0 %v1782, 122
      %v1914 = vpop.permute.xlu0 %1913
      %1915 = vrot.lane.b32.xlu0 %v1784, 122
      %v1916 = vpop.permute.xlu0 %1915
      %1917 = vrot.lane.b32.xlu0 %v1786, 122
      %v1918 = vpop.permute.xlu0 %1917
      %1919 = vrot.lane.b32.xlu0 %v1788, 122
      %v1920 = vpop.permute.xlu0 %1919
      %1921 = vrot.lane.b32.xlu0 %v1790, 122
      %v1922 = vpop.permute.xlu0 %1921
      %1923 = vrot.lane.b32.xlu0 %v1792, 122
      %v1924 = vpop.permute.xlu0 %1923
      %1925 = vrot.lane.b32.xlu0 %v1794, 122
      %v1926 = vpop.permute.xlu0 %1925
      %1927 = vrot.lane.b32.xlu0 %v1796, 122
      %v1928 = vpop.permute.xlu0 %1927
      %1929 = vrot.lane.b32.xlu0 %v1798, 122
      %v1930 = vpop.permute.xlu0 %1929
      %1931 = vrot.lane.b32.xlu0 %v1800, 122
      %v1932 = vpop.permute.xlu0 %1931
      %1933 = vrot.lane.b32.xlu0 %v1802, 122
      %v1934 = vpop.permute.xlu0 %1933
      %1935 = vrot.lane.b32.xlu0 %v1804, 122
      %v1936 = vpop.permute.xlu0 %1935
      %1937 = vrot.lane.b32.xlu0 %v1806, 122
      %v1938 = vpop.permute.xlu0 %1937
      %1939 = vrot.lane.b32.xlu0 %v1808, 122
      %v1940 = vpop.permute.xlu0 %1939
      %1941 = vrot.lane.b32.xlu0 %v1810, 122
      %v1942 = vpop.permute.xlu0 %1941
      %1943 = vrot.lane.b32.xlu0 %v1812, 122
      %v1944 = vpop.permute.xlu0 %1943
      %1945 = vrot.lane.b32.xlu0 %v1814, 122
      %v1946 = vpop.permute.xlu0 %1945
      %1947 = vrot.lane.b32.xlu0 %v1816, 122
      %v1948 = vpop.permute.xlu0 %1947
      %1949 = vrot.lane.b32.xlu0 %v1818, 122
      %v1950 = vpop.permute.xlu0 %1949
      %1951 = vrot.lane.b32.xlu0 %v1820, 122
      %v1952 = vpop.permute.xlu0 %1951
      %1953 = vrot.lane.b32.xlu0 %v1822, 122
      %v1954 = vpop.permute.xlu0 %1953
      %1955 = vrot.lane.b32.xlu0 %v1824, 122
      %v1956 = vpop.permute.xlu0 %1955
      %1957 = vrot.lane.b32.xlu0 %v1826, 122
      %v1958 = vpop.permute.xlu0 %1957
      %v2025 = vadd.f32 %v1627, %v1828
      %v2026 = vadd.f32 %v1628, %v1830
      %v2027 = vadd.f32 %v1629, %v1832
      %v2028 = vadd.f32 %v1630, %v1834
      %v2029 = vadd.f32 %v1631, %v1836
      %v2030 = vadd.f32 %v1632, %v1838
      %v2031 = vadd.f32 %v1633, %v1840
      %v2032 = vadd.f32 %v1634, %v1842
      %v2033 = vadd.f32 %v1635, %v1844
      %v2034 = vadd.f32 %v1636, %v1846
      %v2035 = vadd.f32 %v1637, %v1848
      %v2036 = vadd.f32 %v1638, %v1850
      %v2037 = vadd.f32 %v1639, %v1852
      %v2038 = vadd.f32 %v1640, %v1854
      %v2039 = vadd.f32 %v1641, %v1856
      %v2040 = vadd.f32 %v1642, %v1858
      %v2041 = vadd.f32 %v1643, %v1860
      %v2042 = vadd.f32 %v1644, %v1862
      %v2043 = vadd.f32 %v1645, %v1864
      %v2044 = vadd.f32 %v1646, %v1866
      %v2045 = vadd.f32 %v1647, %v1868
      %v2046 = vadd.f32 %v1648, %v1870
      %v2047 = vadd.f32 %v1649, %v1872
      %v2048 = vadd.f32 %v1650, %v1874
      %v2049 = vadd.f32 %v1651, %v1876
      %v2050 = vadd.f32 %v1652, %v1878
      %v2051 = vadd.f32 %v1653, %v1880
      %v2052 = vadd.f32 %v1654, %v1882
      %v2053 = vadd.f32 %v1655, %v1884
      %v2054 = vadd.f32 %v1656, %v1886
      %v2055 = vadd.f32 %v1657, %v1888
      %v2056 = vadd.f32 %v1658, %v1890
      %v2057 = vadd.f32 %v1659, %v1892
      %v2058 = vadd.f32 %v1660, %v1894
      %v2059 = vadd.f32 %v1661, %v1896
      %v2060 = vadd.f32 %v1662, %v1898
      %v2061 = vadd.f32 %v1663, %v1900
      %v2062 = vadd.f32 %v1664, %v1902
      %v2063 = vadd.f32 %v1665, %v1904
      %v2064 = vadd.f32 %v1666, %v1906
      %v2065 = vadd.f32 %v1667, %v1908
      %v2066 = vadd.f32 %v1668, %v1910
      %v2067 = vadd.f32 %v1669, %v1912
      %v2068 = vadd.f32 %v1670, %v1914
      %v2069 = vadd.f32 %v1671, %v1916
      %v2070 = vadd.f32 %v1672, %v1918
      %v2071 = vadd.f32 %v1673, %v1920
      %v2072 = vadd.f32 %v1674, %v1922
      %v2073 = vadd.f32 %v1675, %v1924
      %v2074 = vadd.f32 %v1676, %v1926
      %v2075 = vadd.f32 %v1677, %v1928
      %v2076 = vadd.f32 %v1678, %v1930
      %v2077 = vadd.f32 %v1679, %v1932
      %v2078 = vadd.f32 %v1680, %v1934
      %v2079 = vadd.f32 %v1681, %v1936
      %v2080 = vadd.f32 %v1682, %v1938
      %v2081 = vadd.f32 %v1683, %v1940
      %v2082 = vadd.f32 %v1684, %v1942
      %v2083 = vadd.f32 %v1685, %v1944
      %v2084 = vadd.f32 %v1686, %v1946
      %v2085 = vadd.f32 %v1687, %v1948
      %v2086 = vadd.f32 %v1688, %v1950
      %v2087 = vadd.f32 %v1689, %v1952
      %v2088 = vadd.f32 %v1690, %v1954
      %v2089 = vadd.f32 %v1691, %v1956
      %v2090 = vadd.f32 %v1692, %v1958
      %v2091 = vmax.f32 %v2025, 0.0
      %v2092 = vmax.f32 %v2026, 0.0
      %v2093 = vmax.f32 %v2027, 0.0
      %v2094 = vmax.f32 %v2028, 0.0
      %v2095 = vmax.f32 %v2029, 0.0
      %v2096 = vmax.f32 %v2030, 0.0
      %v2097 = vmax.f32 %v2031, 0.0
      %v2098 = vmax.f32 %v2032, 0.0
      %v2099 = vmax.f32 %v2033, 0.0
      %v2100 = vmax.f32 %v2034, 0.0
      %v2101 = vmax.f32 %v2035, 0.0
      %v2102 = vmax.f32 %v2036, 0.0
      %v2103 = vmax.f32 %v2037, 0.0
      %v2104 = vmax.f32 %v2038, 0.0
      %v2105 = vmax.f32 %v2039, 0.0
      %v2106 = vmax.f32 %v2040, 0.0
      %v2107 = vmax.f32 %v2041, 0.0
      %v2108 = vmax.f32 %v2042, 0.0
      %v2109 = vmax.f32 %v2043, 0.0
      %v2110 = vmax.f32 %v2044, 0.0
      %v2111 = vmax.f32 %v2045, 0.0
      %v2112 = vmax.f32 %v2046, 0.0
      %v2113 = vmax.f32 %v2047, 0.0
      %v2114 = vmax.f32 %v2048, 0.0
      %v2115 = vmax.f32 %v2049, 0.0
      %v2116 = vmax.f32 %v2050, 0.0
      %v2117 = vmax.f32 %v2051, 0.0
      %v2118 = vmax.f32 %v2052, 0.0
      %v2119 = vmax.f32 %v2053, 0.0
      %v2120 = vmax.f32 %v2054, 0.0
      %v2121 = vmax.f32 %v2055, 0.0
      %v2122 = vmax.f32 %v2056, 0.0
      %v2123 = vmax.f32 %v2057, 0.0
      %v2124 = vmax.f32 %v2058, 0.0
      %v2125 = vmax.f32 %v2059, 0.0
      %v2126 = vmax.f32 %v2060, 0.0
      %v2127 = vmax.f32 %v2061, 0.0
      %v2128 = vmax.f32 %v2062, 0.0
      %v2129 = vmax.f32 %v2063, 0.0
      %v2130 = vmax.f32 %v2064, 0.0
      %v2131 = vmax.f32 %v2065, 0.0
      %v2132 = vmax.f32 %v2066, 0.0
      %v2133 = vmax.f32 %v2067, 0.0
      %v2134 = vmax.f32 %v2068, 0.0
      %v2135 = vmax.f32 %v2069, 0.0
      %v2136 = vmax.f32 %v2070, 0.0
      %v2137 = vmax.f32 %v2071, 0.0
      %v2138 = vmax.f32 %v2072, 0.0
      %v2139 = vmax.f32 %v2073, 0.0
      %v2140 = vmax.f32 %v2074, 0.0
      %v2141 = vmax.f32 %v2075, 0.0
      %v2142 = vmax.f32 %v2076, 0.0
      %v2143 = vmax.f32 %v2077, 0.0
      %v2144 = vmax.f32 %v2078, 0.0
      %v2145 = vmax.f32 %v2079, 0.0
      %v2146 = vmax.f32 %v2080, 0.0
      %v2147 = vmax.f32 %v2081, 0.0
      %v2148 = vmax.f32 %v2082, 0.0
      %v2149 = vmax.f32 %v2083, 0.0
      %v2150 = vmax.f32 %v2084, 0.0
      %v2151 = vmax.f32 %v2085, 0.0
      %v2152 = vmax.f32 %v2086, 0.0
      %v2153 = vmax.f32 %v2087, 0.0
      %v2154 = vmax.f32 %v2088, 0.0
      %v2155 = vmax.f32 %v2089, 0.0
      %v2156 = vmax.f32 %v2090, 0.0
      %v2157 = vld [vmem:[%s3] sm:$0x1]
      %v2159 = vlaneseq
      %v2160 = vshrl.u32 %v2159, 7
      %v2161 = vsub.s32 0, %v2160
      %v2162 = vrot.slane %v2157, %v2161
      %v2164 = vmul.f32 %v2091, %v2162
      %v2165 = vmul.f32 %v2092, %v2162
      %v2166 = vmul.f32 %v2093, %v2162
      %v2167 = vmul.f32 %v2094, %v2162
      %v2168 = vmul.f32 %v2095, %v2162
      %v2169 = vmul.f32 %v2096, %v2162
      %v2170 = vmul.f32 %v2097, %v2162
      %v2171 = vmul.f32 %v2098, %v2162
      %v2172 = vmul.f32 %v2099, %v2162
      %v2173 = vmul.f32 %v2100, %v2162
      %v2174 = vmul.f32 %v2101, %v2162
      %v2175 = vmul.f32 %v2102, %v2162
      %v2176 = vmul.f32 %v2103, %v2162
      %v2177 = vmul.f32 %v2104, %v2162
      %v2178 = vmul.f32 %v2105, %v2162
      %v2179 = vmul.f32 %v2106, %v2162
      %v2180 = vmul.f32 %v2107, %v2162
      %v2181 = vmul.f32 %v2108, %v2162
      %v2182 = vmul.f32 %v2109, %v2162
      %v2183 = vmul.f32 %v2110, %v2162
      %v2184 = vmul.f32 %v2111, %v2162
      %v2185 = vmul.f32 %v2112, %v2162
      %v2186 = vmul.f32 %v2113, %v2162
      %v2187 = vmul.f32 %v2114, %v2162
      %v2188 = vmul.f32 %v2115, %v2162
      %v2189 = vmul.f32 %v2116, %v2162
      %v2190 = vmul.f32 %v2117, %v2162
      %v2191 = vmul.f32 %v2118, %v2162
      %v2192 = vmul.f32 %v2119, %v2162
      %v2193 = vmul.f32 %v2120, %v2162
      %v2194 = vmul.f32 %v2121, %v2162
      %v2195 = vmul.f32 %v2122, %v2162
      %v2196 = vmul.f32 %v2123, %v2162
      %v2197 = vmul.f32 %v2124, %v2162
      %v2198 = vmul.f32 %v2125, %v2162
      %v2199 = vmul.f32 %v2126, %v2162
      %v2200 = vmul.f32 %v2127, %v2162
      %v2201 = vmul.f32 %v2128, %v2162
      %v2202 = vmul.f32 %v2129, %v2162
      %v2203 = vmul.f32 %v2130, %v2162
      %v2204 = vmul.f32 %v2131, %v2162
      %v2205 = vmul.f32 %v2132, %v2162
      %v2206 = vmul.f32 %v2133, %v2162
      %v2207 = vmul.f32 %v2134, %v2162
      %v2208 = vmul.f32 %v2135, %v2162
      %v2209 = vmul.f32 %v2136, %v2162
      %v2210 = vmul.f32 %v2137, %v2162
      %v2211 = vmul.f32 %v2138, %v2162
      %v2212 = vmul.f32 %v2139, %v2162
      %v2213 = vmul.f32 %v2140, %v2162
      %v2214 = vmul.f32 %v2141, %v2162
      %v2215 = vmul.f32 %v2142, %v2162
      %v2216 = vmul.f32 %v2143, %v2162
      %v2217 = vmul.f32 %v2144, %v2162
      %v2218 = vmul.f32 %v2145, %v2162
      %v2219 = vmul.f32 %v2146, %v2162
      %v2220 = vmul.f32 %v2147, %v2162
      %v2221 = vmul.f32 %v2148, %v2162
      %v2222 = vmul.f32 %v2149, %v2162
      %v2223 = vmul.f32 %v2150, %v2162
      %v2224 = vmul.f32 %v2151, %v2162
      %v2225 = vmul.f32 %v2152, %v2162
      %v2226 = vmul.f32 %v2153, %v2162
      %v2227 = vmul.f32 %v2154, %v2162
      %v2228 = vmul.f32 %v2155, %v2162
      %v2229 = vmul.f32 %v2156, %v2162
      %vm2230 = vcmask 15360
      %v2231 = vsel %vm2230, %v2164, 0.0
      %2232 = vadd.xlane.f32.xlu0 %v2231
      %v2233 = vpop.xlane.xlu0 %2232
      %v2234 = vsel %vm2230, %v2165, 0.0
      %2235 = vadd.xlane.f32.xlu0 %v2234
      %v2236 = vpop.xlane.xlu0 %2235
      %v2237 = vsel %vm2230, %v2166, 0.0
      %2238 = vadd.xlane.f32.xlu0 %v2237
      %v2239 = vpop.xlane.xlu0 %2238
      %v2240 = vsel %vm2230, %v2167, 0.0
      %2241 = vadd.xlane.f32.xlu0 %v2240
      %v2242 = vpop.xlane.xlu0 %2241
      %v2243 = vsel %vm2230, %v2168, 0.0
      %2244 = vadd.xlane.f32.xlu0 %v2243
      %v2245 = vpop.xlane.xlu0 %2244
      %v2246 = vsel %vm2230, %v2169, 0.0
      %2247 = vadd.xlane.f32.xlu0 %v2246
      %v2248 = vpop.xlane.xlu0 %2247
      %v2249 = vsel %vm2230, %v2170, 0.0
      %2250 = vadd.xlane.f32.xlu0 %v2249
      %v2251 = vpop.xlane.xlu0 %2250
      %v2252 = vsel %vm2230, %v2171, 0.0
      %2253 = vadd.xlane.f32.xlu0 %v2252
      %v2254 = vpop.xlane.xlu0 %2253
      %v2255 = vsel %vm2230, %v2172, 0.0
      %2256 = vadd.xlane.f32.xlu0 %v2255
      %v2257 = vpop.xlane.xlu0 %2256
      %v2258 = vsel %vm2230, %v2173, 0.0
      %2259 = vadd.xlane.f32.xlu0 %v2258
      %v2260 = vpop.xlane.xlu0 %2259
      %v2261 = vsel %vm2230, %v2174, 0.0
      %2262 = vadd.xlane.f32.xlu0 %v2261
      %v2263 = vpop.xlane.xlu0 %2262
      %v2264 = vsel %vm2230, %v2175, 0.0
      %2265 = vadd.xlane.f32.xlu0 %v2264
      %v2266 = vpop.xlane.xlu0 %2265
      %v2267 = vsel %vm2230, %v2176, 0.0
      %2268 = vadd.xlane.f32.xlu0 %v2267
      %v2269 = vpop.xlane.xlu0 %2268
      %v2270 = vsel %vm2230, %v2177, 0.0
      %2271 = vadd.xlane.f32.xlu0 %v2270
      %v2272 = vpop.xlane.xlu0 %2271
      %v2273 = vsel %vm2230, %v2178, 0.0
      %2274 = vadd.xlane.f32.xlu0 %v2273
      %v2275 = vpop.xlane.xlu0 %2274
      %v2276 = vsel %vm2230, %v2179, 0.0
      %2277 = vadd.xlane.f32.xlu0 %v2276
      %v2278 = vpop.xlane.xlu0 %2277
      %v2279 = vsel %vm2230, %v2180, 0.0
      %2280 = vadd.xlane.f32.xlu0 %v2279
      %v2281 = vpop.xlane.xlu0 %2280
      %v2282 = vsel %vm2230, %v2181, 0.0
      %2283 = vadd.xlane.f32.xlu0 %v2282
      %v2284 = vpop.xlane.xlu0 %2283
      %v2285 = vsel %vm2230, %v2182, 0.0
      %2286 = vadd.xlane.f32.xlu0 %v2285
      %v2287 = vpop.xlane.xlu0 %2286
      %v2288 = vsel %vm2230, %v2183, 0.0
      %2289 = vadd.xlane.f32.xlu0 %v2288
      %v2290 = vpop.xlane.xlu0 %2289
      %v2291 = vsel %vm2230, %v2184, 0.0
      %2292 = vadd.xlane.f32.xlu0 %v2291
      %v2293 = vpop.xlane.xlu0 %2292
      %v2294 = vsel %vm2230, %v2185, 0.0
      %2295 = vadd.xlane.f32.xlu0 %v2294
      %v2296 = vpop.xlane.xlu0 %2295
      %v2297 = vsel %vm2230, %v2186, 0.0
      %2298 = vadd.xlane.f32.xlu0 %v2297
      %v2299 = vpop.xlane.xlu0 %2298
      %v2300 = vsel %vm2230, %v2187, 0.0
      %2301 = vadd.xlane.f32.xlu0 %v2300
      %v2302 = vpop.xlane.xlu0 %2301
      %v2303 = vsel %vm2230, %v2188, 0.0
      %2304 = vadd.xlane.f32.xlu0 %v2303
      %v2305 = vpop.xlane.xlu0 %2304
      %v2306 = vsel %vm2230, %v2189, 0.0
      %2307 = vadd.xlane.f32.xlu0 %v2306
      %v2308 = vpop.xlane.xlu0 %2307
      %v2309 = vsel %vm2230, %v2190, 0.0
      %2310 = vadd.xlane.f32.xlu0 %v2309
      %v2311 = vpop.xlane.xlu0 %2310
      %v2312 = vsel %vm2230, %v2191, 0.0
      %2313 = vadd.xlane.f32.xlu0 %v2312
      %v2314 = vpop.xlane.xlu0 %2313
      %v2315 = vsel %vm2230, %v2192, 0.0
      %2316 = vadd.xlane.f32.xlu0 %v2315
      %v2317 = vpop.xlane.xlu0 %2316
      %v2318 = vsel %vm2230, %v2193, 0.0
      %2319 = vadd.xlane.f32.xlu0 %v2318
      %v2320 = vpop.xlane.xlu0 %2319
      %v2321 = vsel %vm2230, %v2194, 0.0
      %2322 = vadd.xlane.f32.xlu0 %v2321
      %v2323 = vpop.xlane.xlu0 %2322
      %v2324 = vsel %vm2230, %v2195, 0.0
      %2325 = vadd.xlane.f32.xlu0 %v2324
      %v2326 = vpop.xlane.xlu0 %2325
      %v2327 = vsel %vm2230, %v2196, 0.0
      %2328 = vadd.xlane.f32.xlu0 %v2327
      %v2329 = vpop.xlane.xlu0 %2328
      %v2330 = vsel %vm2230, %v2197, 0.0
      %2331 = vadd.xlane.f32.xlu0 %v2330
      %v2332 = vpop.xlane.xlu0 %2331
      %v2333 = vsel %vm2230, %v2198, 0.0
      %2334 = vadd.xlane.f32.xlu0 %v2333
      %v2335 = vpop.xlane.xlu0 %2334
      %v2336 = vsel %vm2230, %v2199, 0.0
      %2337 = vadd.xlane.f32.xlu0 %v2336
      %v2338 = vpop.xlane.xlu0 %2337
      %v2339 = vsel %vm2230, %v2200, 0.0
      %2340 = vadd.xlane.f32.xlu0 %v2339
      %v2341 = vpop.xlane.xlu0 %2340
      %v2342 = vsel %vm2230, %v2201, 0.0
      %2343 = vadd.xlane.f32.xlu0 %v2342
      %v2344 = vpop.xlane.xlu0 %2343
      %v2345 = vsel %vm2230, %v2202, 0.0
      %2346 = vadd.xlane.f32.xlu0 %v2345
      %v2347 = vpop.xlane.xlu0 %2346
      %v2348 = vsel %vm2230, %v2203, 0.0
      %2349 = vadd.xlane.f32.xlu0 %v2348
      %v2350 = vpop.xlane.xlu0 %2349
      %v2351 = vsel %vm2230, %v2204, 0.0
      %2352 = vadd.xlane.f32.xlu0 %v2351
      %v2353 = vpop.xlane.xlu0 %2352
      %v2354 = vsel %vm2230, %v2205, 0.0
      %2355 = vadd.xlane.f32.xlu0 %v2354
      %v2356 = vpop.xlane.xlu0 %2355
      %v2357 = vsel %vm2230, %v2206, 0.0
      %2358 = vadd.xlane.f32.xlu0 %v2357
      %v2359 = vpop.xlane.xlu0 %2358
      %v2360 = vsel %vm2230, %v2207, 0.0
      %2361 = vadd.xlane.f32.xlu0 %v2360
      %v2362 = vpop.xlane.xlu0 %2361
      %v2363 = vsel %vm2230, %v2208, 0.0
      %2364 = vadd.xlane.f32.xlu0 %v2363
      %v2365 = vpop.xlane.xlu0 %2364
      %v2366 = vsel %vm2230, %v2209, 0.0
      %2367 = vadd.xlane.f32.xlu0 %v2366
      %v2368 = vpop.xlane.xlu0 %2367
      %v2369 = vsel %vm2230, %v2210, 0.0
      %2370 = vadd.xlane.f32.xlu0 %v2369
      %v2371 = vpop.xlane.xlu0 %2370
      %v2372 = vsel %vm2230, %v2211, 0.0
      %2373 = vadd.xlane.f32.xlu0 %v2372
      %v2374 = vpop.xlane.xlu0 %2373
      %v2375 = vsel %vm2230, %v2212, 0.0
      %2376 = vadd.xlane.f32.xlu0 %v2375
      %v2377 = vpop.xlane.xlu0 %2376
      %v2378 = vsel %vm2230, %v2213, 0.0
      %2379 = vadd.xlane.f32.xlu0 %v2378
      %v2380 = vpop.xlane.xlu0 %2379
      %v2381 = vsel %vm2230, %v2214, 0.0
      %2382 = vadd.xlane.f32.xlu0 %v2381
      %v2383 = vpop.xlane.xlu0 %2382
      %v2384 = vsel %vm2230, %v2215, 0.0
      %2385 = vadd.xlane.f32.xlu0 %v2384
      %v2386 = vpop.xlane.xlu0 %2385
      %v2387 = vsel %vm2230, %v2216, 0.0
      %2388 = vadd.xlane.f32.xlu0 %v2387
      %v2389 = vpop.xlane.xlu0 %2388
      %v2390 = vsel %vm2230, %v2217, 0.0
      %2391 = vadd.xlane.f32.xlu0 %v2390
      %v2392 = vpop.xlane.xlu0 %2391
      %v2393 = vsel %vm2230, %v2218, 0.0
      %2394 = vadd.xlane.f32.xlu0 %v2393
      %v2395 = vpop.xlane.xlu0 %2394
      %v2396 = vsel %vm2230, %v2219, 0.0
      %2397 = vadd.xlane.f32.xlu0 %v2396
      %v2398 = vpop.xlane.xlu0 %2397
      %v2399 = vsel %vm2230, %v2220, 0.0
      %2400 = vadd.xlane.f32.xlu0 %v2399
      %v2401 = vpop.xlane.xlu0 %2400
      %v2402 = vsel %vm2230, %v2221, 0.0
      %2403 = vadd.xlane.f32.xlu0 %v2402
      %v2404 = vpop.xlane.xlu0 %2403
      %v2405 = vsel %vm2230, %v2222, 0.0
      %2406 = vadd.xlane.f32.xlu0 %v2405
      %v2407 = vpop.xlane.xlu0 %2406
      %v2408 = vsel %vm2230, %v2223, 0.0
      %2409 = vadd.xlane.f32.xlu0 %v2408
      %v2410 = vpop.xlane.xlu0 %2409
      %v2411 = vsel %vm2230, %v2224, 0.0
      %2412 = vadd.xlane.f32.xlu0 %v2411
      %v2413 = vpop.xlane.xlu0 %2412
      %v2414 = vsel %vm2230, %v2225, 0.0
      %2415 = vadd.xlane.f32.xlu0 %v2414
      %v2416 = vpop.xlane.xlu0 %2415
      %v2417 = vsel %vm2230, %v2226, 0.0
      %2418 = vadd.xlane.f32.xlu0 %v2417
      %v2419 = vpop.xlane.xlu0 %2418
      %v2420 = vsel %vm2230, %v2227, 0.0
      %2421 = vadd.xlane.f32.xlu0 %v2420
      %v2422 = vpop.xlane.xlu0 %2421
      %v2423 = vsel %vm2230, %v2228, 0.0
      %2424 = vadd.xlane.f32.xlu0 %v2423
      %v2425 = vpop.xlane.xlu0 %2424
      %v2426 = vsel %vm2230, %v2229, 0.0
      %2427 = vadd.xlane.f32.xlu0 %v2426
      %v2428 = vpop.xlane.xlu0 %2427
      %v2429 = vlaneseq
      %v2430 = vshrl.u32 %v2429, 7
      %v2431 = vadd.s32 %v2430, 8
      %v2432 = vadd.s32 %v2430, 16
      %v2433 = vadd.s32 %v2430, 24
      %v2434 = vadd.s32 %v2430, 32
      %v2435 = vadd.s32 %v2430, 40
      %v2436 = vadd.s32 %v2430, 48
      %v2437 = vadd.s32 %v2430, 56
      %v2438 = vadd.s32 %v2430, 64
      %v2439 = vadd.s32 %v2430, 72
      %v2440 = vadd.s32 %v2430, 80
      %v2441 = vadd.s32 %v2430, 88
      %v2442 = vadd.s32 %v2430, 96
      %v2443 = vadd.s32 %v2430, 104
      %v2444 = vadd.s32 %v2430, 112
      %v2445 = vadd.s32 %v2430, 120
      %v2446 = vadd.s32 %v2430, 128
      %v2447 = vadd.s32 %v2430, 136
      %v2448 = vadd.s32 %v2430, 144
      %v2449 = vadd.s32 %v2430, 152
      %v2450 = vadd.s32 %v2430, 160
      %v2451 = vadd.s32 %v2430, 168
      %v2452 = vadd.s32 %v2430, 176
      %v2453 = vadd.s32 %v2430, 184
      %v2454 = vadd.s32 %v2430, 192
      %v2455 = vadd.s32 %v2430, 200
      %v2456 = vadd.s32 %v2430, 208
      %v2457 = vadd.s32 %v2430, 216
      %v2458 = vadd.s32 %v2430, 224
      %v2459 = vadd.s32 %v2430, 232
      %v2460 = vadd.s32 %v2430, 240
      %v2461 = vadd.s32 %v2430, 248
      %v2462 = vadd.s32 %v2430, 256
      %v2463 = vadd.s32 %v2430, 264
      %v2464 = vadd.s32 %v2430, 272
      %v2465 = vadd.s32 %v2430, 280
      %v2466 = vadd.s32 %v2430, 288
      %v2467 = vadd.s32 %v2430, 296
      %v2468 = vadd.s32 %v2430, 304
      %v2469 = vadd.s32 %v2430, 312
      %v2470 = vadd.s32 %v2430, 320
      %v2471 = vadd.s32 %v2430, 328
      %v2472 = vadd.s32 %v2430, 336
      %v2473 = vadd.s32 %v2430, 344
      %v2474 = vadd.s32 %v2430, 352
      %v2475 = vadd.s32 %v2430, 360
      %v2476 = vadd.s32 %v2430, 368
      %v2477 = vadd.s32 %v2430, 376
      %v2478 = vadd.s32 %v2430, 384
      %v2479 = vadd.s32 %v2430, 392
      %v2480 = vadd.s32 %v2430, 400
      %v2481 = vadd.s32 %v2430, 408
      %v2482 = vadd.s32 %v2430, 416
      %v2483 = vadd.s32 %v2430, 424
      %v2484 = vadd.s32 %v2430, 432
      %v2485 = vadd.s32 %v2430, 440
      %v2486 = vadd.s32 %v2430, 448
      %v2487 = vadd.s32 %v2430, 456
      %v2488 = vadd.s32 %v2430, 464
      %v2489 = vadd.s32 %v2430, 472
      %v2490 = vadd.s32 %v2430, 480
      %v2491 = vadd.s32 %v2430, 488
      %v2492 = vadd.s32 %v2430, 496
      %v2493 = vadd.s32 %v2430, 504
      %v2494 = vadd.s32 %v2430, 512
      %v2495 = vadd.s32 %v2430, 520
      %vm2496 = vcmp.lt.s32.totalorder %v2430, 0
      %v2497 = vsub.s32 0, %v2430
      %v2498 = vsel %vm2496, %v2497, %v2430
      %v2499 = vmul.u32.u64.compose %v2498, 4164816772
      %v2500 = vextract.low.u32 %v2499
      %v2501 = vextract.high.u32 %v2499
      %v2502 = vshrl.u32 %v2501, 5
      %v2503 = vmul.u32 %v2502, 33
      %v2504 = vsub.s32 %v2498, %v2503
      %v2505 = vsub.s32 0, %v2504
      %v2506 = vsel %vm2496, %v2505, %v2504
      %vm2507 = vcmp.lt.s32.totalorder %v2431, 0
      %v2508 = vsub.s32 0, %v2431
      %v2509 = vsel %vm2507, %v2508, %v2431
      %v2510 = vmul.u32.u64.compose %v2509, 4164816772
      %v2511 = vextract.low.u32 %v2510
      %v2512 = vextract.high.u32 %v2510
      %v2513 = vshrl.u32 %v2512, 5
      %v2514 = vmul.u32 %v2513, 33
      %v2515 = vsub.s32 %v2509, %v2514
      %v2516 = vsub.s32 0, %v2515
      %v2517 = vsel %vm2507, %v2516, %v2515
      %vm2518 = vcmp.lt.s32.totalorder %v2432, 0
      %v2519 = vsub.s32 0, %v2432
      %v2520 = vsel %vm2518, %v2519, %v2432
      %v2521 = vmul.u32.u64.compose %v2520, 4164816772
      %v2522 = vextract.low.u32 %v2521
      %v2523 = vextract.high.u32 %v2521
      %v2524 = vshrl.u32 %v2523, 5
      %v2525 = vmul.u32 %v2524, 33
      %v2526 = vsub.s32 %v2520, %v2525
      %v2527 = vsub.s32 0, %v2526
      %v2528 = vsel %vm2518, %v2527, %v2526
      %vm2529 = vcmp.lt.s32.totalorder %v2433, 0
      %v2530 = vsub.s32 0, %v2433
      %v2531 = vsel %vm2529, %v2530, %v2433
      %v2532 = vmul.u32.u64.compose %v2531, 4164816772
      %v2533 = vextract.low.u32 %v2532
      %v2534 = vextract.high.u32 %v2532
      %v2535 = vshrl.u32 %v2534, 5
      %v2536 = vmul.u32 %v2535, 33
      %v2537 = vsub.s32 %v2531, %v2536
      %v2538 = vsub.s32 0, %v2537
      %v2539 = vsel %vm2529, %v2538, %v2537
      %vm2540 = vcmp.lt.s32.totalorder %v2434, 0
      %v2541 = vsub.s32 0, %v2434
      %v2542 = vsel %vm2540, %v2541, %v2434
      %v2543 = vmul.u32.u64.compose %v2542, 4164816772
      %v2544 = vextract.low.u32 %v2543
      %v2545 = vextract.high.u32 %v2543
      %v2546 = vshrl.u32 %v2545, 5
      %v2547 = vmul.u32 %v2546, 33
      %v2548 = vsub.s32 %v2542, %v2547
      %v2549 = vsub.s32 0, %v2548
      %v2550 = vsel %vm2540, %v2549, %v2548
      %vm2551 = vcmp.lt.s32.totalorder %v2435, 0
      %v2552 = vsub.s32 0, %v2435
      %v2553 = vsel %vm2551, %v2552, %v2435
      %v2554 = vmul.u32.u64.compose %v2553, 4164816772
      %v2555 = vextract.low.u32 %v2554
      %v2556 = vextract.high.u32 %v2554
      %v2557 = vshrl.u32 %v2556, 5
      %v2558 = vmul.u32 %v2557, 33
      %v2559 = vsub.s32 %v2553, %v2558
      %v2560 = vsub.s32 0, %v2559
      %v2561 = vsel %vm2551, %v2560, %v2559
      %vm2562 = vcmp.lt.s32.totalorder %v2436, 0
      %v2563 = vsub.s32 0, %v2436
      %v2564 = vsel %vm2562, %v2563, %v2436
      %v2565 = vmul.u32.u64.compose %v2564, 4164816772
      %v2566 = vextract.low.u32 %v2565
      %v2567 = vextract.high.u32 %v2565
      %v2568 = vshrl.u32 %v2567, 5
      %v2569 = vmul.u32 %v2568, 33
      %v2570 = vsub.s32 %v2564, %v2569
      %v2571 = vsub.s32 0, %v2570
      %v2572 = vsel %vm2562, %v2571, %v2570
      %vm2573 = vcmp.lt.s32.totalorder %v2437, 0
      %v2574 = vsub.s32 0, %v2437
      %v2575 = vsel %vm2573, %v2574, %v2437
      %v2576 = vmul.u32.u64.compose %v2575, 4164816772
      %v2577 = vextract.low.u32 %v2576
      %v2578 = vextract.high.u32 %v2576
      %v2579 = vshrl.u32 %v2578, 5
      %v2580 = vmul.u32 %v2579, 33
      %v2581 = vsub.s32 %v2575, %v2580
      %v2582 = vsub.s32 0, %v2581
      %v2583 = vsel %vm2573, %v2582, %v2581
      %vm2584 = vcmp.lt.s32.totalorder %v2438, 0
      %v2585 = vsub.s32 0, %v2438
      %v2586 = vsel %vm2584, %v2585, %v2438
      %v2587 = vmul.u32.u64.compose %v2586, 4164816772
      %v2588 = vextract.low.u32 %v2587
      %v2589 = vextract.high.u32 %v2587
      %v2590 = vshrl.u32 %v2589, 5
      %v2591 = vmul.u32 %v2590, 33
      %v2592 = vsub.s32 %v2586, %v2591
      %v2593 = vsub.s32 0, %v2592
      %v2594 = vsel %vm2584, %v2593, %v2592
      %vm2595 = vcmp.lt.s32.totalorder %v2439, 0
      %v2596 = vsub.s32 0, %v2439
      %v2597 = vsel %vm2595, %v2596, %v2439
      %v2598 = vmul.u32.u64.compose %v2597, 4164816772
      %v2599 = vextract.low.u32 %v2598
      %v2600 = vextract.high.u32 %v2598
      %v2601 = vshrl.u32 %v2600, 5
      %v2602 = vmul.u32 %v2601, 33
      %v2603 = vsub.s32 %v2597, %v2602
      %v2604 = vsub.s32 0, %v2603
      %v2605 = vsel %vm2595, %v2604, %v2603
      %vm2606 = vcmp.lt.s32.totalorder %v2440, 0
      %v2607 = vsub.s32 0, %v2440
      %v2608 = vsel %vm2606, %v2607, %v2440
      %v2609 = vmul.u32.u64.compose %v2608, 4164816772
      %v2610 = vextract.low.u32 %v2609
      %v2611 = vextract.high.u32 %v2609
      %v2612 = vshrl.u32 %v2611, 5
      %v2613 = vmul.u32 %v2612, 33
      %v2614 = vsub.s32 %v2608, %v2613
      %v2615 = vsub.s32 0, %v2614
      %v2616 = vsel %vm2606, %v2615, %v2614
      %vm2617 = vcmp.lt.s32.totalorder %v2441, 0
      %v2618 = vsub.s32 0, %v2441
      %v2619 = vsel %vm2617, %v2618, %v2441
      %v2620 = vmul.u32.u64.compose %v2619, 4164816772
      %v2621 = vextract.low.u32 %v2620
      %v2622 = vextract.high.u32 %v2620
      %v2623 = vshrl.u32 %v2622, 5
      %v2624 = vmul.u32 %v2623, 33
      %v2625 = vsub.s32 %v2619, %v2624
      %v2626 = vsub.s32 0, %v2625
      %v2627 = vsel %vm2617, %v2626, %v2625
      %vm2628 = vcmp.lt.s32.totalorder %v2442, 0
      %v2629 = vsub.s32 0, %v2442
      %v2630 = vsel %vm2628, %v2629, %v2442
      %v2631 = vmul.u32.u64.compose %v2630, 4164816772
      %v2632 = vextract.low.u32 %v2631
      %v2633 = vextract.high.u32 %v2631
      %v2634 = vshrl.u32 %v2633, 5
      %v2635 = vmul.u32 %v2634, 33
      %v2636 = vsub.s32 %v2630, %v2635
      %v2637 = vsub.s32 0, %v2636
      %v2638 = vsel %vm2628, %v2637, %v2636
      %vm2639 = vcmp.lt.s32.totalorder %v2443, 0
      %v2640 = vsub.s32 0, %v2443
      %v2641 = vsel %vm2639, %v2640, %v2443
      %v2642 = vmul.u32.u64.compose %v2641, 4164816772
      %v2643 = vextract.low.u32 %v2642
      %v2644 = vextract.high.u32 %v2642
      %v2645 = vshrl.u32 %v2644, 5
      %v2646 = vmul.u32 %v2645, 33
      %v2647 = vsub.s32 %v2641, %v2646
      %v2648 = vsub.s32 0, %v2647
      %v2649 = vsel %vm2639, %v2648, %v2647
      %vm2650 = vcmp.lt.s32.totalorder %v2444, 0
      %v2651 = vsub.s32 0, %v2444
      %v2652 = vsel %vm2650, %v2651, %v2444
      %v2653 = vmul.u32.u64.compose %v2652, 4164816772
      %v2654 = vextract.low.u32 %v2653
      %v2655 = vextract.high.u32 %v2653
      %v2656 = vshrl.u32 %v2655, 5
      %v2657 = vmul.u32 %v2656, 33
      %v2658 = vsub.s32 %v2652, %v2657
      %v2659 = vsub.s32 0, %v2658
      %v2660 = vsel %vm2650, %v2659, %v2658
      %vm2661 = vcmp.lt.s32.totalorder %v2445, 0
      %v2662 = vsub.s32 0, %v2445
      %v2663 = vsel %vm2661, %v2662, %v2445
      %v2664 = vmul.u32.u64.compose %v2663, 4164816772
      %v2665 = vextract.low.u32 %v2664
      %v2666 = vextract.high.u32 %v2664
      %v2667 = vshrl.u32 %v2666, 5
      %v2668 = vmul.u32 %v2667, 33
      %v2669 = vsub.s32 %v2663, %v2668
      %v2670 = vsub.s32 0, %v2669
      %v2671 = vsel %vm2661, %v2670, %v2669
      %vm2672 = vcmp.lt.s32.totalorder %v2446, 0
      %v2673 = vsub.s32 0, %v2446
      %v2674 = vsel %vm2672, %v2673, %v2446
      %v2675 = vmul.u32.u64.compose %v2674, 4164816772
      %v2676 = vextract.low.u32 %v2675
      %v2677 = vextract.high.u32 %v2675
      %v2678 = vshrl.u32 %v2677, 5
      %v2679 = vmul.u32 %v2678, 33
      %v2680 = vsub.s32 %v2674, %v2679
      %v2681 = vsub.s32 0, %v2680
      %v2682 = vsel %vm2672, %v2681, %v2680
      %vm2683 = vcmp.lt.s32.totalorder %v2447, 0
      %v2684 = vsub.s32 0, %v2447
      %v2685 = vsel %vm2683, %v2684, %v2447
      %v2686 = vmul.u32.u64.compose %v2685, 4164816772
      %v2687 = vextract.low.u32 %v2686
      %v2688 = vextract.high.u32 %v2686
      %v2689 = vshrl.u32 %v2688, 5
      %v2690 = vmul.u32 %v2689, 33
      %v2691 = vsub.s32 %v2685, %v2690
      %v2692 = vsub.s32 0, %v2691
      %v2693 = vsel %vm2683, %v2692, %v2691
      %vm2694 = vcmp.lt.s32.totalorder %v2448, 0
      %v2695 = vsub.s32 0, %v2448
      %v2696 = vsel %vm2694, %v2695, %v2448
      %v2697 = vmul.u32.u64.compose %v2696, 4164816772
      %v2698 = vextract.low.u32 %v2697
      %v2699 = vextract.high.u32 %v2697
      %v2700 = vshrl.u32 %v2699, 5
      %v2701 = vmul.u32 %v2700, 33
      %v2702 = vsub.s32 %v2696, %v2701
      %v2703 = vsub.s32 0, %v2702
      %v2704 = vsel %vm2694, %v2703, %v2702
      %vm2705 = vcmp.lt.s32.totalorder %v2449, 0
      %v2706 = vsub.s32 0, %v2449
      %v2707 = vsel %vm2705, %v2706, %v2449
      %v2708 = vmul.u32.u64.compose %v2707, 4164816772
      %v2709 = vextract.low.u32 %v2708
      %v2710 = vextract.high.u32 %v2708
      %v2711 = vshrl.u32 %v2710, 5
      %v2712 = vmul.u32 %v2711, 33
      %v2713 = vsub.s32 %v2707, %v2712
      %v2714 = vsub.s32 0, %v2713
      %v2715 = vsel %vm2705, %v2714, %v2713
      %vm2716 = vcmp.lt.s32.totalorder %v2450, 0
      %v2717 = vsub.s32 0, %v2450
      %v2718 = vsel %vm2716, %v2717, %v2450
      %v2719 = vmul.u32.u64.compose %v2718, 4164816772
      %v2720 = vextract.low.u32 %v2719
      %v2721 = vextract.high.u32 %v2719
      %v2722 = vshrl.u32 %v2721, 5
      %v2723 = vmul.u32 %v2722, 33
      %v2724 = vsub.s32 %v2718, %v2723
      %v2725 = vsub.s32 0, %v2724
      %v2726 = vsel %vm2716, %v2725, %v2724
      %vm2727 = vcmp.lt.s32.totalorder %v2451, 0
      %v2728 = vsub.s32 0, %v2451
      %v2729 = vsel %vm2727, %v2728, %v2451
      %v2730 = vmul.u32.u64.compose %v2729, 4164816772
      %v2731 = vextract.low.u32 %v2730
      %v2732 = vextract.high.u32 %v2730
      %v2733 = vshrl.u32 %v2732, 5
      %v2734 = vmul.u32 %v2733, 33
      %v2735 = vsub.s32 %v2729, %v2734
      %v2736 = vsub.s32 0, %v2735
      %v2737 = vsel %vm2727, %v2736, %v2735
      %vm2738 = vcmp.lt.s32.totalorder %v2452, 0
      %v2739 = vsub.s32 0, %v2452
      %v2740 = vsel %vm2738, %v2739, %v2452
      %v2741 = vmul.u32.u64.compose %v2740, 4164816772
      %v2742 = vextract.low.u32 %v2741
      %v2743 = vextract.high.u32 %v2741
      %v2744 = vshrl.u32 %v2743, 5
      %v2745 = vmul.u32 %v2744, 33
      %v2746 = vsub.s32 %v2740, %v2745
      %v2747 = vsub.s32 0, %v2746
      %v2748 = vsel %vm2738, %v2747, %v2746
      %vm2749 = vcmp.lt.s32.totalorder %v2453, 0
      %v2750 = vsub.s32 0, %v2453
      %v2751 = vsel %vm2749, %v2750, %v2453
      %v2752 = vmul.u32.u64.compose %v2751, 4164816772
      %v2753 = vextract.low.u32 %v2752
      %v2754 = vextract.high.u32 %v2752
      %v2755 = vshrl.u32 %v2754, 5
      %v2756 = vmul.u32 %v2755, 33
      %v2757 = vsub.s32 %v2751, %v2756
      %v2758 = vsub.s32 0, %v2757
      %v2759 = vsel %vm2749, %v2758, %v2757
      %vm2760 = vcmp.lt.s32.totalorder %v2454, 0
      %v2761 = vsub.s32 0, %v2454
      %v2762 = vsel %vm2760, %v2761, %v2454
      %v2763 = vmul.u32.u64.compose %v2762, 4164816772
      %v2764 = vextract.low.u32 %v2763
      %v2765 = vextract.high.u32 %v2763
      %v2766 = vshrl.u32 %v2765, 5
      %v2767 = vmul.u32 %v2766, 33
      %v2768 = vsub.s32 %v2762, %v2767
      %v2769 = vsub.s32 0, %v2768
      %v2770 = vsel %vm2760, %v2769, %v2768
      %vm2771 = vcmp.lt.s32.totalorder %v2455, 0
      %v2772 = vsub.s32 0, %v2455
      %v2773 = vsel %vm2771, %v2772, %v2455
      %v2774 = vmul.u32.u64.compose %v2773, 4164816772
      %v2775 = vextract.low.u32 %v2774
      %v2776 = vextract.high.u32 %v2774
      %v2777 = vshrl.u32 %v2776, 5
      %v2778 = vmul.u32 %v2777, 33
      %v2779 = vsub.s32 %v2773, %v2778
      %v2780 = vsub.s32 0, %v2779
      %v2781 = vsel %vm2771, %v2780, %v2779
      %vm2782 = vcmp.lt.s32.totalorder %v2456, 0
      %v2783 = vsub.s32 0, %v2456
      %v2784 = vsel %vm2782, %v2783, %v2456
      %v2785 = vmul.u32.u64.compose %v2784, 4164816772
      %v2786 = vextract.low.u32 %v2785
      %v2787 = vextract.high.u32 %v2785
      %v2788 = vshrl.u32 %v2787, 5
      %v2789 = vmul.u32 %v2788, 33
      %v2790 = vsub.s32 %v2784, %v2789
      %v2791 = vsub.s32 0, %v2790
      %v2792 = vsel %vm2782, %v2791, %v2790
      %vm2793 = vcmp.lt.s32.totalorder %v2457, 0
      %v2794 = vsub.s32 0, %v2457
      %v2795 = vsel %vm2793, %v2794, %v2457
      %v2796 = vmul.u32.u64.compose %v2795, 4164816772
      %v2797 = vextract.low.u32 %v2796
      %v2798 = vextract.high.u32 %v2796
      %v2799 = vshrl.u32 %v2798, 5
      %v2800 = vmul.u32 %v2799, 33
      %v2801 = vsub.s32 %v2795, %v2800
      %v2802 = vsub.s32 0, %v2801
      %v2803 = vsel %vm2793, %v2802, %v2801
      %vm2804 = vcmp.lt.s32.totalorder %v2458, 0
      %v2805 = vsub.s32 0, %v2458
      %v2806 = vsel %vm2804, %v2805, %v2458
      %v2807 = vmul.u32.u64.compose %v2806, 4164816772
      %v2808 = vextract.low.u32 %v2807
      %v2809 = vextract.high.u32 %v2807
      %v2810 = vshrl.u32 %v2809, 5
      %v2811 = vmul.u32 %v2810, 33
      %v2812 = vsub.s32 %v2806, %v2811
      %v2813 = vsub.s32 0, %v2812
      %v2814 = vsel %vm2804, %v2813, %v2812
      %vm2815 = vcmp.lt.s32.totalorder %v2459, 0
      %v2816 = vsub.s32 0, %v2459
      %v2817 = vsel %vm2815, %v2816, %v2459
      %v2818 = vmul.u32.u64.compose %v2817, 4164816772
      %v2819 = vextract.low.u32 %v2818
      %v2820 = vextract.high.u32 %v2818
      %v2821 = vshrl.u32 %v2820, 5
      %v2822 = vmul.u32 %v2821, 33
      %v2823 = vsub.s32 %v2817, %v2822
      %v2824 = vsub.s32 0, %v2823
      %v2825 = vsel %vm2815, %v2824, %v2823
      %vm2826 = vcmp.lt.s32.totalorder %v2460, 0
      %v2827 = vsub.s32 0, %v2460
      %v2828 = vsel %vm2826, %v2827, %v2460
      %v2829 = vmul.u32.u64.compose %v2828, 4164816772
      %v2830 = vextract.low.u32 %v2829
      %v2831 = vextract.high.u32 %v2829
      %v2832 = vshrl.u32 %v2831, 5
      %v2833 = vmul.u32 %v2832, 33
      %v2834 = vsub.s32 %v2828, %v2833
      %v2835 = vsub.s32 0, %v2834
      %v2836 = vsel %vm2826, %v2835, %v2834
      %vm2837 = vcmp.lt.s32.totalorder %v2461, 0
      %v2838 = vsub.s32 0, %v2461
      %v2839 = vsel %vm2837, %v2838, %v2461
      %v2840 = vmul.u32.u64.compose %v2839, 4164816772
      %v2841 = vextract.low.u32 %v2840
      %v2842 = vextract.high.u32 %v2840
      %v2843 = vshrl.u32 %v2842, 5
      %v2844 = vmul.u32 %v2843, 33
      %v2845 = vsub.s32 %v2839, %v2844
      %v2846 = vsub.s32 0, %v2845
      %v2847 = vsel %vm2837, %v2846, %v2845
      %vm2848 = vcmp.lt.s32.totalorder %v2462, 0
      %v2849 = vsub.s32 0, %v2462
      %v2850 = vsel %vm2848, %v2849, %v2462
      %v2851 = vmul.u32.u64.compose %v2850, 4164816772
      %v2852 = vextract.low.u32 %v2851
      %v2853 = vextract.high.u32 %v2851
      %v2854 = vshrl.u32 %v2853, 5
      %v2855 = vmul.u32 %v2854, 33
      %v2856 = vsub.s32 %v2850, %v2855
      %v2857 = vsub.s32 0, %v2856
      %v2858 = vsel %vm2848, %v2857, %v2856
      %vm2859 = vcmp.lt.s32.totalorder %v2463, 0
      %v2860 = vsub.s32 0, %v2463
      %v2861 = vsel %vm2859, %v2860, %v2463
      %v2862 = vmul.u32.u64.compose %v2861, 4164816772
      %v2863 = vextract.low.u32 %v2862
      %v2864 = vextract.high.u32 %v2862
      %v2865 = vshrl.u32 %v2864, 5
      %v2866 = vmul.u32 %v2865, 33
      %v2867 = vsub.s32 %v2861, %v2866
      %v2868 = vsub.s32 0, %v2867
      %v2869 = vsel %vm2859, %v2868, %v2867
      %vm2870 = vcmp.lt.s32.totalorder %v2464, 0
      %v2871 = vsub.s32 0, %v2464
      %v2872 = vsel %vm2870, %v2871, %v2464
      %v2873 = vmul.u32.u64.compose %v2872, 4164816772
      %v2874 = vextract.low.u32 %v2873
      %v2875 = vextract.high.u32 %v2873
      %v2876 = vshrl.u32 %v2875, 5
      %v2877 = vmul.u32 %v2876, 33
      %v2878 = vsub.s32 %v2872, %v2877
      %v2879 = vsub.s32 0, %v2878
      %v2880 = vsel %vm2870, %v2879, %v2878
      %vm2881 = vcmp.lt.s32.totalorder %v2465, 0
      %v2882 = vsub.s32 0, %v2465
      %v2883 = vsel %vm2881, %v2882, %v2465
      %v2884 = vmul.u32.u64.compose %v2883, 4164816772
      %v2885 = vextract.low.u32 %v2884
      %v2886 = vextract.high.u32 %v2884
      %v2887 = vshrl.u32 %v2886, 5
      %v2888 = vmul.u32 %v2887, 33
      %v2889 = vsub.s32 %v2883, %v2888
      %v2890 = vsub.s32 0, %v2889
      %v2891 = vsel %vm2881, %v2890, %v2889
      %vm2892 = vcmp.lt.s32.totalorder %v2466, 0
      %v2893 = vsub.s32 0, %v2466
      %v2894 = vsel %vm2892, %v2893, %v2466
      %v2895 = vmul.u32.u64.compose %v2894, 4164816772
      %v2896 = vextract.low.u32 %v2895
      %v2897 = vextract.high.u32 %v2895
      %v2898 = vshrl.u32 %v2897, 5
      %v2899 = vmul.u32 %v2898, 33
      %v2900 = vsub.s32 %v2894, %v2899
      %v2901 = vsub.s32 0, %v2900
      %v2902 = vsel %vm2892, %v2901, %v2900
      %vm2903 = vcmp.lt.s32.totalorder %v2467, 0
      %v2904 = vsub.s32 0, %v2467
      %v2905 = vsel %vm2903, %v2904, %v2467
      %v2906 = vmul.u32.u64.compose %v2905, 4164816772
      %v2907 = vextract.low.u32 %v2906
      %v2908 = vextract.high.u32 %v2906
      %v2909 = vshrl.u32 %v2908, 5
      %v2910 = vmul.u32 %v2909, 33
      %v2911 = vsub.s32 %v2905, %v2910
      %v2912 = vsub.s32 0, %v2911
      %v2913 = vsel %vm2903, %v2912, %v2911
      %vm2914 = vcmp.lt.s32.totalorder %v2468, 0
      %v2915 = vsub.s32 0, %v2468
      %v2916 = vsel %vm2914, %v2915, %v2468
      %v2917 = vmul.u32.u64.compose %v2916, 4164816772
      %v2918 = vextract.low.u32 %v2917
      %v2919 = vextract.high.u32 %v2917
      %v2920 = vshrl.u32 %v2919, 5
      %v2921 = vmul.u32 %v2920, 33
      %v2922 = vsub.s32 %v2916, %v2921
      %v2923 = vsub.s32 0, %v2922
      %v2924 = vsel %vm2914, %v2923, %v2922
      %vm2925 = vcmp.lt.s32.totalorder %v2469, 0
      %v2926 = vsub.s32 0, %v2469
      %v2927 = vsel %vm2925, %v2926, %v2469
      %v2928 = vmul.u32.u64.compose %v2927, 4164816772
      %v2929 = vextract.low.u32 %v2928
      %v2930 = vextract.high.u32 %v2928
      %v2931 = vshrl.u32 %v2930, 5
      %v2932 = vmul.u32 %v2931, 33
      %v2933 = vsub.s32 %v2927, %v2932
      %v2934 = vsub.s32 0, %v2933
      %v2935 = vsel %vm2925, %v2934, %v2933
      %vm2936 = vcmp.lt.s32.totalorder %v2470, 0
      %v2937 = vsub.s32 0, %v2470
      %v2938 = vsel %vm2936, %v2937, %v2470
      %v2939 = vmul.u32.u64.compose %v2938, 4164816772
      %v2940 = vextract.low.u32 %v2939
      %v2941 = vextract.high.u32 %v2939
      %v2942 = vshrl.u32 %v2941, 5
      %v2943 = vmul.u32 %v2942, 33
      %v2944 = vsub.s32 %v2938, %v2943
      %v2945 = vsub.s32 0, %v2944
      %v2946 = vsel %vm2936, %v2945, %v2944
      %vm2947 = vcmp.lt.s32.totalorder %v2471, 0
      %v2948 = vsub.s32 0, %v2471
      %v2949 = vsel %vm2947, %v2948, %v2471
      %v2950 = vmul.u32.u64.compose %v2949, 4164816772
      %v2951 = vextract.low.u32 %v2950
      %v2952 = vextract.high.u32 %v2950
      %v2953 = vshrl.u32 %v2952, 5
      %v2954 = vmul.u32 %v2953, 33
      %v2955 = vsub.s32 %v2949, %v2954
      %v2956 = vsub.s32 0, %v2955
      %v2957 = vsel %vm2947, %v2956, %v2955
      %vm2958 = vcmp.lt.s32.totalorder %v2472, 0
      %v2959 = vsub.s32 0, %v2472
      %v2960 = vsel %vm2958, %v2959, %v2472
      %v2961 = vmul.u32.u64.compose %v2960, 4164816772
      %v2962 = vextract.low.u32 %v2961
      %v2963 = vextract.high.u32 %v2961
      %v2964 = vshrl.u32 %v2963, 5
      %v2965 = vmul.u32 %v2964, 33
      %v2966 = vsub.s32 %v2960, %v2965
      %v2967 = vsub.s32 0, %v2966
      %v2968 = vsel %vm2958, %v2967, %v2966
      %vm2969 = vcmp.lt.s32.totalorder %v2473, 0
      %v2970 = vsub.s32 0, %v2473
      %v2971 = vsel %vm2969, %v2970, %v2473
      %v2972 = vmul.u32.u64.compose %v2971, 4164816772
      %v2973 = vextract.low.u32 %v2972
      %v2974 = vextract.high.u32 %v2972
      %v2975 = vshrl.u32 %v2974, 5
      %v2976 = vmul.u32 %v2975, 33
      %v2977 = vsub.s32 %v2971, %v2976
      %v2978 = vsub.s32 0, %v2977
      %v2979 = vsel %vm2969, %v2978, %v2977
      %vm2980 = vcmp.lt.s32.totalorder %v2474, 0
      %v2981 = vsub.s32 0, %v2474
      %v2982 = vsel %vm2980, %v2981, %v2474
      %v2983 = vmul.u32.u64.compose %v2982, 4164816772
      %v2984 = vextract.low.u32 %v2983
      %v2985 = vextract.high.u32 %v2983
      %v2986 = vshrl.u32 %v2985, 5
      %v2987 = vmul.u32 %v2986, 33
      %v2988 = vsub.s32 %v2982, %v2987
      %v2989 = vsub.s32 0, %v2988
      %v2990 = vsel %vm2980, %v2989, %v2988
      %vm2991 = vcmp.lt.s32.totalorder %v2475, 0
      %v2992 = vsub.s32 0, %v2475
      %v2993 = vsel %vm2991, %v2992, %v2475
      %v2994 = vmul.u32.u64.compose %v2993, 4164816772
      %v2995 = vextract.low.u32 %v2994
      %v2996 = vextract.high.u32 %v2994
      %v2997 = vshrl.u32 %v2996, 5
      %v2998 = vmul.u32 %v2997, 33
      %v2999 = vsub.s32 %v2993, %v2998
      %v3000 = vsub.s32 0, %v2999
      %v3001 = vsel %vm2991, %v3000, %v2999
      %vm3002 = vcmp.lt.s32.totalorder %v2476, 0
      %v3003 = vsub.s32 0, %v2476
      %v3004 = vsel %vm3002, %v3003, %v2476
      %v3005 = vmul.u32.u64.compose %v3004, 4164816772
      %v3006 = vextract.low.u32 %v3005
      %v3007 = vextract.high.u32 %v3005
      %v3008 = vshrl.u32 %v3007, 5
      %v3009 = vmul.u32 %v3008, 33
      %v3010 = vsub.s32 %v3004, %v3009
      %v3011 = vsub.s32 0, %v3010
      %v3012 = vsel %vm3002, %v3011, %v3010
      %vm3013 = vcmp.lt.s32.totalorder %v2477, 0
      %v3014 = vsub.s32 0, %v2477
      %v3015 = vsel %vm3013, %v3014, %v2477
      %v3016 = vmul.u32.u64.compose %v3015, 4164816772
      %v3017 = vextract.low.u32 %v3016
      %v3018 = vextract.high.u32 %v3016
      %v3019 = vshrl.u32 %v3018, 5
      %v3020 = vmul.u32 %v3019, 33
      %v3021 = vsub.s32 %v3015, %v3020
      %v3022 = vsub.s32 0, %v3021
      %v3023 = vsel %vm3013, %v3022, %v3021
      %vm3024 = vcmp.lt.s32.totalorder %v2478, 0
      %v3025 = vsub.s32 0, %v2478
      %v3026 = vsel %vm3024, %v3025, %v2478
      %v3027 = vmul.u32.u64.compose %v3026, 4164816772
      %v3028 = vextract.low.u32 %v3027
      %v3029 = vextract.high.u32 %v3027
      %v3030 = vshrl.u32 %v3029, 5
      %v3031 = vmul.u32 %v3030, 33
      %v3032 = vsub.s32 %v3026, %v3031
      %v3033 = vsub.s32 0, %v3032
      %v3034 = vsel %vm3024, %v3033, %v3032
      %vm3035 = vcmp.lt.s32.totalorder %v2479, 0
      %v3036 = vsub.s32 0, %v2479
      %v3037 = vsel %vm3035, %v3036, %v2479
      %v3038 = vmul.u32.u64.compose %v3037, 4164816772
      %v3039 = vextract.low.u32 %v3038
      %v3040 = vextract.high.u32 %v3038
      %v3041 = vshrl.u32 %v3040, 5
      %v3042 = vmul.u32 %v3041, 33
      %v3043 = vsub.s32 %v3037, %v3042
      %v3044 = vsub.s32 0, %v3043
      %v3045 = vsel %vm3035, %v3044, %v3043
      %vm3046 = vcmp.lt.s32.totalorder %v2480, 0
      %v3047 = vsub.s32 0, %v2480
      %v3048 = vsel %vm3046, %v3047, %v2480
      %v3049 = vmul.u32.u64.compose %v3048, 4164816772
      %v3050 = vextract.low.u32 %v3049
      %v3051 = vextract.high.u32 %v3049
      %v3052 = vshrl.u32 %v3051, 5
      %v3053 = vmul.u32 %v3052, 33
      %v3054 = vsub.s32 %v3048, %v3053
      %v3055 = vsub.s32 0, %v3054
      %v3056 = vsel %vm3046, %v3055, %v3054
      %vm3057 = vcmp.lt.s32.totalorder %v2481, 0
      %v3058 = vsub.s32 0, %v2481
      %v3059 = vsel %vm3057, %v3058, %v2481
      %v3060 = vmul.u32.u64.compose %v3059, 4164816772
      %v3061 = vextract.low.u32 %v3060
      %v3062 = vextract.high.u32 %v3060
      %v3063 = vshrl.u32 %v3062, 5
      %v3064 = vmul.u32 %v3063, 33
      %v3065 = vsub.s32 %v3059, %v3064
      %v3066 = vsub.s32 0, %v3065
      %v3067 = vsel %vm3057, %v3066, %v3065
      %vm3068 = vcmp.lt.s32.totalorder %v2482, 0
      %v3069 = vsub.s32 0, %v2482
      %v3070 = vsel %vm3068, %v3069, %v2482
      %v3071 = vmul.u32.u64.compose %v3070, 4164816772
      %v3072 = vextract.low.u32 %v3071
      %v3073 = vextract.high.u32 %v3071
      %v3074 = vshrl.u32 %v3073, 5
      %v3075 = vmul.u32 %v3074, 33
      %v3076 = vsub.s32 %v3070, %v3075
      %v3077 = vsub.s32 0, %v3076
      %v3078 = vsel %vm3068, %v3077, %v3076
      %vm3079 = vcmp.lt.s32.totalorder %v2483, 0
      %v3080 = vsub.s32 0, %v2483
      %v3081 = vsel %vm3079, %v3080, %v2483
      %v3082 = vmul.u32.u64.compose %v3081, 4164816772
      %v3083 = vextract.low.u32 %v3082
      %v3084 = vextract.high.u32 %v3082
      %v3085 = vshrl.u32 %v3084, 5
      %v3086 = vmul.u32 %v3085, 33
      %v3087 = vsub.s32 %v3081, %v3086
      %v3088 = vsub.s32 0, %v3087
      %v3089 = vsel %vm3079, %v3088, %v3087
      %vm3090 = vcmp.lt.s32.totalorder %v2484, 0
      %v3091 = vsub.s32 0, %v2484
      %v3092 = vsel %vm3090, %v3091, %v2484
      %v3093 = vmul.u32.u64.compose %v3092, 4164816772
      %v3094 = vextract.low.u32 %v3093
      %v3095 = vextract.high.u32 %v3093
      %v3096 = vshrl.u32 %v3095, 5
      %v3097 = vmul.u32 %v3096, 33
      %v3098 = vsub.s32 %v3092, %v3097
      %v3099 = vsub.s32 0, %v3098
      %v3100 = vsel %vm3090, %v3099, %v3098
      %vm3101 = vcmp.lt.s32.totalorder %v2485, 0
      %v3102 = vsub.s32 0, %v2485
      %v3103 = vsel %vm3101, %v3102, %v2485
      %v3104 = vmul.u32.u64.compose %v3103, 4164816772
      %v3105 = vextract.low.u32 %v3104
      %v3106 = vextract.high.u32 %v3104
      %v3107 = vshrl.u32 %v3106, 5
      %v3108 = vmul.u32 %v3107, 33
      %v3109 = vsub.s32 %v3103, %v3108
      %v3110 = vsub.s32 0, %v3109
      %v3111 = vsel %vm3101, %v3110, %v3109
      %vm3112 = vcmp.lt.s32.totalorder %v2486, 0
      %v3113 = vsub.s32 0, %v2486
      %v3114 = vsel %vm3112, %v3113, %v2486
      %v3115 = vmul.u32.u64.compose %v3114, 4164816772
      %v3116 = vextract.low.u32 %v3115
      %v3117 = vextract.high.u32 %v3115
      %v3118 = vshrl.u32 %v3117, 5
      %v3119 = vmul.u32 %v3118, 33
      %v3120 = vsub.s32 %v3114, %v3119
      %v3121 = vsub.s32 0, %v3120
      %v3122 = vsel %vm3112, %v3121, %v3120
      %vm3123 = vcmp.lt.s32.totalorder %v2487, 0
      %v3124 = vsub.s32 0, %v2487
      %v3125 = vsel %vm3123, %v3124, %v2487
      %v3126 = vmul.u32.u64.compose %v3125, 4164816772
      %v3127 = vextract.low.u32 %v3126
      %v3128 = vextract.high.u32 %v3126
      %v3129 = vshrl.u32 %v3128, 5
      %v3130 = vmul.u32 %v3129, 33
      %v3131 = vsub.s32 %v3125, %v3130
      %v3132 = vsub.s32 0, %v3131
      %v3133 = vsel %vm3123, %v3132, %v3131
      %vm3134 = vcmp.lt.s32.totalorder %v2488, 0
      %v3135 = vsub.s32 0, %v2488
      %v3136 = vsel %vm3134, %v3135, %v2488
      %v3137 = vmul.u32.u64.compose %v3136, 4164816772
      %v3138 = vextract.low.u32 %v3137
      %v3139 = vextract.high.u32 %v3137
      %v3140 = vshrl.u32 %v3139, 5
      %v3141 = vmul.u32 %v3140, 33
      %v3142 = vsub.s32 %v3136, %v3141
      %v3143 = vsub.s32 0, %v3142
      %v3144 = vsel %vm3134, %v3143, %v3142
      %vm3145 = vcmp.lt.s32.totalorder %v2489, 0
      %v3146 = vsub.s32 0, %v2489
      %v3147 = vsel %vm3145, %v3146, %v2489
      %v3148 = vmul.u32.u64.compose %v3147, 4164816772
      %v3149 = vextract.low.u32 %v3148
      %v3150 = vextract.high.u32 %v3148
      %v3151 = vshrl.u32 %v3150, 5
      %v3152 = vmul.u32 %v3151, 33
      %v3153 = vsub.s32 %v3147, %v3152
      %v3154 = vsub.s32 0, %v3153
      %v3155 = vsel %vm3145, %v3154, %v3153
      %vm3156 = vcmp.lt.s32.totalorder %v2490, 0
      %v3157 = vsub.s32 0, %v2490
      %v3158 = vsel %vm3156, %v3157, %v2490
      %v3159 = vmul.u32.u64.compose %v3158, 4164816772
      %v3160 = vextract.low.u32 %v3159
      %v3161 = vextract.high.u32 %v3159
      %v3162 = vshrl.u32 %v3161, 5
      %v3163 = vmul.u32 %v3162, 33
      %v3164 = vsub.s32 %v3158, %v3163
      %v3165 = vsub.s32 0, %v3164
      %v3166 = vsel %vm3156, %v3165, %v3164
      %vm3167 = vcmp.lt.s32.totalorder %v2491, 0
      %v3168 = vsub.s32 0, %v2491
      %v3169 = vsel %vm3167, %v3168, %v2491
      %v3170 = vmul.u32.u64.compose %v3169, 4164816772
      %v3171 = vextract.low.u32 %v3170
      %v3172 = vextract.high.u32 %v3170
      %v3173 = vshrl.u32 %v3172, 5
      %v3174 = vmul.u32 %v3173, 33
      %v3175 = vsub.s32 %v3169, %v3174
      %v3176 = vsub.s32 0, %v3175
      %v3177 = vsel %vm3167, %v3176, %v3175
      %vm3178 = vcmp.lt.s32.totalorder %v2492, 0
      %v3179 = vsub.s32 0, %v2492
      %v3180 = vsel %vm3178, %v3179, %v2492
      %v3181 = vmul.u32.u64.compose %v3180, 4164816772
      %v3182 = vextract.low.u32 %v3181
      %v3183 = vextract.high.u32 %v3181
      %v3184 = vshrl.u32 %v3183, 5
      %v3185 = vmul.u32 %v3184, 33
      %v3186 = vsub.s32 %v3180, %v3185
      %v3187 = vsub.s32 0, %v3186
      %v3188 = vsel %vm3178, %v3187, %v3186
      %vm3189 = vcmp.lt.s32.totalorder %v2493, 0
      %v3190 = vsub.s32 0, %v2493
      %v3191 = vsel %vm3189, %v3190, %v2493
      %v3192 = vmul.u32.u64.compose %v3191, 4164816772
      %v3193 = vextract.low.u32 %v3192
      %v3194 = vextract.high.u32 %v3192
      %v3195 = vshrl.u32 %v3194, 5
      %v3196 = vmul.u32 %v3195, 33
      %v3197 = vsub.s32 %v3191, %v3196
      %v3198 = vsub.s32 0, %v3197
      %v3199 = vsel %vm3189, %v3198, %v3197
      %vm3200 = vcmp.lt.s32.totalorder %v2494, 0
      %v3201 = vsub.s32 0, %v2494
      %v3202 = vsel %vm3200, %v3201, %v2494
      %v3203 = vmul.u32.u64.compose %v3202, 4164816772
      %v3204 = vextract.low.u32 %v3203
      %v3205 = vextract.high.u32 %v3203
      %v3206 = vshrl.u32 %v3205, 5
      %v3207 = vmul.u32 %v3206, 33
      %v3208 = vsub.s32 %v3202, %v3207
      %v3209 = vsub.s32 0, %v3208
      %v3210 = vsel %vm3200, %v3209, %v3208
      %vm3211 = vcmp.lt.s32.totalorder %v2495, 0
      %v3212 = vsub.s32 0, %v2495
      %v3213 = vsel %vm3211, %v3212, %v2495
      %v3214 = vmul.u32.u64.compose %v3213, 4164816772
      %v3215 = vextract.low.u32 %v3214
      %v3216 = vextract.high.u32 %v3214
      %v3217 = vshrl.u32 %v3216, 5
      %v3218 = vmul.u32 %v3217, 33
      %v3219 = vsub.s32 %v3213, %v3218
      %v3220 = vsub.s32 0, %v3219
      %v3221 = vsel %vm3211, %v3220, %v3219
      %vm3222 = vcmp.ne.s32.totalorder %v2506, 0
      %vm3223 = vcmp.ne.s32.totalorder %v2517, 0
      %vm3224 = vcmp.ne.s32.totalorder %v2528, 0
      %vm3225 = vcmp.ne.s32.totalorder %v2539, 0
      %vm3226 = vcmp.ne.s32.totalorder %v2550, 0
      %vm3227 = vcmp.ne.s32.totalorder %v2561, 0
      %vm3228 = vcmp.ne.s32.totalorder %v2572, 0
      %vm3229 = vcmp.ne.s32.totalorder %v2583, 0
      %vm3230 = vcmp.ne.s32.totalorder %v2594, 0
      %vm3231 = vcmp.ne.s32.totalorder %v2605, 0
      %vm3232 = vcmp.ne.s32.totalorder %v2616, 0
      %vm3233 = vcmp.ne.s32.totalorder %v2627, 0
      %vm3234 = vcmp.ne.s32.totalorder %v2638, 0
      %vm3235 = vcmp.ne.s32.totalorder %v2649, 0
      %vm3236 = vcmp.ne.s32.totalorder %v2660, 0
      %vm3237 = vcmp.ne.s32.totalorder %v2671, 0
      %vm3238 = vcmp.ne.s32.totalorder %v2682, 0
      %vm3239 = vcmp.ne.s32.totalorder %v2693, 0
      %vm3240 = vcmp.ne.s32.totalorder %v2704, 0
      %vm3241 = vcmp.ne.s32.totalorder %v2715, 0
      %vm3242 = vcmp.ne.s32.totalorder %v2726, 0
      %vm3243 = vcmp.ne.s32.totalorder %v2737, 0
      %vm3244 = vcmp.ne.s32.totalorder %v2748, 0
      %vm3245 = vcmp.ne.s32.totalorder %v2759, 0
      %vm3246 = vcmp.ne.s32.totalorder %v2770, 0
      %vm3247 = vcmp.ne.s32.totalorder %v2781, 0
      %vm3248 = vcmp.ne.s32.totalorder %v2792, 0
      %vm3249 = vcmp.ne.s32.totalorder %v2803, 0
      %vm3250 = vcmp.ne.s32.totalorder %v2814, 0
      %vm3251 = vcmp.ne.s32.totalorder %v2825, 0
      %vm3252 = vcmp.ne.s32.totalorder %v2836, 0
      %vm3253 = vcmp.ne.s32.totalorder %v2847, 0
      %vm3254 = vcmp.ne.s32.totalorder %v2858, 0
      %vm3255 = vcmp.ne.s32.totalorder %v2869, 0
      %vm3256 = vcmp.ne.s32.totalorder %v2880, 0
      %vm3257 = vcmp.ne.s32.totalorder %v2891, 0
      %vm3258 = vcmp.ne.s32.totalorder %v2902, 0
      %vm3259 = vcmp.ne.s32.totalorder %v2913, 0
      %vm3260 = vcmp.ne.s32.totalorder %v2924, 0
      %vm3261 = vcmp.ne.s32.totalorder %v2935, 0
      %vm3262 = vcmp.ne.s32.totalorder %v2946, 0
      %vm3263 = vcmp.ne.s32.totalorder %v2957, 0
      %vm3264 = vcmp.ne.s32.totalorder %v2968, 0
      %vm3265 = vcmp.ne.s32.totalorder %v2979, 0
      %vm3266 = vcmp.ne.s32.totalorder %v2990, 0
      %vm3267 = vcmp.ne.s32.totalorder %v3001, 0
      %vm3268 = vcmp.ne.s32.totalorder %v3012, 0
      %vm3269 = vcmp.ne.s32.totalorder %v3023, 0
      %vm3270 = vcmp.ne.s32.totalorder %v3034, 0
      %vm3271 = vcmp.ne.s32.totalorder %v3045, 0
      %vm3272 = vcmp.ne.s32.totalorder %v3056, 0
      %vm3273 = vcmp.ne.s32.totalorder %v3067, 0
      %vm3274 = vcmp.ne.s32.totalorder %v3078, 0
      %vm3275 = vcmp.ne.s32.totalorder %v3089, 0
      %vm3276 = vcmp.ne.s32.totalorder %v3100, 0
      %vm3277 = vcmp.ne.s32.totalorder %v3111, 0
      %vm3278 = vcmp.ne.s32.totalorder %v3122, 0
      %vm3279 = vcmp.ne.s32.totalorder %v3133, 0
      %vm3280 = vcmp.ne.s32.totalorder %v3144, 0
      %vm3281 = vcmp.ne.s32.totalorder %v3155, 0
      %vm3282 = vcmp.ne.s32.totalorder %v3166, 0
      %vm3283 = vcmp.ne.s32.totalorder %v3177, 0
      %vm3284 = vcmp.ne.s32.totalorder %v3188, 0
      %vm3285 = vcmp.ne.s32.totalorder %v3199, 0
      %vm3286 = vcmp.ne.s32.totalorder %v3210, 0
      %vm3287 = vcmp.ne.s32.totalorder %v3221, 0
      %vm3288 = vcmp.lt.s32.totalorder %v2506, 0
      %vm3289 = vcmp.lt.s32.totalorder %v2517, 0
      %vm3290 = vcmp.lt.s32.totalorder %v2528, 0
      %vm3291 = vcmp.lt.s32.totalorder %v2539, 0
      %vm3292 = vcmp.lt.s32.totalorder %v2550, 0
      %vm3293 = vcmp.lt.s32.totalorder %v2561, 0
      %vm3294 = vcmp.lt.s32.totalorder %v2572, 0
      %vm3295 = vcmp.lt.s32.totalorder %v2583, 0
      %vm3296 = vcmp.lt.s32.totalorder %v2594, 0
      %vm3297 = vcmp.lt.s32.totalorder %v2605, 0
      %vm3298 = vcmp.lt.s32.totalorder %v2616, 0
      %vm3299 = vcmp.lt.s32.totalorder %v2627, 0
      %vm3300 = vcmp.lt.s32.totalorder %v2638, 0
      %vm3301 = vcmp.lt.s32.totalorder %v2649, 0
      %vm3302 = vcmp.lt.s32.totalorder %v2660, 0
      %vm3303 = vcmp.lt.s32.totalorder %v2671, 0
      %vm3304 = vcmp.lt.s32.totalorder %v2682, 0
      %vm3305 = vcmp.lt.s32.totalorder %v2693, 0
      %vm3306 = vcmp.lt.s32.totalorder %v2704, 0
      %vm3307 = vcmp.lt.s32.totalorder %v2715, 0
      %vm3308 = vcmp.lt.s32.totalorder %v2726, 0
      %vm3309 = vcmp.lt.s32.totalorder %v2737, 0
      %vm3310 = vcmp.lt.s32.totalorder %v2748, 0
      %vm3311 = vcmp.lt.s32.totalorder %v2759, 0
      %vm3312 = vcmp.lt.s32.totalorder %v2770, 0
      %vm3313 = vcmp.lt.s32.totalorder %v2781, 0
      %vm3314 = vcmp.lt.s32.totalorder %v2792, 0
      %vm3315 = vcmp.lt.s32.totalorder %v2803, 0
      %vm3316 = vcmp.lt.s32.totalorder %v2814, 0
      %vm3317 = vcmp.lt.s32.totalorder %v2825, 0
      %vm3318 = vcmp.lt.s32.totalorder %v2836, 0
      %vm3319 = vcmp.lt.s32.totalorder %v2847, 0
      %vm3320 = vcmp.lt.s32.totalorder %v2858, 0
      %vm3321 = vcmp.lt.s32.totalorder %v2869, 0
      %vm3322 = vcmp.lt.s32.totalorder %v2880, 0
      %vm3323 = vcmp.lt.s32.totalorder %v2891, 0
      %vm3324 = vcmp.lt.s32.totalorder %v2902, 0
      %vm3325 = vcmp.lt.s32.totalorder %v2913, 0
      %vm3326 = vcmp.lt.s32.totalorder %v2924, 0
      %vm3327 = vcmp.lt.s32.totalorder %v2935, 0
      %vm3328 = vcmp.lt.s32.totalorder %v2946, 0
      %vm3329 = vcmp.lt.s32.totalorder %v2957, 0
      %vm3330 = vcmp.lt.s32.totalorder %v2968, 0
      %vm3331 = vcmp.lt.s32.totalorder %v2979, 0
      %vm3332 = vcmp.lt.s32.totalorder %v2990, 0
      %vm3333 = vcmp.lt.s32.totalorder %v3001, 0
      %vm3334 = vcmp.lt.s32.totalorder %v3012, 0
      %vm3335 = vcmp.lt.s32.totalorder %v3023, 0
      %vm3336 = vcmp.lt.s32.totalorder %v3034, 0
      %vm3337 = vcmp.lt.s32.totalorder %v3045, 0
      %vm3338 = vcmp.lt.s32.totalorder %v3056, 0
      %vm3339 = vcmp.lt.s32.totalorder %v3067, 0
      %vm3340 = vcmp.lt.s32.totalorder %v3078, 0
      %vm3341 = vcmp.lt.s32.totalorder %v3089, 0
      %vm3342 = vcmp.lt.s32.totalorder %v3100, 0
      %vm3343 = vcmp.lt.s32.totalorder %v3111, 0
      %vm3344 = vcmp.lt.s32.totalorder %v3122, 0
      %vm3345 = vcmp.lt.s32.totalorder %v3133, 0
      %vm3346 = vcmp.lt.s32.totalorder %v3144, 0
      %vm3347 = vcmp.lt.s32.totalorder %v3155, 0
      %vm3348 = vcmp.lt.s32.totalorder %v3166, 0
      %vm3349 = vcmp.lt.s32.totalorder %v3177, 0
      %vm3350 = vcmp.lt.s32.totalorder %v3188, 0
      %vm3351 = vcmp.lt.s32.totalorder %v3199, 0
      %vm3352 = vcmp.lt.s32.totalorder %v3210, 0
      %vm3353 = vcmp.lt.s32.totalorder %v3221, 0
      %vm3354 = vmand %vm3288, %vm3222
      %vm3355 = vmand %vm3289, %vm3223
      %vm3356 = vmand %vm3290, %vm3224
      %vm3357 = vmand %vm3291, %vm3225
      %vm3358 = vmand %vm3292, %vm3226
      %vm3359 = vmand %vm3293, %vm3227
      %vm3360 = vmand %vm3294, %vm3228
      %vm3361 = vmand %vm3295, %vm3229
      %vm3362 = vmand %vm3296, %vm3230
      %vm3363 = vmand %vm3297, %vm3231
      %vm3364 = vmand %vm3298, %vm3232
      %vm3365 = vmand %vm3299, %vm3233
      %vm3366 = vmand %vm3300, %vm3234
      %vm3367 = vmand %vm3301, %vm3235
      %vm3368 = vmand %vm3302, %vm3236
      %vm3369 = vmand %vm3303, %vm3237
      %vm3370 = vmand %vm3304, %vm3238
      %vm3371 = vmand %vm3305, %vm3239
      %vm3372 = vmand %vm3306, %vm3240
      %vm3373 = vmand %vm3307, %vm3241
      %vm3374 = vmand %vm3308, %vm3242
      %vm3375 = vmand %vm3309, %vm3243
      %vm3376 = vmand %vm3310, %vm3244
      %vm3377 = vmand %vm3311, %vm3245
      %vm3378 = vmand %vm3312, %vm3246
      %vm3379 = vmand %vm3313, %vm3247
      %vm3380 = vmand %vm3314, %vm3248
      %vm3381 = vmand %vm3315, %vm3249
      %vm3382 = vmand %vm3316, %vm3250
      %vm3383 = vmand %vm3317, %vm3251
      %vm3384 = vmand %vm3318, %vm3252
      %vm3385 = vmand %vm3319, %vm3253
      %vm3386 = vmand %vm3320, %vm3254
      %vm3387 = vmand %vm3321, %vm3255
      %vm3388 = vmand %vm3322, %vm3256
      %vm3389 = vmand %vm3323, %vm3257
      %vm3390 = vmand %vm3324, %vm3258
      %vm3391 = vmand %vm3325, %vm3259
      %vm3392 = vmand %vm3326, %vm3260
      %vm3393 = vmand %vm3327, %vm3261
      %vm3394 = vmand %vm3328, %vm3262
      %vm3395 = vmand %vm3329, %vm3263
      %vm3396 = vmand %vm3330, %vm3264
      %vm3397 = vmand %vm3331, %vm3265
      %vm3398 = vmand %vm3332, %vm3266
      %vm3399 = vmand %vm3333, %vm3267
      %vm3400 = vmand %vm3334, %vm3268
      %vm3401 = vmand %vm3335, %vm3269
      %vm3402 = vmand %vm3336, %vm3270
      %vm3403 = vmand %vm3337, %vm3271
      %vm3404 = vmand %vm3338, %vm3272
      %vm3405 = vmand %vm3339, %vm3273
      %vm3406 = vmand %vm3340, %vm3274
      %vm3407 = vmand %vm3341, %vm3275
      %vm3408 = vmand %vm3342, %vm3276
      %vm3409 = vmand %vm3343, %vm3277
      %vm3410 = vmand %vm3344, %vm3278
      %vm3411 = vmand %vm3345, %vm3279
      %vm3412 = vmand %vm3346, %vm3280
      %vm3413 = vmand %vm3347, %vm3281
      %vm3414 = vmand %vm3348, %vm3282
      %vm3415 = vmand %vm3349, %vm3283
      %vm3416 = vmand %vm3350, %vm3284
      %vm3417 = vmand %vm3351, %vm3285
      %vm3418 = vmand %vm3352, %vm3286
      %vm3419 = vmand %vm3353, %vm3287
      %v3420 = vadd.s32 %v2506, 33
      %v3421 = vadd.s32 %v2517, 33
      %v3422 = vadd.s32 %v2528, 33
      %v3423 = vadd.s32 %v2539, 33
      %v3424 = vadd.s32 %v2550, 33
      %v3425 = vadd.s32 %v2561, 33
      %v3426 = vadd.s32 %v2572, 33
      %v3427 = vadd.s32 %v2583, 33
      %v3428 = vadd.s32 %v2594, 33
      %v3429 = vadd.s32 %v2605, 33
      %v3430 = vadd.s32 %v2616, 33
      %v3431 = vadd.s32 %v2627, 33
      %v3432 = vadd.s32 %v2638, 33
      %v3433 = vadd.s32 %v2649, 33
      %v3434 = vadd.s32 %v2660, 33
      %v3435 = vadd.s32 %v2671, 33
      %v3436 = vadd.s32 %v2682, 33
      %v3437 = vadd.s32 %v2693, 33
      %v3438 = vadd.s32 %v2704, 33
      %v3439 = vadd.s32 %v2715, 33
      %v3440 = vadd.s32 %v2726, 33
      %v3441 = vadd.s32 %v2737, 33
      %v3442 = vadd.s32 %v2748, 33
      %v3443 = vadd.s32 %v2759, 33
      %v3444 = vadd.s32 %v2770, 33
      %v3445 = vadd.s32 %v2781, 33
      %v3446 = vadd.s32 %v2792, 33
      %v3447 = vadd.s32 %v2803, 33
      %v3448 = vadd.s32 %v2814, 33
      %v3449 = vadd.s32 %v2825, 33
      %v3450 = vadd.s32 %v2836, 33
      %v3451 = vadd.s32 %v2847, 33
      %v3452 = vadd.s32 %v2858, 33
      %v3453 = vadd.s32 %v2869, 33
      %v3454 = vadd.s32 %v2880, 33
      %v3455 = vadd.s32 %v2891, 33
      %v3456 = vadd.s32 %v2902, 33
      %v3457 = vadd.s32 %v2913, 33
      %v3458 = vadd.s32 %v2924, 33
      %v3459 = vadd.s32 %v2935, 33
      %v3460 = vadd.s32 %v2946, 33
      %v3461 = vadd.s32 %v2957, 33
      %v3462 = vadd.s32 %v2968, 33
      %v3463 = vadd.s32 %v2979, 33
      %v3464 = vadd.s32 %v2990, 33
      %v3465 = vadd.s32 %v3001, 33
      %v3466 = vadd.s32 %v3012, 33
      %v3467 = vadd.s32 %v3023, 33
      %v3468 = vadd.s32 %v3034, 33
      %v3469 = vadd.s32 %v3045, 33
      %v3470 = vadd.s32 %v3056, 33
      %v3471 = vadd.s32 %v3067, 33
      %v3472 = vadd.s32 %v3078, 33
      %v3473 = vadd.s32 %v3089, 33
      %v3474 = vadd.s32 %v3100, 33
      %v3475 = vadd.s32 %v3111, 33
      %v3476 = vadd.s32 %v3122, 33
      %v3477 = vadd.s32 %v3133, 33
      %v3478 = vadd.s32 %v3144, 33
      %v3479 = vadd.s32 %v3155, 33
      %v3480 = vadd.s32 %v3166, 33
      %v3481 = vadd.s32 %v3177, 33
      %v3482 = vadd.s32 %v3188, 33
      %v3483 = vadd.s32 %v3199, 33
      %v3484 = vadd.s32 %v3210, 33
      %v3485 = vadd.s32 %v3221, 33
      %v3486 = vsel %vm3354, %v3420, %v2506
      %v3487 = vsel %vm3355, %v3421, %v2517
      %v3488 = vsel %vm3356, %v3422, %v2528
      %v3489 = vsel %vm3357, %v3423, %v2539
      %v3490 = vsel %vm3358, %v3424, %v2550
      %v3491 = vsel %vm3359, %v3425, %v2561
      %v3492 = vsel %vm3360, %v3426, %v2572
      %v3493 = vsel %vm3361, %v3427, %v2583
      %v3494 = vsel %vm3362, %v3428, %v2594
      %v3495 = vsel %vm3363, %v3429, %v2605
      %v3496 = vsel %vm3364, %v3430, %v2616
      %v3497 = vsel %vm3365, %v3431, %v2627
      %v3498 = vsel %vm3366, %v3432, %v2638
      %v3499 = vsel %vm3367, %v3433, %v2649
      %v3500 = vsel %vm3368, %v3434, %v2660
      %v3501 = vsel %vm3369, %v3435, %v2671
      %v3502 = vsel %vm3370, %v3436, %v2682
      %v3503 = vsel %vm3371, %v3437, %v2693
      %v3504 = vsel %vm3372, %v3438, %v2704
      %v3505 = vsel %vm3373, %v3439, %v2715
      %v3506 = vsel %vm3374, %v3440, %v2726
      %v3507 = vsel %vm3375, %v3441, %v2737
      %v3508 = vsel %vm3376, %v3442, %v2748
      %v3509 = vsel %vm3377, %v3443, %v2759
      %v3510 = vsel %vm3378, %v3444, %v2770
      %v3511 = vsel %vm3379, %v3445, %v2781
      %v3512 = vsel %vm3380, %v3446, %v2792
      %v3513 = vsel %vm3381, %v3447, %v2803
      %v3514 = vsel %vm3382, %v3448, %v2814
      %v3515 = vsel %vm3383, %v3449, %v2825
      %v3516 = vsel %vm3384, %v3450, %v2836
      %v3517 = vsel %vm3385, %v3451, %v2847
      %v3518 = vsel %vm3386, %v3452, %v2858
      %v3519 = vsel %vm3387, %v3453, %v2869
      %v3520 = vsel %vm3388, %v3454, %v2880
      %v3521 = vsel %vm3389, %v3455, %v2891
      %v3522 = vsel %vm3390, %v3456, %v2902
      %v3523 = vsel %vm3391, %v3457, %v2913
      %v3524 = vsel %vm3392, %v3458, %v2924
      %v3525 = vsel %vm3393, %v3459, %v2935
      %v3526 = vsel %vm3394, %v3460, %v2946
      %v3527 = vsel %vm3395, %v3461, %v2957
      %v3528 = vsel %vm3396, %v3462, %v2968
      %v3529 = vsel %vm3397, %v3463, %v2979
      %v3530 = vsel %vm3398, %v3464, %v2990
      %v3531 = vsel %vm3399, %v3465, %v3001
      %v3532 = vsel %vm3400, %v3466, %v3012
      %v3533 = vsel %vm3401, %v3467, %v3023
      %v3534 = vsel %vm3402, %v3468, %v3034
      %v3535 = vsel %vm3403, %v3469, %v3045
      %v3536 = vsel %vm3404, %v3470, %v3056
      %v3537 = vsel %vm3405, %v3471, %v3067
      %v3538 = vsel %vm3406, %v3472, %v3078
      %v3539 = vsel %vm3407, %v3473, %v3089
      %v3540 = vsel %vm3408, %v3474, %v3100
      %v3541 = vsel %vm3409, %v3475, %v3111
      %v3542 = vsel %vm3410, %v3476, %v3122
      %v3543 = vsel %vm3411, %v3477, %v3133
      %v3544 = vsel %vm3412, %v3478, %v3144
      %v3545 = vsel %vm3413, %v3479, %v3155
      %v3546 = vsel %vm3414, %v3480, %v3166
      %v3547 = vsel %vm3415, %v3481, %v3177
      %v3548 = vsel %vm3416, %v3482, %v3188
      %v3549 = vsel %vm3417, %v3483, %v3199
      %v3550 = vsel %vm3418, %v3484, %v3210
      %v3551 = vsel %vm3419, %v3485, %v3221
      %vm3552 = vcmp.eq.s32.totalorder %v3486, 32
      %vm3553 = vcmp.eq.s32.totalorder %v3487, 32
      %vm3554 = vcmp.eq.s32.totalorder %v3488, 32
      %vm3555 = vcmp.eq.s32.totalorder %v3489, 32
      %vm3556 = vcmp.eq.s32.totalorder %v3490, 32
      %vm3557 = vcmp.eq.s32.totalorder %v3491, 32
      %vm3558 = vcmp.eq.s32.totalorder %v3492, 32
      %vm3559 = vcmp.eq.s32.totalorder %v3493, 32
      %vm3560 = vcmp.eq.s32.totalorder %v3494, 32
      %vm3561 = vcmp.eq.s32.totalorder %v3495, 32
      %vm3562 = vcmp.eq.s32.totalorder %v3496, 32
      %vm3563 = vcmp.eq.s32.totalorder %v3497, 32
      %vm3564 = vcmp.eq.s32.totalorder %v3498, 32
      %vm3565 = vcmp.eq.s32.totalorder %v3499, 32
      %vm3566 = vcmp.eq.s32.totalorder %v3500, 32
      %vm3567 = vcmp.eq.s32.totalorder %v3501, 32
      %vm3568 = vcmp.eq.s32.totalorder %v3502, 32
      %vm3569 = vcmp.eq.s32.totalorder %v3503, 32
      %vm3570 = vcmp.eq.s32.totalorder %v3504, 32
      %vm3571 = vcmp.eq.s32.totalorder %v3505, 32
      %vm3572 = vcmp.eq.s32.totalorder %v3506, 32
      %vm3573 = vcmp.eq.s32.totalorder %v3507, 32
      %vm3574 = vcmp.eq.s32.totalorder %v3508, 32
      %vm3575 = vcmp.eq.s32.totalorder %v3509, 32
      %vm3576 = vcmp.eq.s32.totalorder %v3510, 32
      %vm3577 = vcmp.eq.s32.totalorder %v3511, 32
      %vm3578 = vcmp.eq.s32.totalorder %v3512, 32
      %vm3579 = vcmp.eq.s32.totalorder %v3513, 32
      %vm3580 = vcmp.eq.s32.totalorder %v3514, 32
      %vm3581 = vcmp.eq.s32.totalorder %v3515, 32
      %vm3582 = vcmp.eq.s32.totalorder %v3516, 32
      %vm3583 = vcmp.eq.s32.totalorder %v3517, 32
      %vm3584 = vcmp.eq.s32.totalorder %v3518, 32
      %vm3585 = vcmp.eq.s32.totalorder %v3519, 32
      %vm3586 = vcmp.eq.s32.totalorder %v3520, 32
      %vm3587 = vcmp.eq.s32.totalorder %v3521, 32
      %vm3588 = vcmp.eq.s32.totalorder %v3522, 32
      %vm3589 = vcmp.eq.s32.totalorder %v3523, 32
      %vm3590 = vcmp.eq.s32.totalorder %v3524, 32
      %vm3591 = vcmp.eq.s32.totalorder %v3525, 32
      %vm3592 = vcmp.eq.s32.totalorder %v3526, 32
      %vm3593 = vcmp.eq.s32.totalorder %v3527, 32
      %vm3594 = vcmp.eq.s32.totalorder %v3528, 32
      %vm3595 = vcmp.eq.s32.totalorder %v3529, 32
      %vm3596 = vcmp.eq.s32.totalorder %v3530, 32
      %vm3597 = vcmp.eq.s32.totalorder %v3531, 32
      %vm3598 = vcmp.eq.s32.totalorder %v3532, 32
      %vm3599 = vcmp.eq.s32.totalorder %v3533, 32
      %vm3600 = vcmp.eq.s32.totalorder %v3534, 32
      %vm3601 = vcmp.eq.s32.totalorder %v3535, 32
      %vm3602 = vcmp.eq.s32.totalorder %v3536, 32
      %vm3603 = vcmp.eq.s32.totalorder %v3537, 32
      %vm3604 = vcmp.eq.s32.totalorder %v3538, 32
      %vm3605 = vcmp.eq.s32.totalorder %v3539, 32
      %vm3606 = vcmp.eq.s32.totalorder %v3540, 32
      %vm3607 = vcmp.eq.s32.totalorder %v3541, 32
      %vm3608 = vcmp.eq.s32.totalorder %v3542, 32
      %vm3609 = vcmp.eq.s32.totalorder %v3543, 32
      %vm3610 = vcmp.eq.s32.totalorder %v3544, 32
      %vm3611 = vcmp.eq.s32.totalorder %v3545, 32
      %vm3612 = vcmp.eq.s32.totalorder %v3546, 32
      %vm3613 = vcmp.eq.s32.totalorder %v3547, 32
      %vm3614 = vcmp.eq.s32.totalorder %v3548, 32
      %vm3615 = vcmp.eq.s32.totalorder %v3549, 32
      %vm3616 = vcmp.eq.s32.totalorder %v3550, 32
      %vm3617 = vcmp.eq.s32.totalorder %v3551, 32
      %v3618 = vsel %vm3552, -1e+30, %v2233
      %v3619 = vsel %vm3553, -1e+30, %v2236
      %v3620 = vsel %vm3554, -1e+30, %v2239
      %v3621 = vsel %vm3555, -1e+30, %v2242
      %v3622 = vsel %vm3556, -1e+30, %v2245
      %v3623 = vsel %vm3557, -1e+30, %v2248
      %v3624 = vsel %vm3558, -1e+30, %v2251
      %v3625 = vsel %vm3559, -1e+30, %v2254
      %v3626 = vsel %vm3560, -1e+30, %v2257
      %v3627 = vsel %vm3561, -1e+30, %v2260
      %v3628 = vsel %vm3562, -1e+30, %v2263
      %v3629 = vsel %vm3563, -1e+30, %v2266
      %v3630 = vsel %vm3564, -1e+30, %v2269
      %v3631 = vsel %vm3565, -1e+30, %v2272
      %v3632 = vsel %vm3566, -1e+30, %v2275
      %v3633 = vsel %vm3567, -1e+30, %v2278
      %v3634 = vsel %vm3568, -1e+30, %v2281
      %v3635 = vsel %vm3569, -1e+30, %v2284
      %v3636 = vsel %vm3570, -1e+30, %v2287
      %v3637 = vsel %vm3571, -1e+30, %v2290
      %v3638 = vsel %vm3572, -1e+30, %v2293
      %v3639 = vsel %vm3573, -1e+30, %v2296
      %v3640 = vsel %vm3574, -1e+30, %v2299
      %v3641 = vsel %vm3575, -1e+30, %v2302
      %v3642 = vsel %vm3576, -1e+30, %v2305
      %v3643 = vsel %vm3577, -1e+30, %v2308
      %v3644 = vsel %vm3578, -1e+30, %v2311
      %v3645 = vsel %vm3579, -1e+30, %v2314
      %v3646 = vsel %vm3580, -1e+30, %v2317
      %v3647 = vsel %vm3581, -1e+30, %v2320
      %v3648 = vsel %vm3582, -1e+30, %v2323
      %v3649 = vsel %vm3583, -1e+30, %v2326
      %v3650 = vsel %vm3584, -1e+30, %v2329
      %v3651 = vsel %vm3585, -1e+30, %v2332
      %v3652 = vsel %vm3586, -1e+30, %v2335
      %v3653 = vsel %vm3587, -1e+30, %v2338
      %v3654 = vsel %vm3588, -1e+30, %v2341
      %v3655 = vsel %vm3589, -1e+30, %v2344
      %v3656 = vsel %vm3590, -1e+30, %v2347
      %v3657 = vsel %vm3591, -1e+30, %v2350
      %v3658 = vsel %vm3592, -1e+30, %v2353
      %v3659 = vsel %vm3593, -1e+30, %v2356
      %v3660 = vsel %vm3594, -1e+30, %v2359
      %v3661 = vsel %vm3595, -1e+30, %v2362
      %v3662 = vsel %vm3596, -1e+30, %v2365
      %v3663 = vsel %vm3597, -1e+30, %v2368
      %v3664 = vsel %vm3598, -1e+30, %v2371
      %v3665 = vsel %vm3599, -1e+30, %v2374
      %v3666 = vsel %vm3600, -1e+30, %v2377
      %v3667 = vsel %vm3601, -1e+30, %v2380
      %v3668 = vsel %vm3602, -1e+30, %v2383
      %v3669 = vsel %vm3603, -1e+30, %v2386
      %v3670 = vsel %vm3604, -1e+30, %v2389
      %v3671 = vsel %vm3605, -1e+30, %v2392
      %v3672 = vsel %vm3606, -1e+30, %v2395
      %v3673 = vsel %vm3607, -1e+30, %v2398
      %v3674 = vsel %vm3608, -1e+30, %v2401
      %v3675 = vsel %vm3609, -1e+30, %v2404
      %v3676 = vsel %vm3610, -1e+30, %v2407
      %v3677 = vsel %vm3611, -1e+30, %v2410
      %v3678 = vsel %vm3612, -1e+30, %v2413
      %v3679 = vsel %vm3613, -1e+30, %v2416
      %v3680 = vsel %vm3614, -1e+30, %v2419
      %v3681 = vsel %vm3615, -1e+30, %v2422
      %v3682 = vsel %vm3616, -1e+30, %v2425
      %v3683 = vsel %vm3617, -1e+30, %v2428
      %v3684 = vld [vmem:[#allocation2] sm:$0x1]
      %v3685 = vmax.f32 %v3618, %v3622
      %v3686 = vmax.f32 %v3619, %v3623
      %v3687 = vmax.f32 %v3620, %v3624
      %v3688 = vmax.f32 %v3621, %v3625
      %v3689 = vmax.f32 %v3685, %v3626
      %v3690 = vmax.f32 %v3686, %v3627
      %v3691 = vmax.f32 %v3687, %v3628
      %v3692 = vmax.f32 %v3688, %v3629
      %v3693 = vmax.f32 %v3689, %v3630
      %v3694 = vmax.f32 %v3690, %v3631
      %v3695 = vmax.f32 %v3691, %v3632
      %v3696 = vmax.f32 %v3692, %v3633
      %v3697 = vmax.f32 %v3693, %v3634
      %v3698 = vmax.f32 %v3694, %v3635
      %v3699 = vmax.f32 %v3695, %v3636
      %v3700 = vmax.f32 %v3696, %v3637
      %v3701 = vmax.f32 %v3697, %v3638
      %v3702 = vmax.f32 %v3698, %v3639
      %v3703 = vmax.f32 %v3699, %v3640
      %v3704 = vmax.f32 %v3700, %v3641
      %v3705 = vmax.f32 %v3701, %v3642
      %v3706 = vmax.f32 %v3702, %v3643
      %v3707 = vmax.f32 %v3703, %v3644
      %v3708 = vmax.f32 %v3704, %v3645
      %v3709 = vmax.f32 %v3705, %v3646
      %v3710 = vmax.f32 %v3706, %v3647
      %v3711 = vmax.f32 %v3707, %v3648
      %v3712 = vmax.f32 %v3708, %v3649
      %v3713 = vmax.f32 %v3709, %v3650
      %v3714 = vmax.f32 %v3710, %v3651
      %v3715 = vmax.f32 %v3711, %v3652
      %v3716 = vmax.f32 %v3712, %v3653
      %v3717 = vmax.f32 %v3713, %v3654
      %v3718 = vmax.f32 %v3714, %v3655
      %v3719 = vmax.f32 %v3715, %v3656
      %v3720 = vmax.f32 %v3716, %v3657
      %v3721 = vmax.f32 %v3717, %v3658
      %v3722 = vmax.f32 %v3718, %v3659
      %v3723 = vmax.f32 %v3719, %v3660
      %v3724 = vmax.f32 %v3720, %v3661
      %v3725 = vmax.f32 %v3721, %v3662
      %v3726 = vmax.f32 %v3722, %v3663
      %v3727 = vmax.f32 %v3723, %v3664
      %v3728 = vmax.f32 %v3724, %v3665
      %v3729 = vmax.f32 %v3725, %v3666
      %v3730 = vmax.f32 %v3726, %v3667
      %v3731 = vmax.f32 %v3727, %v3668
      %v3732 = vmax.f32 %v3728, %v3669
      %v3733 = vmax.f32 %v3729, %v3670
      %v3734 = vmax.f32 %v3730, %v3671
      %v3735 = vmax.f32 %v3731, %v3672
      %v3736 = vmax.f32 %v3732, %v3673
      %v3737 = vmax.f32 %v3733, %v3674
      %v3738 = vmax.f32 %v3734, %v3675
      %v3739 = vmax.f32 %v3735, %v3676
      %v3740 = vmax.f32 %v3736, %v3677
      %v3741 = vmax.f32 %v3737, %v3678
      %v3742 = vmax.f32 %v3738, %v3679
      %v3743 = vmax.f32 %v3739, %v3680
      %v3744 = vmax.f32 %v3740, %v3681
      %v3745 = vmax.f32 %v3741, %v3682
      %v3746 = vmax.f32 %v3742, %v3683
      %v3747 = vmax.f32 %v3745, %v3746
      %v3748 = vmax.f32 %v3743, %v3744
      %v3749 = vmax.f32 %v3747, %v3748
      %v3750 = vrot.slane %v3749, 4
      %v3751 = vmax.f32 %v3749, %v3750
      %v3752 = vrot.slane %v3751, 2
      %v3753 = vmax.f32 %v3751, %v3752
      %v3754 = vrot.slane %v3753, 1
      %v3755 = vmax.f32 %v3753, %v3754
      %v3756 = vmax.f32 %v3684, %v3755
      %v3757 = vsub.f32 %v3684, %v3756
      %v3758 = vmul.f32 %v3757, 1.442695
      %v3759 = vpow.pop %v3758
      %v3761 = vlaneseq
      %v3762 = vshrl.u32 %v3761, 7
      %v3763 = vsub.s32 0, %v3762
      %v3764 = vrot.slane %v3756, %v3763
      %v3766 = vsub.f32 %v3618, %v3764
      %v3767 = vsub.f32 %v3619, %v3764
      %v3768 = vsub.f32 %v3620, %v3764
      %v3769 = vsub.f32 %v3621, %v3764
      %v3770 = vsub.f32 %v3622, %v3764
      %v3771 = vsub.f32 %v3623, %v3764
      %v3772 = vsub.f32 %v3624, %v3764
      %v3773 = vsub.f32 %v3625, %v3764
      %v3774 = vsub.f32 %v3626, %v3764
      %v3775 = vsub.f32 %v3627, %v3764
      %v3776 = vsub.f32 %v3628, %v3764
      %v3777 = vsub.f32 %v3629, %v3764
      %v3778 = vsub.f32 %v3630, %v3764
      %v3779 = vsub.f32 %v3631, %v3764
      %v3780 = vsub.f32 %v3632, %v3764
      %v3781 = vsub.f32 %v3633, %v3764
      %v3782 = vsub.f32 %v3634, %v3764
      %v3783 = vsub.f32 %v3635, %v3764
      %v3784 = vsub.f32 %v3636, %v3764
      %v3785 = vsub.f32 %v3637, %v3764
      %v3786 = vsub.f32 %v3638, %v3764
      %v3787 = vsub.f32 %v3639, %v3764
      %v3788 = vsub.f32 %v3640, %v3764
      %v3789 = vsub.f32 %v3641, %v3764
      %v3790 = vsub.f32 %v3642, %v3764
      %v3791 = vsub.f32 %v3643, %v3764
      %v3792 = vsub.f32 %v3644, %v3764
      %v3793 = vsub.f32 %v3645, %v3764
      %v3794 = vsub.f32 %v3646, %v3764
      %v3795 = vsub.f32 %v3647, %v3764
      %v3796 = vsub.f32 %v3648, %v3764
      %v3797 = vsub.f32 %v3649, %v3764
      %v3798 = vsub.f32 %v3650, %v3764
      %v3799 = vsub.f32 %v3651, %v3764
      %v3800 = vsub.f32 %v3652, %v3764
      %v3801 = vsub.f32 %v3653, %v3764
      %v3802 = vsub.f32 %v3654, %v3764
      %v3803 = vsub.f32 %v3655, %v3764
      %v3804 = vsub.f32 %v3656, %v3764
      %v3805 = vsub.f32 %v3657, %v3764
      %v3806 = vsub.f32 %v3658, %v3764
      %v3807 = vsub.f32 %v3659, %v3764
      %v3808 = vsub.f32 %v3660, %v3764
      %v3809 = vsub.f32 %v3661, %v3764
      %v3810 = vsub.f32 %v3662, %v3764
      %v3811 = vsub.f32 %v3663, %v3764
      %v3812 = vsub.f32 %v3664, %v3764
      %v3813 = vsub.f32 %v3665, %v3764
      %v3814 = vsub.f32 %v3666, %v3764
      %v3815 = vsub.f32 %v3667, %v3764
      %v3816 = vsub.f32 %v3668, %v3764
      %v3817 = vsub.f32 %v3669, %v3764
      %v3818 = vsub.f32 %v3670, %v3764
      %v3819 = vsub.f32 %v3671, %v3764
      %v3820 = vsub.f32 %v3672, %v3764
      %v3821 = vsub.f32 %v3673, %v3764
      %v3822 = vsub.f32 %v3674, %v3764
      %v3823 = vsub.f32 %v3675, %v3764
      %v3824 = vsub.f32 %v3676, %v3764
      %v3825 = vsub.f32 %v3677, %v3764
      %v3826 = vsub.f32 %v3678, %v3764
      %v3827 = vsub.f32 %v3679, %v3764
      %v3828 = vsub.f32 %v3680, %v3764
      %v3829 = vsub.f32 %v3681, %v3764
      %v3830 = vsub.f32 %v3682, %v3764
      %v3831 = vsub.f32 %v3683, %v3764
      %v3832 = vmul.f32 %v3766, 1.442695
      %v3833 = vpow.pop %v3832
      %v3834 = vmul.f32 %v3767, 1.442695
      %v3835 = vpow.pop %v3834
      %v3836 = vmul.f32 %v3768, 1.442695
      %v3837 = vpow.pop %v3836
      %v3838 = vmul.f32 %v3769, 1.442695
      %v3839 = vpow.pop %v3838
      %v3840 = vmul.f32 %v3770, 1.442695
      %v3841 = vpow.pop %v3840
      %v3842 = vmul.f32 %v3771, 1.442695
      %v3843 = vpow.pop %v3842
      %v3844 = vmul.f32 %v3772, 1.442695
      %v3845 = vpow.pop %v3844
      %v3846 = vmul.f32 %v3773, 1.442695
      %v3847 = vpow.pop %v3846
      %v3848 = vmul.f32 %v3774, 1.442695
      %v3849 = vpow.pop %v3848
      %v3850 = vmul.f32 %v3775, 1.442695
      %v3851 = vpow.pop %v3850
      %v3852 = vmul.f32 %v3776, 1.442695
      %v3853 = vpow.pop %v3852
      %v3854 = vmul.f32 %v3777, 1.442695
      %v3855 = vpow.pop %v3854
      %v3856 = vmul.f32 %v3778, 1.442695
      %v3857 = vpow.pop %v3856
      %v3858 = vmul.f32 %v3779, 1.442695
      %v3859 = vpow.pop %v3858
      %v3860 = vmul.f32 %v3780, 1.442695
      %v3861 = vpow.pop %v3860
      %v3862 = vmul.f32 %v3781, 1.442695
      %v3863 = vpow.pop %v3862
      %v3864 = vmul.f32 %v3782, 1.442695
      %v3865 = vpow.pop %v3864
      %v3866 = vmul.f32 %v3783, 1.442695
      %v3867 = vpow.pop %v3866
      %v3868 = vmul.f32 %v3784, 1.442695
      %v3869 = vpow.pop %v3868
      %v3870 = vmul.f32 %v3785, 1.442695
      %v3871 = vpow.pop %v3870
      %v3872 = vmul.f32 %v3786, 1.442695
      %v3873 = vpow.pop %v3872
      %v3874 = vmul.f32 %v3787, 1.442695
      %v3875 = vpow.pop %v3874
      %v3876 = vmul.f32 %v3788, 1.442695
      %v3877 = vpow.pop %v3876
      %v3878 = vmul.f32 %v3789, 1.442695
      %v3879 = vpow.pop %v3878
      %v3880 = vmul.f32 %v3790, 1.442695
      %v3881 = vpow.pop %v3880
      %v3882 = vmul.f32 %v3791, 1.442695
      %v3883 = vpow.pop %v3882
      %v3884 = vmul.f32 %v3792, 1.442695
      %v3885 = vpow.pop %v3884
      %v3886 = vmul.f32 %v3793, 1.442695
      %v3887 = vpow.pop %v3886
      %v3888 = vmul.f32 %v3794, 1.442695
      %v3889 = vpow.pop %v3888
      %v3890 = vmul.f32 %v3795, 1.442695
      %v3891 = vpow.pop %v3890
      %v3892 = vmul.f32 %v3796, 1.442695
      %v3893 = vpow.pop %v3892
      %v3894 = vmul.f32 %v3797, 1.442695
      %v3895 = vpow.pop %v3894
      %v3896 = vmul.f32 %v3798, 1.442695
      %v3897 = vpow.pop %v3896
      %v3898 = vmul.f32 %v3799, 1.442695
      %v3899 = vpow.pop %v3898
      %v3900 = vmul.f32 %v3800, 1.442695
      %v3901 = vpow.pop %v3900
      %v3902 = vmul.f32 %v3801, 1.442695
      %v3903 = vpow.pop %v3902
      %v3904 = vmul.f32 %v3802, 1.442695
      %v3905 = vpow.pop %v3904
      %v3906 = vmul.f32 %v3803, 1.442695
      %v3907 = vpow.pop %v3906
      %v3908 = vmul.f32 %v3804, 1.442695
      %v3909 = vpow.pop %v3908
      %v3910 = vmul.f32 %v3805, 1.442695
      %v3911 = vpow.pop %v3910
      %v3912 = vmul.f32 %v3806, 1.442695
      %v3913 = vpow.pop %v3912
      %v3914 = vmul.f32 %v3807, 1.442695
      %v3915 = vpow.pop %v3914
      %v3916 = vmul.f32 %v3808, 1.442695
      %v3917 = vpow.pop %v3916
      %v3918 = vmul.f32 %v3809, 1.442695
      %v3919 = vpow.pop %v3918
      %v3920 = vmul.f32 %v3810, 1.442695
      %v3921 = vpow.pop %v3920
      %v3922 = vmul.f32 %v3811, 1.442695
      %v3923 = vpow.pop %v3922
      %v3924 = vmul.f32 %v3812, 1.442695
      %v3925 = vpow.pop %v3924
      %v3926 = vmul.f32 %v3813, 1.442695
      %v3927 = vpow.pop %v3926
      %v3928 = vmul.f32 %v3814, 1.442695
      %v3929 = vpow.pop %v3928
      %v3930 = vmul.f32 %v3815, 1.442695
      %v3931 = vpow.pop %v3930
      %v3932 = vmul.f32 %v3816, 1.442695
      %v3933 = vpow.pop %v3932
      %v3934 = vmul.f32 %v3817, 1.442695
      %v3935 = vpow.pop %v3934
      %v3936 = vmul.f32 %v3818, 1.442695
      %v3937 = vpow.pop %v3936
      %v3938 = vmul.f32 %v3819, 1.442695
      %v3939 = vpow.pop %v3938
      %v3940 = vmul.f32 %v3820, 1.442695
      %v3941 = vpow.pop %v3940
      %v3942 = vmul.f32 %v3821, 1.442695
      %v3943 = vpow.pop %v3942
      %v3944 = vmul.f32 %v3822, 1.442695
      %v3945 = vpow.pop %v3944
      %v3946 = vmul.f32 %v3823, 1.442695
      %v3947 = vpow.pop %v3946
      %v3948 = vmul.f32 %v3824, 1.442695
      %v3949 = vpow.pop %v3948
      %v3950 = vmul.f32 %v3825, 1.442695
      %v3951 = vpow.pop %v3950
      %v3952 = vmul.f32 %v3826, 1.442695
      %v3953 = vpow.pop %v3952
      %v3954 = vmul.f32 %v3827, 1.442695
      %v3955 = vpow.pop %v3954
      %v3956 = vmul.f32 %v3828, 1.442695
      %v3957 = vpow.pop %v3956
      %v3958 = vmul.f32 %v3829, 1.442695
      %v3959 = vpow.pop %v3958
      %v3960 = vmul.f32 %v3830, 1.442695
      %v3961 = vpow.pop %v3960
      %v3962 = vmul.f32 %v3831, 1.442695
      %v3963 = vpow.pop %v3962
      %v3964 = vld [vmem:[#allocation3] sm:$0x1]
      %v3965 = vmul.f32 %v3759, %v3964
      %vm3966 = vcmask 7168
      %v3967 = vsel %vm3966, %v3833, 0.0
      %v3968 = vsel %vm3966, %v3835, 0.0
      %v3969 = vadd.f32 %v3967, %v3968
      %v3970 = vsel %vm3966, %v3837, 0.0
      %v3971 = vadd.f32 %v3969, %v3970
      %v3972 = vsel %vm3966, %v3839, 0.0
      %v3973 = vadd.f32 %v3971, %v3972
      %v3974 = vsel %vm3966, %v3841, 0.0
      %v3975 = vadd.f32 %v3973, %v3974
      %v3976 = vsel %vm3966, %v3843, 0.0
      %v3977 = vadd.f32 %v3975, %v3976
      %v3978 = vsel %vm3966, %v3845, 0.0
      %v3979 = vadd.f32 %v3977, %v3978
      %v3980 = vsel %vm3966, %v3847, 0.0
      %v3981 = vadd.f32 %v3979, %v3980
      %v3982 = vsel %vm3966, %v3849, 0.0
      %v3983 = vadd.f32 %v3981, %v3982
      %v3984 = vsel %vm3966, %v3851, 0.0
      %v3985 = vadd.f32 %v3983, %v3984
      %v3986 = vsel %vm3966, %v3853, 0.0
      %v3987 = vadd.f32 %v3985, %v3986
      %v3988 = vsel %vm3966, %v3855, 0.0
      %v3989 = vadd.f32 %v3987, %v3988
      %v3990 = vsel %vm3966, %v3857, 0.0
      %v3991 = vadd.f32 %v3989, %v3990
      %v3992 = vsel %vm3966, %v3859, 0.0
      %v3993 = vadd.f32 %v3991, %v3992
      %v3994 = vsel %vm3966, %v3861, 0.0
      %v3995 = vadd.f32 %v3993, %v3994
      %v3996 = vsel %vm3966, %v3863, 0.0
      %v3997 = vadd.f32 %v3995, %v3996
      %v3998 = vsel %vm3966, %v3865, 0.0
      %v3999 = vadd.f32 %v3997, %v3998
      %v4000 = vsel %vm3966, %v3867, 0.0
      %v4001 = vadd.f32 %v3999, %v4000
      %v4002 = vsel %vm3966, %v3869, 0.0
      %v4003 = vadd.f32 %v4001, %v4002
      %v4004 = vsel %vm3966, %v3871, 0.0
      %v4005 = vadd.f32 %v4003, %v4004
      %v4006 = vsel %vm3966, %v3873, 0.0
      %v4007 = vadd.f32 %v4005, %v4006
      %v4008 = vsel %vm3966, %v3875, 0.0
      %v4009 = vadd.f32 %v4007, %v4008
      %v4010 = vsel %vm3966, %v3877, 0.0
      %v4011 = vadd.f32 %v4009, %v4010
      %v4012 = vsel %vm3966, %v3879, 0.0
      %v4013 = vadd.f32 %v4011, %v4012
      %v4014 = vsel %vm3966, %v3881, 0.0
      %v4015 = vadd.f32 %v4013, %v4014
      %v4016 = vsel %vm3966, %v3883, 0.0
      %v4017 = vadd.f32 %v4015, %v4016
      %v4018 = vsel %vm3966, %v3885, 0.0
      %v4019 = vadd.f32 %v4017, %v4018
      %v4020 = vsel %vm3966, %v3887, 0.0
      %v4021 = vadd.f32 %v4019, %v4020
      %v4022 = vsel %vm3966, %v3889, 0.0
      %v4023 = vadd.f32 %v4021, %v4022
      %v4024 = vsel %vm3966, %v3891, 0.0
      %v4025 = vadd.f32 %v4023, %v4024
      %v4026 = vsel %vm3966, %v3893, 0.0
      %v4027 = vadd.f32 %v4025, %v4026
      %v4028 = vsel %vm3966, %v3895, 0.0
      %v4029 = vadd.f32 %v4027, %v4028
      %v4030 = vsel %vm3966, %v3897, 0.0
      %v4031 = vadd.f32 %v4029, %v4030
      %v4032 = vsel %vm3966, %v3899, 0.0
      %v4033 = vadd.f32 %v4031, %v4032
      %v4034 = vsel %vm3966, %v3901, 0.0
      %v4035 = vadd.f32 %v4033, %v4034
      %v4036 = vsel %vm3966, %v3903, 0.0
      %v4037 = vadd.f32 %v4035, %v4036
      %v4038 = vsel %vm3966, %v3905, 0.0
      %v4039 = vadd.f32 %v4037, %v4038
      %v4040 = vsel %vm3966, %v3907, 0.0
      %v4041 = vadd.f32 %v4039, %v4040
      %v4042 = vsel %vm3966, %v3909, 0.0
      %v4043 = vadd.f32 %v4041, %v4042
      %v4044 = vsel %vm3966, %v3911, 0.0
      %v4045 = vadd.f32 %v4043, %v4044
      %v4046 = vsel %vm3966, %v3913, 0.0
      %v4047 = vadd.f32 %v4045, %v4046
      %v4048 = vsel %vm3966, %v3915, 0.0
      %v4049 = vadd.f32 %v4047, %v4048
      %v4050 = vsel %vm3966, %v3917, 0.0
      %v4051 = vadd.f32 %v4049, %v4050
      %v4052 = vsel %vm3966, %v3919, 0.0
      %v4053 = vadd.f32 %v4051, %v4052
      %v4054 = vsel %vm3966, %v3921, 0.0
      %v4055 = vadd.f32 %v4053, %v4054
      %v4056 = vsel %vm3966, %v3923, 0.0
      %v4057 = vadd.f32 %v4055, %v4056
      %v4058 = vsel %vm3966, %v3925, 0.0
      %v4059 = vadd.f32 %v4057, %v4058
      %v4060 = vsel %vm3966, %v3927, 0.0
      %v4061 = vadd.f32 %v4059, %v4060
      %v4062 = vsel %vm3966, %v3929, 0.0
      %v4063 = vadd.f32 %v4061, %v4062
      %v4064 = vsel %vm3966, %v3931, 0.0
      %v4065 = vadd.f32 %v4063, %v4064
      %v4066 = vsel %vm3966, %v3933, 0.0
      %v4067 = vadd.f32 %v4065, %v4066
      %v4068 = vsel %vm3966, %v3935, 0.0
      %v4069 = vadd.f32 %v4067, %v4068
      %v4070 = vsel %vm3966, %v3937, 0.0
      %v4071 = vadd.f32 %v4069, %v4070
      %v4072 = vsel %vm3966, %v3939, 0.0
      %v4073 = vadd.f32 %v4071, %v4072
      %v4074 = vsel %vm3966, %v3941, 0.0
      %v4075 = vadd.f32 %v4073, %v4074
      %v4076 = vsel %vm3966, %v3943, 0.0
      %v4077 = vadd.f32 %v4075, %v4076
      %v4078 = vsel %vm3966, %v3945, 0.0
      %v4079 = vadd.f32 %v4077, %v4078
      %v4080 = vsel %vm3966, %v3947, 0.0
      %v4081 = vadd.f32 %v4079, %v4080
      %v4082 = vsel %vm3966, %v3949, 0.0
      %v4083 = vadd.f32 %v4081, %v4082
      %v4084 = vsel %vm3966, %v3951, 0.0
      %v4085 = vadd.f32 %v4083, %v4084
      %v4086 = vsel %vm3966, %v3953, 0.0
      %v4087 = vadd.f32 %v4085, %v4086
      %v4088 = vsel %vm3966, %v3955, 0.0
      %v4089 = vadd.f32 %v4087, %v4088
      %v4090 = vsel %vm3966, %v3957, 0.0
      %v4091 = vadd.f32 %v4089, %v4090
      %v4092 = vsel %vm3966, %v3959, 0.0
      %v4093 = vadd.f32 %v4091, %v4092
      %v4094 = vsel %vm3966, %v3961, 0.0
      %v4095 = vadd.f32 %v4093, %v4094
      %v4096 = vsel %vm3966, %v3963, 0.0
      %v4097 = vadd.f32 %v4095, %v4096
      %v4098 = vrot.slane %v4097, 4
      %v4099 = vadd.f32 %v4097, %v4098
      %v4100 = vrot.slane %v4099, 2
      %v4101 = vadd.f32 %v4099, %v4100
      %v4102 = vrot.slane %v4101, 1
      %v4103 = vadd.f32 %v4101, %v4102
      %v4104 = vadd.f32 %v3965, %v4103
      %vm4105 = vcmask 0
      %4106 = vst.msk [vmem:[#allocation3] sm:$0x1] %vm4105, %v4104
      %4107 = vst.msk [vmem:[#allocation2] sm:$0x1] %vm4105, %v3756
      %v4108 = vpack.c.bf16 %v3835, %v3833
      %v4109 = vpack.c.bf16 %v3839, %v3837
      %v4110 = vpack.c.bf16 %v3843, %v3841
      %v4111 = vpack.c.bf16 %v3847, %v3845
      %v4112 = vpack.c.bf16 %v3851, %v3849
      %v4113 = vpack.c.bf16 %v3855, %v3853
      %v4114 = vpack.c.bf16 %v3859, %v3857
      %v4115 = vpack.c.bf16 %v3863, %v3861
      %v4116 = vpack.c.bf16 %v3867, %v3865
      %v4117 = vpack.c.bf16 %v3871, %v3869
      %v4118 = vpack.c.bf16 %v3875, %v3873
      %v4119 = vpack.c.bf16 %v3879, %v3877
      %v4120 = vpack.c.bf16 %v3883, %v3881
      %v4121 = vpack.c.bf16 %v3887, %v3885
      %v4122 = vpack.c.bf16 %v3891, %v3889
      %v4123 = vpack.c.bf16 %v3895, %v3893
      %v4124 = vpack.c.bf16 %v3899, %v3897
      %v4125 = vpack.c.bf16 %v3903, %v3901
      %v4126 = vpack.c.bf16 %v3907, %v3905
      %v4127 = vpack.c.bf16 %v3911, %v3909
      %v4128 = vpack.c.bf16 %v3915, %v3913
      %v4129 = vpack.c.bf16 %v3919, %v3917
      %v4130 = vpack.c.bf16 %v3923, %v3921
      %v4131 = vpack.c.bf16 %v3927, %v3925
      %v4132 = vpack.c.bf16 %v3931, %v3929
      %v4133 = vpack.c.bf16 %v3935, %v3933
      %v4134 = vpack.c.bf16 %v3939, %v3937
      %v4135 = vpack.c.bf16 %v3943, %v3941
      %v4136 = vpack.c.bf16 %v3947, %v3945
      %v4137 = vpack.c.bf16 %v3951, %v3949
      %v4138 = vpack.c.bf16 %v3955, %v3953
      %v4139 = vpack.c.bf16 %v3959, %v3957
      %v4140 = vpack.c.bf16 %v3963, %v3961
      %v4141 = vld [vmem:[%s251] sm:$0xf]
      %v4142 = vld [vmem:[%s251 + $0x4] sm:$0xf]
      %v4143 = vld [vmem:[%s251 + $0x8] sm:$0xf]
      %v4144 = vld [vmem:[%s251 + $0xc] sm:$0xf]
      %v4145 = vld [vmem:[%s251 + $0x10] sm:$0xf]
      %v4146 = vld [vmem:[%s251 + $0x14] sm:$0xf]
      %v4147 = vld [vmem:[%s251 + $0x18] sm:$0xf]
      %v4148 = vld [vmem:[%s251 + $0x1c] sm:$0xf]
      %v4149 = vld [vmem:[%s251 + $0x20] sm:$0xf]
      %v4150 = vld [vmem:[%s251 + $0x24] sm:$0xf]
      %v4151 = vld [vmem:[%s251 + $0x28] sm:$0xf]
      %v4152 = vld [vmem:[%s251 + $0x2c] sm:$0xf]
      %v4153 = vld [vmem:[%s251 + $0x30] sm:$0xf]
      %v4154 = vld [vmem:[%s251 + $0x34] sm:$0xf]
      %v4155 = vld [vmem:[%s251 + $0x38] sm:$0xf]
      %v4156 = vld [vmem:[%s251 + $0x3c] sm:$0xf]
      %v4157 = vld [vmem:[%s251 + $0x40] sm:$0xf]
      %v4158 = vld [vmem:[%s251 + $0x44] sm:$0xf]
      %v4159 = vld [vmem:[%s251 + $0x48] sm:$0xf]
      %v4160 = vld [vmem:[%s251 + $0x4c] sm:$0xf]
      %v4161 = vld [vmem:[%s251 + $0x50] sm:$0xf]
      %v4162 = vld [vmem:[%s251 + $0x54] sm:$0xf]
      %v4163 = vld [vmem:[%s251 + $0x58] sm:$0xf]
      %v4164 = vld [vmem:[%s251 + $0x5c] sm:$0xf]
      %v4165 = vld [vmem:[%s251 + $0x60] sm:$0xf]
      %v4166 = vld [vmem:[%s251 + $0x64] sm:$0xf]
      %v4167 = vld [vmem:[%s251 + $0x68] sm:$0xf]
      %v4168 = vld [vmem:[%s251 + $0x6c] sm:$0xf]
      %v4169 = vld [vmem:[%s251 + $0x70] sm:$0xf]
      %v4170 = vld [vmem:[%s251 + $0x74] sm:$0xf]
      %v4171 = vld [vmem:[%s251 + $0x78] sm:$0xf]
      %v4172 = vld [vmem:[%s251 + $0x7c] sm:$0xf]
      %v4173 = vld [vmem:[%s251 + $0x80] sm:$0xf]
      %v4174 = vld [vmem:[%s251 + $0x84] sm:$0xf]
      %v4175 = vld [vmem:[%s251 + $0x88] sm:$0xf]
      %v4176 = vld [vmem:[%s251 + $0x8c] sm:$0xf]
      %v4177 = vld [vmem:[%s251 + $0x90] sm:$0xf]
      %v4178 = vld [vmem:[%s251 + $0x94] sm:$0xf]
      %v4179 = vld [vmem:[%s251 + $0x98] sm:$0xf]
      %v4180 = vld [vmem:[%s251 + $0x9c] sm:$0xf]
      %v4181 = vld [vmem:[%s251 + $0xa0] sm:$0xf]
      %v4182 = vld [vmem:[%s251 + $0xa4] sm:$0xf]
      %v4183 = vld [vmem:[%s251 + $0xa8] sm:$0xf]
      %v4184 = vld [vmem:[%s251 + $0xac] sm:$0xf]
      %v4185 = vld [vmem:[%s251 + $0xb0] sm:$0xf]
      %v4186 = vld [vmem:[%s251 + $0xb4] sm:$0xf]
      %v4187 = vld [vmem:[%s251 + $0xb8] sm:$0xf]
      %v4188 = vld [vmem:[%s251 + $0xbc] sm:$0xf]
      %v4189 = vld [vmem:[%s251 + $0xc0] sm:$0xf]
      %v4190 = vld [vmem:[%s251 + $0xc4] sm:$0xf]
      %v4191 = vld [vmem:[%s251 + $0xc8] sm:$0xf]
      %v4192 = vld [vmem:[%s251 + $0xcc] sm:$0xf]
      %v4193 = vld [vmem:[%s251 + $0xd0] sm:$0xf]
      %v4194 = vld [vmem:[%s251 + $0xd4] sm:$0xf]
      %v4195 = vld [vmem:[%s251 + $0xd8] sm:$0xf]
      %v4196 = vld [vmem:[%s251 + $0xdc] sm:$0xf]
      %v4197 = vld [vmem:[%s251 + $0xe0] sm:$0xf]
      %v4198 = vld [vmem:[%s251 + $0xe4] sm:$0xf]
      %v4199 = vld [vmem:[%s251 + $0xe8] sm:$0xf]
      %v4200 = vld [vmem:[%s251 + $0xec] sm:$0xf]
      %v4201 = vld [vmem:[%s251 + $0xf0] sm:$0xf]
      %v4202 = vld [vmem:[%s251 + $0xf4] sm:$0xf]
      %v4203 = vld [vmem:[%s251 + $0xf8] sm:$0xf]
      %v4204 = vld [vmem:[%s251 + $0xfc] sm:$0xf]
      %v4205 = vld [vmem:[%s251 + $0x100] sm:$0xf]
      %v4206 = vld [vmem:[%s251 + $0x104] sm:$0xf]
      %4207 = vxpose.xlu0.c.b16.start [1/8] %v4108, 128
      %4208 = vxpose.xlu0.c.b16.cont [2/8] %v4109, 128
      %4209 = vxpose.xlu0.c.b16.cont [3/8] %v4110, 128
      %4210 = vxpose.xlu0.c.b16.cont [4/8] %v4111, 128
      %4211 = vxpose.xlu0.c.b16.cont [5/8] %v4112, 128
      %4212 = vxpose.xlu0.c.b16.cont [6/8] %v4113, 128
      %4213 = vxpose.xlu0.c.b16.cont [7/8] %v4114, 128
      %4214 = vxpose.xlu0.c.b16.end [8/8] %v4115, 128
      %v4215 = vpop.trf.xlu0
      %v4216 = vpop.trf.xlu0
      %v4217 = vpop.trf.xlu0
      %v4218 = vpop.trf.xlu0
      %v4219 = vpop.trf.xlu0
      %v4220 = vpop.trf.xlu0
      %v4221 = vpop.trf.xlu0
      %v4222 = vpop.trf.xlu0
      %4223 = vxpose.xlu0.c.b16.start [1/8] %v4116, 128
      %4224 = vxpose.xlu0.c.b16.cont [2/8] %v4117, 128
      %4225 = vxpose.xlu0.c.b16.cont [3/8] %v4118, 128
      %4226 = vxpose.xlu0.c.b16.cont [4/8] %v4119, 128
      %4227 = vxpose.xlu0.c.b16.cont [5/8] %v4120, 128
      %4228 = vxpose.xlu0.c.b16.cont [6/8] %v4121, 128
      %4229 = vxpose.xlu0.c.b16.cont [7/8] %v4122, 128
      %4230 = vxpose.xlu0.c.b16.end [8/8] %v4123, 128
      %v4231 = vpop.trf.xlu0
      %v4232 = vpop.trf.xlu0
      %v4233 = vpop.trf.xlu0
      %v4234 = vpop.trf.xlu0
      %v4235 = vpop.trf.xlu0
      %v4236 = vpop.trf.xlu0
      %v4237 = vpop.trf.xlu0
      %v4238 = vpop.trf.xlu0
      %4239 = vxpose.xlu0.c.b16.start [1/8] %v4124, 128
      %4240 = vxpose.xlu0.c.b16.cont [2/8] %v4125, 128
      %4241 = vxpose.xlu0.c.b16.cont [3/8] %v4126, 128
      %4242 = vxpose.xlu0.c.b16.cont [4/8] %v4127, 128
      %4243 = vxpose.xlu0.c.b16.cont [5/8] %v4128, 128
      %4244 = vxpose.xlu0.c.b16.cont [6/8] %v4129, 128
      %4245 = vxpose.xlu0.c.b16.cont [7/8] %v4130, 128
      %4246 = vxpose.xlu0.c.b16.end [8/8] %v4131, 128
      %v4247 = vpop.trf.xlu0
      %v4248 = vpop.trf.xlu0
      %v4249 = vpop.trf.xlu0
      %v4250 = vpop.trf.xlu0
      %v4251 = vpop.trf.xlu0
      %v4252 = vpop.trf.xlu0
      %v4253 = vpop.trf.xlu0
      %v4254 = vpop.trf.xlu0
      %4255 = vxpose.xlu0.c.b16.start [1/8] %v4132, 128
      %4256 = vxpose.xlu0.c.b16.cont [2/8] %v4133, 128
      %4257 = vxpose.xlu0.c.b16.cont [3/8] %v4134, 128
      %4258 = vxpose.xlu0.c.b16.cont [4/8] %v4135, 128
      %4259 = vxpose.xlu0.c.b16.cont [5/8] %v4136, 128
      %4260 = vxpose.xlu0.c.b16.cont [6/8] %v4137, 128
      %4261 = vxpose.xlu0.c.b16.cont [7/8] %v4138, 128
      %4262 = vxpose.xlu0.c.b16.end [8/8] %v4139, 128
      %v4263 = vpop.trf.xlu0
      %v4264 = vpop.trf.xlu0
      %v4265 = vpop.trf.xlu0
      %v4266 = vpop.trf.xlu0
      %v4267 = vpop.trf.xlu0
      %v4268 = vpop.trf.xlu0
      %v4269 = vpop.trf.xlu0
      %v4270 = vpop.trf.xlu0
      %4271 = vxpose.xlu0.c.b16.start [1/8] %v4140, 128
      %4272 = vxpose.xlu0.c.b16.cont [2/8] 0, 128
      %4273 = vxpose.xlu0.c.b16.cont [3/8] 0, 128
      %4274 = vxpose.xlu0.c.b16.cont [4/8] 0, 128
      %4275 = vxpose.xlu0.c.b16.cont [5/8] 0, 128
      %4276 = vxpose.xlu0.c.b16.cont [6/8] 0, 128
      %4277 = vxpose.xlu0.c.b16.cont [7/8] 0, 128
      %4278 = vxpose.xlu0.c.b16.end [8/8] 0, 128
      %v4279 = vpop.trf.xlu0
      %v4280 = vpop.trf.xlu0
      %v4281 = vpop.trf.xlu0
      %v4282 = vpop.trf.xlu0
      %v4283 = vpop.trf.xlu0
      %v4284 = vpop.trf.xlu0
      %v4285 = vpop.trf.xlu0
      %v4286 = vpop.trf.xlu0
      %v4353 = vunpack.c.l.b16 %v4141
      %v4354 = vunpack.c.l.b16 %v4142
      %v4355 = vunpack.c.l.b16 %v4143
      %v4356 = vunpack.c.l.b16 %v4144
      %v4357 = vunpack.c.l.b16 %v4145
      %v4358 = vunpack.c.l.b16 %v4146
      %v4359 = vunpack.c.l.b16 %v4147
      %v4360 = vunpack.c.l.b16 %v4148
      %v4361 = vunpack.c.l.b16 %v4149
      %v4362 = vunpack.c.l.b16 %v4150
      %v4363 = vunpack.c.l.b16 %v4151
      %v4364 = vunpack.c.l.b16 %v4152
      %v4365 = vunpack.c.l.b16 %v4153
      %v4366 = vunpack.c.l.b16 %v4154
      %v4367 = vunpack.c.l.b16 %v4155
      %v4368 = vunpack.c.l.b16 %v4156
      %v4369 = vunpack.c.l.b16 %v4157
      %v4370 = vunpack.c.l.b16 %v4158
      %v4371 = vunpack.c.l.b16 %v4159
      %v4372 = vunpack.c.l.b16 %v4160
      %v4373 = vunpack.c.l.b16 %v4161
      %v4374 = vunpack.c.l.b16 %v4162
      %v4375 = vunpack.c.l.b16 %v4163
      %v4376 = vunpack.c.l.b16 %v4164
      %v4377 = vunpack.c.l.b16 %v4165
      %v4378 = vunpack.c.l.b16 %v4166
      %v4379 = vunpack.c.l.b16 %v4167
      %v4380 = vunpack.c.l.b16 %v4168
      %v4381 = vunpack.c.l.b16 %v4169
      %v4382 = vunpack.c.l.b16 %v4170
      %v4383 = vunpack.c.l.b16 %v4171
      %v4384 = vunpack.c.l.b16 %v4172
      %v4385 = vunpack.c.l.b16 %v4173
      %v4386 = vunpack.c.l.b16 %v4174
      %v4387 = vunpack.c.l.b16 %v4175
      %v4388 = vunpack.c.l.b16 %v4176
      %v4389 = vunpack.c.l.b16 %v4177
      %v4390 = vunpack.c.l.b16 %v4178
      %v4391 = vunpack.c.l.b16 %v4179
      %v4392 = vunpack.c.l.b16 %v4180
      %v4393 = vunpack.c.l.b16 %v4181
      %v4394 = vunpack.c.l.b16 %v4182
      %v4395 = vunpack.c.l.b16 %v4183
      %v4396 = vunpack.c.l.b16 %v4184
      %v4397 = vunpack.c.l.b16 %v4185
      %v4398 = vunpack.c.l.b16 %v4186
      %v4399 = vunpack.c.l.b16 %v4187
      %v4400 = vunpack.c.l.b16 %v4188
      %v4401 = vunpack.c.l.b16 %v4189
      %v4402 = vunpack.c.l.b16 %v4190
      %v4403 = vunpack.c.l.b16 %v4191
      %v4404 = vunpack.c.l.b16 %v4192
      %v4405 = vunpack.c.l.b16 %v4193
      %v4406 = vunpack.c.l.b16 %v4194
      %v4407 = vunpack.c.l.b16 %v4195
      %v4408 = vunpack.c.l.b16 %v4196
      %v4409 = vunpack.c.l.b16 %v4197
      %v4410 = vunpack.c.l.b16 %v4198
      %v4411 = vunpack.c.l.b16 %v4199
      %v4412 = vunpack.c.l.b16 %v4200
      %v4413 = vunpack.c.l.b16 %v4201
      %v4414 = vunpack.c.l.b16 %v4202
      %v4415 = vunpack.c.l.b16 %v4203
      %v4416 = vunpack.c.l.b16 %v4204
      %v4417 = vunpack.c.l.b16 %v4205
      %v4418 = vunpack.c.l.b16 %v4206
      %v4419 = vpack.c.b16 %v4354, %v4353
      %v4420 = vpack.c.b16 %v4356, %v4355
      %v4421 = vpack.c.b16 %v4358, %v4357
      %v4422 = vpack.c.b16 %v4360, %v4359
      %v4423 = vpack.c.b16 %v4362, %v4361
      %v4424 = vpack.c.b16 %v4364, %v4363
      %v4425 = vpack.c.b16 %v4366, %v4365
      %v4426 = vpack.c.b16 %v4368, %v4367
      %v4427 = vpack.c.b16 %v4370, %v4369
      %v4428 = vpack.c.b16 %v4372, %v4371
      %v4429 = vpack.c.b16 %v4374, %v4373
      %v4430 = vpack.c.b16 %v4376, %v4375
      %v4431 = vpack.c.b16 %v4378, %v4377
      %v4432 = vpack.c.b16 %v4380, %v4379
      %v4433 = vpack.c.b16 %v4382, %v4381
      %v4434 = vpack.c.b16 %v4384, %v4383
      %v4435 = vpack.c.b16 %v4386, %v4385
      %v4436 = vpack.c.b16 %v4388, %v4387
      %v4437 = vpack.c.b16 %v4390, %v4389
      %v4438 = vpack.c.b16 %v4392, %v4391
      %v4439 = vpack.c.b16 %v4394, %v4393
      %v4440 = vpack.c.b16 %v4396, %v4395
      %v4441 = vpack.c.b16 %v4398, %v4397
      %v4442 = vpack.c.b16 %v4400, %v4399
      %v4443 = vpack.c.b16 %v4402, %v4401
      %v4444 = vpack.c.b16 %v4404, %v4403
      %v4445 = vpack.c.b16 %v4406, %v4405
      %v4446 = vpack.c.b16 %v4408, %v4407
      %v4447 = vpack.c.b16 %v4410, %v4409
      %v4448 = vpack.c.b16 %v4412, %v4411
      %v4449 = vpack.c.b16 %v4414, %v4413
      %v4450 = vpack.c.b16 %v4416, %v4415
      %v4451 = vpack.c.b16 %v4418, %v4417
      %v4486 = vsel %vm523, %v4279, 0
      %4488 = vmatprep.subr.bf16.mxu0 0
      %4489 = vmatpush1.bf16.msra.mxu0 %v4426
      %4490 = vmatprep.subr.bf16.mxu0 0
      %4491 = vmatpush1.bf16.msra.mxu0 %v4425
      %4492 = vmatprep.subr.bf16.mxu0 0
      %4493 = vmatpush1.bf16.msra.mxu0 %v4424
      %4494 = vmatprep.subr.bf16.mxu0 0
      %4495 = vmatpush1.bf16.msra.mxu0 %v4423
      %4496 = vmatprep.subr.bf16.mxu0 0
      %4497 = vmatpush1.bf16.msra.mxu0 %v4422
      %4498 = vmatprep.subr.bf16.mxu0 0
      %4499 = vmatpush1.bf16.msra.mxu0 %v4421
      %4500 = vmatprep.subr.bf16.mxu0 0
      %4501 = vmatpush1.bf16.msra.mxu0 %v4420
      %4502 = vmatprep.subr.bf16.mxu0 0
      %4503 = vmatpush1.bf16.msra.mxu0 %v4419
      %4504 = vmatprep.subr.bf16.mxu0 0
      %4505 = vmatpush2.bf16.msra.mxu0 %v4434
      %4506 = vmatprep.subr.bf16.mxu0 0
      %4507 = vmatpush2.bf16.msra.mxu0 %v4433
      %4508 = vmatprep.subr.bf16.mxu0 0
      %4509 = vmatpush2.bf16.msra.mxu0 %v4432
      %4510 = vmatprep.subr.bf16.mxu0 0
      %4511 = vmatpush2.bf16.msra.mxu0 %v4431
      %4512 = vmatprep.subr.bf16.mxu0 0
      %4513 = vmatpush2.bf16.msra.mxu0 %v4430
      %4514 = vmatprep.subr.bf16.mxu0 0
      %4515 = vmatpush2.bf16.msra.mxu0 %v4429
      %4516 = vmatprep.subr.bf16.mxu0 0
      %4517 = vmatpush2.bf16.msra.mxu0 %v4428
      %4518 = vmatprep.subr.bf16.mxu0 0
      %4519 = vmatpush2.bf16.msra.mxu0 %v4427
      %4520 = vmatprep.mubr.bf16.mxu0 %v4231
      %4521 = vmatmul.mubr.bf16.gmra.mxu0 %v4215
      %v4522 = vpop.f32.mrf.mxu0
      %v4523 = vadd.f32 0.0, %v4522
      %v4524 = vpop.f32.mrf.mxu0
      %v4525 = vpop.f32.mrf.mxu0
      %v4526 = vpop.f32.mrf.mxu0
      %4527 = vdwg.mxu0
      %4528 = vmatprep.subr.bf16.mxu0 0
      %4529 = vmatpush1.bf16.msra.mxu0 %v4442
      %4530 = vmatprep.subr.bf16.mxu0 0
      %4531 = vmatpush1.bf16.msra.mxu0 %v4441
      %4532 = vmatprep.subr.bf16.mxu0 0
      %4533 = vmatpush1.bf16.msra.mxu0 %v4440
      %4534 = vmatprep.subr.bf16.mxu0 0
      %4535 = vmatpush1.bf16.msra.mxu0 %v4439
      %4536 = vmatprep.subr.bf16.mxu0 0
      %4537 = vmatpush1.bf16.msra.mxu0 %v4438
      %4538 = vmatprep.subr.bf16.mxu0 0
      %4539 = vmatpush1.bf16.msra.mxu0 %v4437
      %4540 = vmatprep.subr.bf16.mxu0 0
      %4541 = vmatpush1.bf16.msra.mxu0 %v4436
      %4542 = vmatprep.subr.bf16.mxu0 0
      %4543 = vmatpush1.bf16.msra.mxu0 %v4435
      %4544 = vmatprep.subr.bf16.mxu0 0
      %4545 = vmatpush2.bf16.msra.mxu0 %v4450
      %4546 = vmatprep.subr.bf16.mxu0 0
      %4547 = vmatpush2.bf16.msra.mxu0 %v4449
      %4548 = vmatprep.subr.bf16.mxu0 0
      %4549 = vmatpush2.bf16.msra.mxu0 %v4448
      %4550 = vmatprep.subr.bf16.mxu0 0
      %4551 = vmatpush2.bf16.msra.mxu0 %v4447
      %4552 = vmatprep.subr.bf16.mxu0 0
      %4553 = vmatpush2.bf16.msra.mxu0 %v4446
      %4554 = vmatprep.subr.bf16.mxu0 0
      %4555 = vmatpush2.bf16.msra.mxu0 %v4445
      %4556 = vmatprep.subr.bf16.mxu0 0
      %4557 = vmatpush2.bf16.msra.mxu0 %v4444
      %4558 = vmatprep.subr.bf16.mxu0 0
      %4559 = vmatpush2.bf16.msra.mxu0 %v4443
      %4560 = vmatprep.mubr.bf16.mxu0 %v4263
      %4561 = vmatmul.mubr.bf16.gmra.mxu0 %v4247
      %v4562 = vpop.f32.mrf.mxu0
      %v4563 = vadd.f32 %v4523, %v4562
      %v4564 = vpop.f32.mrf.mxu0
      %v4565 = vpop.f32.mrf.mxu0
      %v4566 = vpop.f32.mrf.mxu0
      %4567 = vdwg.mxu0
      %4568 = vmatprep.subr.bf16.mxu0 0
      %4569 = vmatpush1.bf16.msra.mxu0 0
      %4570 = vmatprep.subr.bf16.mxu0 0
      %4571 = vmatpush1.bf16.msra.mxu0 0
      %4572 = vmatprep.subr.bf16.mxu0 0
      %4573 = vmatpush1.bf16.msra.mxu0 0
      %4574 = vmatprep.subr.bf16.mxu0 0
      %4575 = vmatpush1.bf16.msra.mxu0 0
      %4576 = vmatprep.subr.bf16.mxu0 0
      %4577 = vmatpush1.bf16.msra.mxu0 0
      %4578 = vmatprep.subr.bf16.mxu0 0
      %4579 = vmatpush1.bf16.msra.mxu0 0
      %4580 = vmatprep.subr.bf16.mxu0 0
      %4581 = vmatpush1.bf16.msra.mxu0 0
      %4582 = vmatprep.subr.bf16.mxu0 0
      %4583 = vmatpush1.bf16.msra.mxu0 %v4451
      %4584 = vmatprep.subr.bf16.mxu0 0
      %4585 = vmatpush2.bf16.msra.mxu0 0
      %4586 = vmatprep.subr.bf16.mxu0 0
      %4587 = vmatpush2.bf16.msra.mxu0 0
      %4588 = vmatprep.subr.bf16.mxu0 0
      %4589 = vmatpush2.bf16.msra.mxu0 0
      %4590 = vmatprep.subr.bf16.mxu0 0
      %4591 = vmatpush2.bf16.msra.mxu0 0
      %4592 = vmatprep.subr.bf16.mxu0 0
      %4593 = vmatpush2.bf16.msra.mxu0 0
      %4594 = vmatprep.subr.bf16.mxu0 0
      %4595 = vmatpush2.bf16.msra.mxu0 0
      %4596 = vmatprep.subr.bf16.mxu0 0
      %4597 = vmatpush2.bf16.msra.mxu0 0
      %4598 = vmatprep.subr.bf16.mxu0 0
      %4599 = vmatpush2.bf16.msra.mxu0 0
      %4600 = vmatprep.mubr.bf16.mxu0 0
      %4601 = vmatmul.mubr.bf16.gmra.mxu0 %v4486
      %v4602 = vpop.f32.mrf.mxu0
      %v4603 = vadd.f32 %v4563, %v4602
      %v4604 = vpop.f32.mrf.mxu0
      %v4605 = vpop.f32.mrf.mxu0
      %v4606 = vpop.f32.mrf.mxu0
      %4607 = vdwg.mxu0
      %v4608 = vld [vmem:[#allocation4] sm:$0x1]
      %4610 = vset.pattern.permute.xlu0 0
      %4611 = vperm.xlu0 %4610, %v3759
      %v4612 = vpop.permute.xlu0 %4611
      %v4614 = vlaneseq
      %v4615 = vshrl.u32 %v4614, 7
      %v4616 = vsub.s32 0, %v4615
      %v4617 = vrot.slane %v4612, %v4616
      %v4618 = vmul.f32 %v4617, %v4608
      %v4619 = vadd.f32 %v4618, %v4603
      %vm4620 = vcmask 57344
      %4621 = vst.msk [vmem:[#allocation4] sm:$0x1] %vm4620, %v4619
      %p4622 = scmp.eq.s32.totalorder %s20, 1
      // Predicated region
      $region41: #{gca_forward.1} parent=35 // pred_check
        %p4623 = pneg %p4622
      $region42: #{gca_forward.1} parent=35 // pred_check_branch
        %4625 = sbr.rel (%p4623) target = $region44
      $region43: #{gca_forward.1} parent=35 // pred_region
        %v4626 = vld [vmem:[#allocation4] sm:$0x1]
        %v4627 = vld [vmem:[#allocation3] sm:$0x1]
        %4629 = vset.pattern.permute.xlu0 0
        %4630 = vperm.xlu0 %4629, %v4627
        %v4631 = vpop.permute.xlu0 %4630
        %v4633 = vlaneseq
        %v4634 = vshrl.u32 %v4633, 7
        %v4635 = vsub.s32 0, %v4634
        %v4636 = vrot.slane %v4631, %v4635
        %v4637 = vrcp.pop %v4636
        %v4638 = vmul.f32 %v4626, %v4637
        %4639 = vst.msk [vmem:[%s255] sm:$0x1] %vm4620, %v4638
      $region44: #{gca_forward.1} parent=35 // pred_fallthru
        _
      %p4640 = scmp.lt.s32.totalorder %s19, 1
      %s4641 = scalar_select %p4640, %s19, 1
      %s4642 = scalar_lea.vmem %s4, %s4641
      // Predicated region
      $region45: #{gca_forward.1} parent=35 // pred_check
        %p4643 = pneg %p143
      $region46: #{gca_forward.1} parent=35 // pred_check_branch
        %4645 = sbr.rel (%p4643) target = $region48
      $region47: #{gca_forward.1} parent=35 // pred_region
        _
      $region48: #{gca_forward.1} parent=35 // pred_fallthru
        _
    $region36: #{gca_forward.1} parent=5 // pred_fallthru
      _
    %p4646 = scmp.le.s32.totalorder 2, %s10
    // Predicated region
    $region49: #{gca_forward.1} parent=5 // pred_check
      %p4647 = pneg %p4646
    $region50: #{gca_forward.1} parent=5 // pred_check_branch
      %4649 = sbr.rel (%p4647) target = $region52
    $region51: #{gca_forward.1} parent=5 // pred_region
      %s4650 = ssub.s32 %s10, 2
      // Predicated region
      $region53: #{gca_forward.1} parent=51 // pred_check
        %p4651 = pneg %p149
      $region54: #{gca_forward.1} parent=51 // pred_check_branch
        %4653 = sbr.rel (%p4651) target = $region56
      $region55: #{gca_forward.1} parent=51 // pred_region
        %p4654 = scmp.lt.s32.totalorder %s21, 1
        %s4655 = scalar_select %p4654, %s21, 1
        %s4656 = scalar_lea.vmem %s4, %s4655
      $region56: #{gca_forward.1} parent=51 // pred_fallthru
        _
    $region52: #{gca_forward.1} parent=5 // pred_fallthru
      _
  $region6: #{gca_forward.1} parent=0 // loop_footer
    %s14 = sadd.s32 1, %s10
  $region7: #{gca_forward.1} parent=0 // loop_footer_branch
    %9 = sbr.rel target = $region3
  $region8: #{gca_forward.1} parent=0 // loop_exit
    _

</llo_original>
